<compile_context>
chip_gen: v7x
topology: tpu7x:2x2x1
jax: 0.10.0
libtpu: 0.0.40
codegen_flags: <defaults>
</compile_context>

<pallas_src>
import math

import jax
import jax.numpy as jnp
from jax.experimental import pallas as pl
from jax.experimental.pallas import tpu as pltpu


# ----------------------------------------------------------------------------
# Fused forward kernel factory
# ----------------------------------------------------------------------------
def _build_kernel(T, dm, H, dh, L, R, eps=1e-5):
    f32 = jnp.float32
    bf16 = jnp.bfloat16
    scale = 1.0 / math.sqrt(dh)
    H3 = 3 * H

    def kernel(x_ref, m_ref, pkf_ref, reld_ref, negm_ref,
               enc_w1x, enc_w1m, enc_b1, enc_w2, enc_b2,
               kf_w1, kf_b1, kf_w2, kf_b2,
               rel_w1, rel_b1, rel_w2, rel_b2,
               dec_w1, dec_b1, dec_w2, dec_b2,
               ln_g, ln_b, pg,
               wqkv, bqkv, wo, bo,
               fw1, fb1, fw2, fb2, fa,
               out_ref,
               h_scr, er_scr):
        l = pl.program_id(1)

        def mm(a, w_ref):
            # bf16 MXU inputs (weights already bf16), f32 accumulation.
            return jnp.dot(a.astype(bf16), w_ref[...],
                           preferred_element_type=f32)

        def prelu(v, a):
            return jnp.where(v > 0, v, a * v)

        def layernorm(v):
            mu = jnp.mean(v, axis=-1, keepdims=True)
            var = jnp.mean((v - mu) ** 2, axis=-1, keepdims=True)
            return (v - mu) * jax.lax.rsqrt(var + eps) * ln_g[...] + ln_b[...]

        # ----- encoder + keyframe PE + relative embeddings: once per batch ---
        @pl.when(l == 0)
        def _init():
            pe = mm(pkf_ref[...], kf_w1) + kf_b1[...]
            pe = prelu(pe, pg[:, 2:3])
            pe = mm(pe, kf_w2) + kf_b2[...]

            h0 = mm(x_ref[...], enc_w1x) + mm(m_ref[...], enc_w1m) + enc_b1[...]
            h0 = prelu(h0, pg[:, 0:1])
            h0 = mm(h0, enc_w2) + enc_b2[...]
            h0 = prelu(h0, pg[:, 1:2])
            h_scr[...] = h0 + pe                                   # (T, dm) f32

            # relative positional embeddings on the zero-padded distance table
            e1 = reld_ref[...] * rel_w1[...].astype(f32) + rel_b1[...]  # (R, dm)
            e1 = prelu(e1, pg[:, 3:4])
            er = mm(e1, rel_w2) + rel_b2[...]                      # (R, dh)
            er_scr[...] = er.astype(bf16)

        # ----------------------- transformer layer l -------------------------
        h = h_scr[...]                                             # (T, dm) f32

        # --- relative-position multi-head attention sublayer ---
        hn = layernorm(h)
        hb = hn.astype(bf16)
        hb3 = jnp.broadcast_to(hb[None, :, :], (H3, T, dm))
        qkv = jax.lax.dot_general(
            hb3, wqkv[...],
            dimension_numbers=(((2,), (1,)), ((0,), (0,))),
            preferred_element_type=f32)                            # (3H, T, dh)
        qkv = qkv + bqkv[...]
        q = qkv[:H].astype(bf16)
        k = qkv[H:2 * H].astype(bf16)
        v = qkv[2 * H:].astype(bf16)

        s = jax.lax.dot_general(
            q, k, dimension_numbers=(((2,), (2,)), ((0,), (0,))),
            preferred_element_type=f32)                            # (H, T, T)

        # skew-matmul for the relative term: (H*T, dh) @ (R, dh)^T on the MXU,
        # then a per-query-row lane rotation so column j picks distance j - i.
        srf = jax.lax.dot_general(
            q.reshape(H * T, dh), er_scr[...],
            dimension_numbers=(((1,), (1,)), ((), ())),
            preferred_element_type=f32).reshape(H, T, R)           # (H, T, R)
        sr = pltpu.roll(srf, shift=R - T + 1, axis=2, stride=1, stride_axis=1)
        sr = sr[:, :, :T]                                          # (H, T, T)

        logits = (s + sr) * scale + negm_ref[...][None, :, :]
        logits = logits - jnp.max(logits, axis=-1, keepdims=True)
        p = jnp.exp(logits)
        p = p * pl.reciprocal(jnp.sum(p, axis=-1, keepdims=True), approx=True)

        o = jax.lax.dot_general(
            p.astype(bf16), v,
            dimension_numbers=(((2,), (1,)), ((0,), (0,))),
            preferred_element_type=f32)                            # (H, T, dh)
        o_cat = jnp.concatenate([o[i] for i in range(H)], axis=-1)  # (T, dm)
        h = h + (mm(o_cat, wo) + bo[...])

        # --- feed-forward sublayer ---
        hn2 = layernorm(h)
        u = mm(hn2, fw1) + fb1[...]
        u = prelu(u, fa[...])
        h = h + (mm(u, fw2) + fb2[...])
        h_scr[...] = h

        # ----------------------------- decoder --------------------------------
        @pl.when(l == L - 1)
        def _finalize():
            d = mm(h, dec_w1) + dec_b1[...]
            d = prelu(d, pg[:, 4:5])
            out_ref[...] = mm(d, dec_w2) + dec_b2[...]             # (T, dof)

    return kernel


# ----------------------------------------------------------------------------
# Wrapper: one pallas_call, grid = (batch, layer)
# ----------------------------------------------------------------------------
def context_transformer_forward(params, x, mask_in, p_kf):
    B, T, dof = x.shape
    dm = params["ln_g"].shape[-1]
    L, H3, _, dh = params["wqkv"].shape
    H = H3 // 3
    dff = params["fw1"].shape[-1]
    R = 128 * pl.cdiv(2 * T - 1, 128)        # lane-dense, zero-padded rel table

    reld = jnp.zeros((R, 1), jnp.float32).at[:2 * T - 1, 0].set(
        jnp.arange(-T + 1, T, dtype=jnp.float32))
    m_in = jnp.sum(mask_in, axis=-1)                                   # (B, T)
    negm = jnp.where(m_in > 0, 0.0, -1e9).astype(jnp.float32)[:, None, :]

    def full_spec(arr):
        nd = arr.ndim
        return pl.BlockSpec(arr.shape, lambda b, l, _n=nd: (0,) * _n)

    def batch_spec(arr):
        tail = arr.shape[1:]
        nt = len(tail)
        return pl.BlockSpec((None,) + tail,
                            lambda b, l, _n=nt: (b,) + (0,) * _n)

    def layer_spec(arr):
        tail = arr.shape[1:]
        nt = len(tail)
        return pl.BlockSpec((None,) + tail,
                            lambda b, l, _n=nt: (l,) + (0,) * _n)

    p = params
    inputs = [
        (x, batch_spec), (mask_in, batch_spec), (p_kf, batch_spec),
        (reld, full_spec), (negm, batch_spec),
        (p["enc_w1x"], full_spec), (p["enc_w1m"], full_spec),
        (p["enc_b1"], full_spec), (p["enc_w2"], full_spec), (p["enc_b2"], full_spec),
        (p["kf_w1"], full_spec), (p["kf_b1"], full_spec),
        (p["kf_w2"], full_spec), (p["kf_b2"], full_spec),
        (p["rel_w1"], full_spec), (p["rel_b1"], full_spec),
        (p["rel_w2"], full_spec), (p["rel_b2"], full_spec),
        (p["dec_w1"], full_spec), (p["dec_b1"], full_spec),
        (p["dec_w2"], full_spec), (p["dec_b2"], full_spec),
        (p["ln_g"], full_spec), (p["ln_b"], full_spec),
        (p["prelu_g"], full_spec),
        (p["wqkv"], layer_spec), (p["bqkv"], layer_spec),
        (p["wo"], layer_spec), (p["bo"], layer_spec),
        (p["fw1"], layer_spec), (p["fb1"], layer_spec),
        (p["fw2"], layer_spec), (p["fb2"], layer_spec),
        (p["prelu_f"], layer_spec),
    ]
    args = [a for a, _ in inputs]
    in_specs = [mk(a) for a, mk in inputs]

    mxu_flops = (
        2 * T * (2 * dof) * dm + 2 * T * dm * dm          # encoder
        + 2 * T * 2 * dm + 2 * T * dm * dm                # keyframe pos-enc
        + 2 * R * dm * dh                                 # relative pos-enc
        + L * (2 * T * dm * 3 * dm                        # qkv projection
               + 2 * H * T * T * dh                       # q k^T
               + 2 * H * T * R * dh                       # q e_rel^T (skew)
               + 2 * H * T * T * dh                       # p v
               + 2 * T * dm * dm                          # output projection
               + 4 * T * dm * dff)                        # ffn
        + 2 * T * dm * dm + 2 * T * dm * dof              # decoder
    )
    cost = pl.CostEstimate(
        flops=int(B * mxu_flops),
        transcendentals=int(B * L * H * T * T),
        bytes_accessed=int(sum(a.size * a.dtype.itemsize for a in args)
                           + B * T * dof * 4),
    )

    kernel = _build_kernel(T, dm, H, dh, L, R)
    return pl.pallas_call(
        kernel,
        out_shape=jax.ShapeDtypeStruct((B, T, dof), jnp.float32),
        grid=(B, L),
        in_specs=in_specs,
        out_specs=pl.BlockSpec((None, T, dof), lambda b, l: (b, 0, 0)),
        scratch_shapes=[pltpu.VMEM((T, dm), jnp.float32),      # residual h
                        pltpu.VMEM((R, dh), jnp.bfloat16)],    # E_rel (padded)
        compiler_params=pltpu.CompilerParams(
            dimension_semantics=("parallel", "arbitrary"),
            vmem_limit_bytes=48 * 1024 * 1024),
        cost_estimate=cost,
    )(*args)


# ----------------------------------------------------------------------------
# Parameter construction (deterministic, synthetic).  Matmul weights are stored
# pre-transposed ((in, out)), head-stacked where useful, and cast to bf16 once
# at init; biases / LayerNorm / PReLU parameters stay f32.
# ----------------------------------------------------------------------------
def _dense(key, din, dout, scale=0.05):
    kw, kb = jax.random.split(key)
    w = scale * jax.random.normal(kw, (din, dout), jnp.float32)
    b = scale * jax.random.normal(kb, (1, dout), jnp.float32)
    return w, b


def init_params(key, dof, num_layers, num_heads, d_model, d_ff):
    assert d_model % num_heads == 0
    dh = d_model // num_heads
    H = num_heads
    bf16 = jnp.bfloat16
    keys = jax.random.split(key, 8 + 6 * num_layers)
    ki = iter(keys)

    enc_w1, enc_b1 = _dense(next(ki), dof * 2, d_model)
    enc_w2, enc_b2 = _dense(next(ki), d_model, d_model)
    kf_w1, kf_b1 = _dense(next(ki), 2, d_model)
    kf_w2, kf_b2 = _dense(next(ki), d_model, d_model)
    rel_w1, rel_b1 = _dense(next(ki), 1, d_model)
    rel_w2, rel_b2 = _dense(next(ki), d_model, dh)
    dec_w1, dec_b1 = _dense(next(ki), d_model, d_model)
    dec_w2, dec_b2 = _dense(next(ki), d_model, dof)

    def heads_w(w):   # (dm, dm) -> (H, dm, dh), head-major stacking
        return jnp.transpose(w.reshape(d_model, H, dh), (1, 0, 2))

    def heads_b(b):   # (1, dm) -> (H, 1, dh)
        return jnp.transpose(b.reshape(1, H, dh), (1, 0, 2))

    wqkv, bqkv, wo, bo = [], [], [], []
    fw1, fb1, fw2, fb2 = [], [], [], []
    for _ in range(num_layers):
        wq, bq = _dense(next(ki), d_model, d_model)
        wk, bk = _dense(next(ki), d_model, d_model)
        wv, bv = _dense(next(ki), d_model, d_model)
        wo_l, bo_l = _dense(next(ki), d_model, d_model)
        w1, b1 = _dense(next(ki), d_model, d_ff)
        w2, b2 = _dense(next(ki), d_ff, d_model)
        wqkv.append(jnp.concatenate([heads_w(wq), heads_w(wk), heads_w(wv)], 0))
        bqkv.append(jnp.concatenate([heads_b(bq), heads_b(bk), heads_b(bv)], 0))
        wo.append(wo_l)                              # (dm, dm), head-major rows
        bo.append(bo_l)                              # (1, dm)
        fw1.append(w1); fb1.append(b1); fw2.append(w2); fb2.append(b2)

    return {
        "enc_w1x": enc_w1[:dof].astype(bf16),        # split: x half of concat
        "enc_w1m": enc_w1[dof:].astype(bf16),        # split: mask half
        "enc_b1": enc_b1, "enc_w2": enc_w2.astype(bf16), "enc_b2": enc_b2,
        "kf_w1": kf_w1.astype(bf16), "kf_b1": kf_b1,
        "kf_w2": kf_w2.astype(bf16), "kf_b2": kf_b2,
        "rel_w1": rel_w1.astype(bf16), "rel_b1": rel_b1,
        "rel_w2": rel_w2.astype(bf16), "rel_b2": rel_b2,
        "dec_w1": dec_w1.astype(bf16), "dec_b1": dec_b1,
        "dec_w2": dec_w2.astype(bf16), "dec_b2": dec_b2,
        "ln_g": jnp.ones((1, d_model), jnp.float32),
        "ln_b": jnp.zeros((1, d_model), jnp.float32),
        # PReLU slopes: global [enc1, enc2, kf, rel, dec] + per-layer FFN
        "prelu_g": jnp.full((1, 5), 0.25, jnp.float32),
        "prelu_f": jnp.full((num_layers, 1, 1), 0.25, jnp.float32),
        "wqkv": jnp.stack(wqkv).astype(bf16),        # (L, 3H, dm, dh)
        "bqkv": jnp.stack(bqkv),                     # (L, 3H, 1, dh)
        "wo": jnp.stack(wo).astype(bf16),            # (L, dm, dm)
        "bo": jnp.stack(bo),                         # (L, 1, dm)
        "fw1": jnp.stack(fw1).astype(bf16), "fb1": jnp.stack(fb1),
        "fw2": jnp.stack(fw2).astype(bf16), "fb2": jnp.stack(fb2),
    }


# ----------------------------------------------------------------------------
if __name__ == "__main__":
    B, T, dof = 2, 8, 8
    num_layers, num_heads, d_model, d_ff = 2, 4, 32, 64

    key = jax.random.PRNGKey(0)
    k_param, k_x, k_pkf = jax.random.split(key, 3)
    params = init_params(k_param, dof, num_layers, num_heads, d_model, d_ff)

    x = jax.random.normal(k_x, (B, T, dof), dtype=jnp.float32)
    # keyframe mask: first and last frames are known keyframes
    kf = jnp.zeros((B, T), jnp.float32).at[:, 0].set(1.0).at[:, -1].set(1.0)
    mask_in = jnp.broadcast_to(kf[:, :, None], (B, T, dof)).astype(jnp.float32)
    x = x * mask_in
    p_kf = jax.random.normal(k_pkf, (B, T, 2), dtype=jnp.float32)

    y = context_transformer_forward(params, x, mask_in, p_kf)
    jax.block_until_ready(y)
    assert y.shape == (B, T, dof) and y.dtype == jnp.float32
    assert bool(jnp.all(jnp.isfinite(y)))
    print("KERNEL_OK")
</pallas_src>

<mosaic_0001>
module attributes {stable_mosaic.version = 11 : i64} {
  func.func @kernel(%arg0: i32, %arg1: i32, %arg2: memref<1x8x8xf32, #tpu.memory_space<vmem>>, %arg3: memref<1x8x8xf32, #tpu.memory_space<vmem>>, %arg4: memref<1x8x2xf32, #tpu.memory_space<vmem>>, %arg5: memref<128x1xf32, #tpu.memory_space<vmem>>, %arg6: memref<1x1x8xf32, #tpu.memory_space<vmem>>, %arg7: memref<8x32xbf16, #tpu.memory_space<vmem>>, %arg8: memref<8x32xbf16, #tpu.memory_space<vmem>>, %arg9: memref<1x32xf32, #tpu.memory_space<vmem>>, %arg10: memref<32x32xbf16, #tpu.memory_space<vmem>>, %arg11: memref<1x32xf32, #tpu.memory_space<vmem>>, %arg12: memref<2x32xbf16, #tpu.memory_space<vmem>>, %arg13: memref<1x32xf32, #tpu.memory_space<vmem>>, %arg14: memref<32x32xbf16, #tpu.memory_space<vmem>>, %arg15: memref<1x32xf32, #tpu.memory_space<vmem>>, %arg16: memref<1x32xbf16, #tpu.memory_space<vmem>>, %arg17: memref<1x32xf32, #tpu.memory_space<vmem>>, %arg18: memref<32x8xbf16, #tpu.memory_space<vmem>>, %arg19: memref<1x8xf32, #tpu.memory_space<vmem>>, %arg20: memref<32x32xbf16, #tpu.memory_space<vmem>>, %arg21: memref<1x32xf32, #tpu.memory_space<vmem>>, %arg22: memref<32x8xbf16, #tpu.memory_space<vmem>>, %arg23: memref<1x8xf32, #tpu.memory_space<vmem>>, %arg24: memref<1x32xf32, #tpu.memory_space<vmem>>, %arg25: memref<1x32xf32, #tpu.memory_space<vmem>>, %arg26: memref<1x5xf32, #tpu.memory_space<vmem>>, %arg27: memref<1x12x32x8xbf16, #tpu.memory_space<vmem>>, %arg28: memref<1x12x1x8xf32, #tpu.memory_space<vmem>>, %arg29: memref<1x32x32xbf16, #tpu.memory_space<vmem>>, %arg30: memref<1x1x32xf32, #tpu.memory_space<vmem>>, %arg31: memref<1x32x64xbf16, #tpu.memory_space<vmem>>, %arg32: memref<1x1x64xf32, #tpu.memory_space<vmem>>, %arg33: memref<1x64x32xbf16, #tpu.memory_space<vmem>>, %arg34: memref<1x1x32xf32, #tpu.memory_space<vmem>>, %arg35: memref<1x1x1xf32, #tpu.memory_space<vmem>>, %arg36: memref<1x8x8xf32, #tpu.memory_space<vmem>>, %arg37: memref<8x32xf32, #tpu.memory_space<vmem>>, %arg38: memref<128x8xbf16, #tpu.memory_space<vmem>>) attributes {dimension_semantics = [#tpu.dimension_semantics<parallel>, #tpu.dimension_semantics<arbitrary>], iteration_bounds = array<i64: 2, 2>, scalar_prefetch = 0 : i64, scratch_operands = 2 : i64, tpu.core_type = #tpu.core_type<tc>, window_params = [{transform_indices = @transform_0, window_bounds = array<i64: 1, 8, 8>}, {transform_indices = @transform_1, window_bounds = array<i64: 1, 8, 8>}, {transform_indices = @transform_2, window_bounds = array<i64: 1, 8, 2>}, {pipeline_mode = #tpu.pipeline_mode<synchronous>, transform_indices = @transform_3, window_bounds = array<i64: 128, 1>}, {transform_indices = @transform_4, window_bounds = array<i64: 1, 1, 8>}, {pipeline_mode = #tpu.pipeline_mode<synchronous>, transform_indices = @transform_5, window_bounds = array<i64: 8, 32>}, {pipeline_mode = #tpu.pipeline_mode<synchronous>, transform_indices = @transform_6, window_bounds = array<i64: 8, 32>}, {pipeline_mode = #tpu.pipeline_mode<synchronous>, transform_indices = @transform_7, window_bounds = array<i64: 1, 32>}, {pipeline_mode = #tpu.pipeline_mode<synchronous>, transform_indices = @transform_8, window_bounds = array<i64: 32, 32>}, {pipeline_mode = #tpu.pipeline_mode<synchronous>, transform_indices = @transform_9, window_bounds = array<i64: 1, 32>}, {pipeline_mode = #tpu.pipeline_mode<synchronous>, transform_indices = @transform_10, window_bounds = array<i64: 2, 32>}, {pipeline_mode = #tpu.pipeline_mode<synchronous>, transform_indices = @transform_11, window_bounds = array<i64: 1, 32>}, {pipeline_mode = #tpu.pipeline_mode<synchronous>, transform_indices = @transform_12, window_bounds = array<i64: 32, 32>}, {pipeline_mode = #tpu.pipeline_mode<synchronous>, transform_indices = @transform_13, window_bounds = array<i64: 1, 32>}, {pipeline_mode = #tpu.pipeline_mode<synchronous>, transform_indices = @transform_14, window_bounds = array<i64: 1, 32>}, {pipeline_mode = #tpu.pipeline_mode<synchronous>, transform_indices = @transform_15, window_bounds = array<i64: 1, 32>}, {pipeline_mode = #tpu.pipeline_mode<synchronous>, transform_indices = @transform_16, window_bounds = array<i64: 32, 8>}, {pipeline_mode = #tpu.pipeline_mode<synchronous>, transform_indices = @transform_17, window_bounds = array<i64: 1, 8>}, {pipeline_mode = #tpu.pipeline_mode<synchronous>, transform_indices = @transform_18, window_bounds = array<i64: 32, 32>}, {pipeline_mode = #tpu.pipeline_mode<synchronous>, transform_indices = @transform_19, window_bounds = array<i64: 1, 32>}, {pipeline_mode = #tpu.pipeline_mode<synchronous>, transform_indices = @transform_20, window_bounds = array<i64: 32, 8>}, {pipeline_mode = #tpu.pipeline_mode<synchronous>, transform_indices = @transform_21, window_bounds = array<i64: 1, 8>}, {pipeline_mode = #tpu.pipeline_mode<synchronous>, transform_indices = @transform_22, window_bounds = array<i64: 1, 32>}, {pipeline_mode = #tpu.pipeline_mode<synchronous>, transform_indices = @transform_23, window_bounds = array<i64: 1, 32>}, {pipeline_mode = #tpu.pipeline_mode<synchronous>, transform_indices = @transform_24, window_bounds = array<i64: 1, 5>}, {transform_indices = @transform_25, window_bounds = array<i64: 1, 12, 32, 8>}, {transform_indices = @transform_26, window_bounds = array<i64: 1, 12, 1, 8>}, {transform_indices = @transform_27, window_bounds = array<i64: 1, 32, 32>}, {transform_indices = @transform_28, window_bounds = array<i64: 1, 1, 32>}, {transform_indices = @transform_29, window_bounds = array<i64: 1, 32, 64>}, {transform_indices = @transform_30, window_bounds = array<i64: 1, 1, 64>}, {transform_indices = @transform_31, window_bounds = array<i64: 1, 64, 32>}, {transform_indices = @transform_32, window_bounds = array<i64: 1, 1, 32>}, {transform_indices = @transform_33, window_bounds = array<i64: 1, 1, 1>}, {transform_indices = @transform_34, window_bounds = array<i64: 1, 8, 8>}]} {
    %c0_i32 = arith.constant 0 : i32
    %0 = arith.cmpi eq, %arg1, %c0_i32 : i32
    %1 = arith.extui %0 : i1 to i32
    %c0_i32_0 = arith.constant 0 : i32
    %2 = arith.cmpi ne, %1, %c0_i32_0 : i32
    scf.if %2 {
      %c0_67 = arith.constant 0 : index
      %c0_68 = arith.constant 0 : index
      %c0_69 = arith.constant 0 : index
      %142 = vector.load %arg4[%c0_67, %c0_68, %c0_69] : memref<1x8x2xf32, #tpu.memory_space<vmem>>, vector<1x8x2xf32>
      %143 = vector.shape_cast %142 : vector<1x8x2xf32> to vector<8x2xf32>
      %144 = arith.truncf %143 : vector<8x2xf32> to vector<8x2xbf16>
      %c0_70 = arith.constant 0 : index
      %c0_71 = arith.constant 0 : index
      %145 = vector.load %arg12[%c0_70, %c0_71] : memref<2x32xbf16, #tpu.memory_space<vmem>>, vector<2x32xbf16>
      %cst_72 = arith.constant dense<0.000000e+00> : vector<8x32xf32>
      %146 = tpu.matmul %144, %145, %cst_72 {dimension_numbers = #tpu.dot_dimension_numbers<[1], [0], [0], [1], [0, 0, 1, 1], [], []>} : vector<8x2xbf16>, vector<2x32xbf16>, vector<8x32xf32> -> vector<8x32xf32>
      %c0_73 = arith.constant 0 : index
      %c0_74 = arith.constant 0 : index
      %147 = vector.load %arg13[%c0_73, %c0_74] : memref<1x32xf32, #tpu.memory_space<vmem>>, vector<1x32xf32>
      %148 = vector.broadcast %147 : vector<1x32xf32> to vector<8x32xf32>
      %149 = arith.addf %146, %148 : vector<8x32xf32>
      %c0_75 = arith.constant 0 : index
      %c2 = arith.constant 2 : index
      %150 = vector.load %arg26[%c0_75, %c2] : memref<1x5xf32, #tpu.memory_space<vmem>>, vector<1x1xf32>
      %cst_76 = arith.constant 0.000000e+00 : f32
      %151 = vector.broadcast %cst_76 : f32 to vector<8x32xf32>
      %152 = arith.cmpf ogt, %149, %151 : vector<8x32xf32>
      %153 = vector.broadcast %150 : vector<1x1xf32> to vector<8x32xf32>
      %154 = arith.mulf %153, %149 : vector<8x32xf32>
      %155 = arith.select %152, %149, %154 : vector<8x32xi1>, vector<8x32xf32>
      %156 = arith.truncf %155 : vector<8x32xf32> to vector<8x32xbf16>
      %c0_77 = arith.constant 0 : index
      %c0_78 = arith.constant 0 : index
      %157 = vector.load %arg14[%c0_77, %c0_78] : memref<32x32xbf16, #tpu.memory_space<vmem>>, vector<32x32xbf16>
      %cst_79 = arith.constant dense<0.000000e+00> : vector<8x32xf32>
      %158 = tpu.matmul %156, %157, %cst_79 {dimension_numbers = #tpu.dot_dimension_numbers<[1], [0], [0], [1], [0, 0, 1, 1], [], []>} : vector<8x32xbf16>, vector<32x32xbf16>, vector<8x32xf32> -> vector<8x32xf32>
      %c0_80 = arith.constant 0 : index
      %c0_81 = arith.constant 0 : index
      %159 = vector.load %arg15[%c0_80, %c0_81] : memref<1x32xf32, #tpu.memory_space<vmem>>, vector<1x32xf32>
      %160 = vector.broadcast %159 : vector<1x32xf32> to vector<8x32xf32>
      %161 = arith.addf %158, %160 : vector<8x32xf32>
      %c0_82 = arith.constant 0 : index
      %c0_83 = arith.constant 0 : index
      %c0_84 = arith.constant 0 : index
      %162 = vector.load %arg2[%c0_82, %c0_83, %c0_84] : memref<1x8x8xf32, #tpu.memory_space<vmem>>, vector<1x8x8xf32>
      %163 = vector.shape_cast %162 : vector<1x8x8xf32> to vector<8x8xf32>
      %164 = arith.truncf %163 : vector<8x8xf32> to vector<8x8xbf16>
      %c0_85 = arith.constant 0 : index
      %c0_86 = arith.constant 0 : index
      %165 = vector.load %arg7[%c0_85, %c0_86] : memref<8x32xbf16, #tpu.memory_space<vmem>>, vector<8x32xbf16>
      %cst_87 = arith.constant dense<0.000000e+00> : vector<8x32xf32>
      %166 = tpu.matmul %164, %165, %cst_87 {dimension_numbers = #tpu.dot_dimension_numbers<[1], [0], [0], [1], [0, 0, 1, 1], [], []>} : vector<8x8xbf16>, vector<8x32xbf16>, vector<8x32xf32> -> vector<8x32xf32>
      %c0_88 = arith.constant 0 : index
      %c0_89 = arith.constant 0 : index
      %c0_90 = arith.constant 0 : index
      %167 = vector.load %arg3[%c0_88, %c0_89, %c0_90] : memref<1x8x8xf32, #tpu.memory_space<vmem>>, vector<1x8x8xf32>
      %168 = vector.shape_cast %167 : vector<1x8x8xf32> to vector<8x8xf32>
      %169 = arith.truncf %168 : vector<8x8xf32> to vector<8x8xbf16>
      %c0_91 = arith.constant 0 : index
      %c0_92 = arith.constant 0 : index
      %170 = vector.load %arg8[%c0_91, %c0_92] : memref<8x32xbf16, #tpu.memory_space<vmem>>, vector<8x32xbf16>
      %cst_93 = arith.constant dense<0.000000e+00> : vector<8x32xf32>
      %171 = tpu.matmul %169, %170, %cst_93 {dimension_numbers = #tpu.dot_dimension_numbers<[1], [0], [0], [1], [0, 0, 1, 1], [], []>} : vector<8x8xbf16>, vector<8x32xbf16>, vector<8x32xf32> -> vector<8x32xf32>
      %172 = arith.addf %166, %171 : vector<8x32xf32>
      %c0_94 = arith.constant 0 : index
      %c0_95 = arith.constant 0 : index
      %173 = vector.load %arg9[%c0_94, %c0_95] : memref<1x32xf32, #tpu.memory_space<vmem>>, vector<1x32xf32>
      %174 = vector.broadcast %173 : vector<1x32xf32> to vector<8x32xf32>
      %175 = arith.addf %172, %174 : vector<8x32xf32>
      %c0_96 = arith.constant 0 : index
      %c0_97 = arith.constant 0 : index
      %176 = vector.load %arg26[%c0_96, %c0_97] : memref<1x5xf32, #tpu.memory_space<vmem>>, vector<1x1xf32>
      %cst_98 = arith.constant 0.000000e+00 : f32
      %177 = vector.broadcast %cst_98 : f32 to vector<8x32xf32>
      %178 = arith.cmpf ogt, %175, %177 : vector<8x32xf32>
      %179 = vector.broadcast %176 : vector<1x1xf32> to vector<8x32xf32>
      %180 = arith.mulf %179, %175 : vector<8x32xf32>
      %181 = arith.select %178, %175, %180 : vector<8x32xi1>, vector<8x32xf32>
      %182 = arith.truncf %181 : vector<8x32xf32> to vector<8x32xbf16>
      %c0_99 = arith.constant 0 : index
      %c0_100 = arith.constant 0 : index
      %183 = vector.load %arg10[%c0_99, %c0_100] : memref<32x32xbf16, #tpu.memory_space<vmem>>, vector<32x32xbf16>
      %cst_101 = arith.constant dense<0.000000e+00> : vector<8x32xf32>
      %184 = tpu.matmul %182, %183, %cst_101 {dimension_numbers = #tpu.dot_dimension_numbers<[1], [0], [0], [1], [0, 0, 1, 1], [], []>} : vector<8x32xbf16>, vector<32x32xbf16>, vector<8x32xf32> -> vector<8x32xf32>
      %c0_102 = arith.constant 0 : index
      %c0_103 = arith.constant 0 : index
      %185 = vector.load %arg11[%c0_102, %c0_103] : memref<1x32xf32, #tpu.memory_space<vmem>>, vector<1x32xf32>
      %186 = vector.broadcast %185 : vector<1x32xf32> to vector<8x32xf32>
      %187 = arith.addf %184, %186 : vector<8x32xf32>
      %c0_104 = arith.constant 0 : index
      %c1 = arith.constant 1 : index
      %188 = vector.load %arg26[%c0_104, %c1] : memref<1x5xf32, #tpu.memory_space<vmem>>, vector<1x1xf32>
      %cst_105 = arith.constant 0.000000e+00 : f32
      %189 = vector.broadcast %cst_105 : f32 to vector<8x32xf32>
      %190 = arith.cmpf ogt, %187, %189 : vector<8x32xf32>
      %191 = vector.broadcast %188 : vector<1x1xf32> to vector<8x32xf32>
      %192 = arith.mulf %191, %187 : vector<8x32xf32>
      %193 = arith.select %190, %187, %192 : vector<8x32xi1>, vector<8x32xf32>
      %194 = arith.addf %193, %161 : vector<8x32xf32>
      %c0_106 = arith.constant 0 : index
      %c0_107 = arith.constant 0 : index
      %195 = vector.load %arg37[%c0_106, %c0_107] : memref<8x32xf32, #tpu.memory_space<vmem>>, vector<8x32xf32>
      tpu.vector_store %arg37[%c0_106, %c0_107], %194 {strides = array<i32>} : memref<8x32xf32, #tpu.memory_space<vmem>>, vector<8x32xf32>,
      %c0_108 = arith.constant 0 : index
      %c0_109 = arith.constant 0 : index
      %196 = vector.load %arg5[%c0_108, %c0_109] : memref<128x1xf32, #tpu.memory_space<vmem>>, vector<128x1xf32>
      %c0_110 = arith.constant 0 : index
      %c0_111 = arith.constant 0 : index
      %197 = vector.load %arg16[%c0_110, %c0_111] : memref<1x32xbf16, #tpu.memory_space<vmem>>, vector<1x32xbf16>
      %198 = arith.extf %197 : vector<1x32xbf16> to vector<1x32xf32>
      %199 = vector.broadcast %196 : vector<128x1xf32> to vector<128x32xf32>
      %200 = vector.broadcast %198 : vector<1x32xf32> to vector<128x32xf32>
      %201 = arith.mulf %199, %200 : vector<128x32xf32>
      %c0_112 = arith.constant 0 : index
      %c0_113 = arith.constant 0 : index
      %202 = vector.load %arg17[%c0_112, %c0_113] : memref<1x32xf32, #tpu.memory_space<vmem>>, vector<1x32xf32>
      %203 = vector.broadcast %202 : vector<1x32xf32> to vector<128x32xf32>
      %204 = arith.addf %201, %203 : vector<128x32xf32>
      %c0_114 = arith.constant 0 : index
      %c3 = arith.constant 3 : index
      %205 = vector.load %arg26[%c0_114, %c3] : memref<1x5xf32, #tpu.memory_space<vmem>>, vector<1x1xf32>
      %cst_115 = arith.constant 0.000000e+00 : f32
      %206 = vector.broadcast %cst_115 : f32 to vector<128x32xf32>
      %207 = arith.cmpf ogt, %204, %206 : vector<128x32xf32>
      %208 = vector.broadcast %205 : vector<1x1xf32> to vector<128x32xf32>
      %209 = arith.mulf %208, %204 : vector<128x32xf32>
      %210 = arith.select %207, %204, %209 : vector<128x32xi1>, vector<128x32xf32>
      %211 = arith.truncf %210 : vector<128x32xf32> to vector<128x32xbf16>
      %c0_116 = arith.constant 0 : index
      %c0_117 = arith.constant 0 : index
      %212 = vector.load %arg18[%c0_116, %c0_117] : memref<32x8xbf16, #tpu.memory_space<vmem>>, vector<32x8xbf16>
      %cst_118 = arith.constant dense<0.000000e+00> : vector<128x8xf32>
      %213 = tpu.matmul %211, %212, %cst_118 {dimension_numbers = #tpu.dot_dimension_numbers<[1], [0], [0], [1], [0, 0, 1, 1], [], []>} : vector<128x32xbf16>, vector<32x8xbf16>, vector<128x8xf32> -> vector<128x8xf32>
      %c0_119 = arith.constant 0 : index
      %c0_120 = arith.constant 0 : index
      %214 = vector.load %arg19[%c0_119, %c0_120] : memref<1x8xf32, #tpu.memory_space<vmem>>, vector<1x8xf32>
      %215 = vector.broadcast %214 : vector<1x8xf32> to vector<128x8xf32>
      %216 = arith.addf %213, %215 : vector<128x8xf32>
      %217 = arith.truncf %216 : vector<128x8xf32> to vector<128x8xbf16>
      %c0_121 = arith.constant 0 : index
      %c0_122 = arith.constant 0 : index
      %218 = vector.load %arg38[%c0_121, %c0_122] : memref<128x8xbf16, #tpu.memory_space<vmem>>, vector<128x8xbf16>
      tpu.vector_store %arg38[%c0_121, %c0_122], %217 {strides = array<i32>} : memref<128x8xbf16, #tpu.memory_space<vmem>>, vector<128x8xbf16>,
    } else {
    }
    %c0 = arith.constant 0 : index
    %c0_1 = arith.constant 0 : index
    %3 = vector.load %arg37[%c0, %c0_1] : memref<8x32xf32, #tpu.memory_space<vmem>>, vector<8x32xf32>
    %cst = arith.constant dense<0.000000e+00> : vector<8xf32>
    %4 = vector.multi_reduction <add>, %3, %cst [1] : vector<8x32xf32> to vector<8xf32>
    %5 = vector.shape_cast %4 : vector<8xf32> to vector<8x1xf32>
    %cst_2 = arith.constant 3.200000e+01 : f32
    %6 = vector.broadcast %cst_2 : f32 to vector<8x1xf32>
    %7 = arith.divf %5, %6 : vector<8x1xf32>
    %8 = vector.broadcast %7 : vector<8x1xf32> to vector<8x32xf32>
    %9 = arith.subf %3, %8 : vector<8x32xf32>
    %10 = arith.mulf %9, %9 : vector<8x32xf32>
    %cst_3 = arith.constant dense<0.000000e+00> : vector<8xf32>
    %11 = vector.multi_reduction <add>, %10, %cst_3 [1] : vector<8x32xf32> to vector<8xf32>
    %12 = vector.shape_cast %11 : vector<8xf32> to vector<8x1xf32>
    %cst_4 = arith.constant 3.200000e+01 : f32
    %13 = vector.broadcast %cst_4 : f32 to vector<8x1xf32>
    %14 = arith.divf %12, %13 : vector<8x1xf32>
    %15 = vector.broadcast %7 : vector<8x1xf32> to vector<8x32xf32>
    %16 = arith.subf %3, %15 : vector<8x32xf32>
    %cst_5 = arith.constant 9.99999974E-6 : f32
    %17 = vector.broadcast %cst_5 : f32 to vector<8x1xf32>
    %18 = arith.addf %14, %17 : vector<8x1xf32>
    %19 = math.rsqrt %18 : vector<8x1xf32>
    %20 = vector.broadcast %19 : vector<8x1xf32> to vector<8x32xf32>
    %21 = arith.mulf %16, %20 : vector<8x32xf32>
    %c0_6 = arith.constant 0 : index
    %c0_7 = arith.constant 0 : index
    %22 = vector.load %arg24[%c0_6, %c0_7] : memref<1x32xf32, #tpu.memory_space<vmem>>, vector<1x32xf32>
    %23 = vector.broadcast %22 : vector<1x32xf32> to vector<8x32xf32>
    %24 = arith.mulf %21, %23 : vector<8x32xf32>
    %c0_8 = arith.constant 0 : index
    %c0_9 = arith.constant 0 : index
    %25 = vector.load %arg25[%c0_8, %c0_9] : memref<1x32xf32, #tpu.memory_space<vmem>>, vector<1x32xf32>
    %26 = vector.broadcast %25 : vector<1x32xf32> to vector<8x32xf32>
    %27 = arith.addf %24, %26 : vector<8x32xf32>
    %28 = arith.truncf %27 : vector<8x32xf32> to vector<8x32xbf16>
    %29 = vector.shape_cast %28 : vector<8x32xbf16> to vector<1x8x32xbf16>
    %30 = vector.shape_cast %29 : vector<1x8x32xbf16> to vector<1x8x32xbf16>
    %31 = vector.broadcast %30 : vector<1x8x32xbf16> to vector<12x8x32xbf16>
    %c0_10 = arith.constant 0 : index
    %c0_11 = arith.constant 0 : index
    %c0_12 = arith.constant 0 : index
    %c0_13 = arith.constant 0 : index
    %32 = vector.load %arg27[%c0_10, %c0_11, %c0_12, %c0_13] : memref<1x12x32x8xbf16, #tpu.memory_space<vmem>>, vector<1x12x32x8xbf16>
    %33 = vector.shape_cast %32 : vector<1x12x32x8xbf16> to vector<12x32x8xbf16>
    %cst_14 = arith.constant dense<0.000000e+00> : vector<12x8x8xf32>
    %34 = tpu.matmul %31, %33, %cst_14 {dimension_numbers = #tpu.dot_dimension_numbers<[2], [1], [1], [2], [0, 0, 0, 1, 1, 2], [0], [0]>} : vector<12x8x32xbf16>, vector<12x32x8xbf16>, vector<12x8x8xf32> -> vector<12x8x8xf32>
    %c0_15 = arith.constant 0 : index
    %c0_16 = arith.constant 0 : index
    %c0_17 = arith.constant 0 : index
    %c0_18 = arith.constant 0 : index
    %35 = vector.load %arg28[%c0_15, %c0_16, %c0_17, %c0_18] : memref<1x12x1x8xf32, #tpu.memory_space<vmem>>, vector<1x12x1x8xf32>
    %36 = vector.shape_cast %35 : vector<1x12x1x8xf32> to vector<12x1x8xf32>
    %37 = vector.broadcast %36 : vector<12x1x8xf32> to vector<12x8x8xf32>
    %38 = arith.addf %34, %37 : vector<12x8x8xf32>
    %39 = vector.extract_strided_slice %38 {offsets = [0, 0, 0], sizes = [4, 8, 8], strides = [1, 1, 1]} : vector<12x8x8xf32> to vector<4x8x8xf32>
    %40 = arith.truncf %39 : vector<4x8x8xf32> to vector<4x8x8xbf16>
    %41 = vector.extract_strided_slice %38 {offsets = [4, 0, 0], sizes = [4, 8, 8], strides = [1, 1, 1]} : vector<12x8x8xf32> to vector<4x8x8xf32>
    %42 = arith.truncf %41 : vector<4x8x8xf32> to vector<4x8x8xbf16>
    %43 = vector.extract_strided_slice %38 {offsets = [8, 0, 0], sizes = [4, 8, 8], strides = [1, 1, 1]} : vector<12x8x8xf32> to vector<4x8x8xf32>
    %44 = arith.truncf %43 : vector<4x8x8xf32> to vector<4x8x8xbf16>
    %cst_19 = arith.constant dense<0.000000e+00> : vector<4x8x8xf32>
    %45 = tpu.matmul %40, %42, %cst_19 {dimension_numbers = #tpu.dot_dimension_numbers<[2], [2], [1], [1], [0, 0, 0, 1, 1, 1], [0], [0]>} : vector<4x8x8xbf16>, vector<4x8x8xbf16>, vector<4x8x8xf32> -> vector<4x8x8xf32>
    %46 = vector.shape_cast %40 : vector<4x8x8xbf16> to vector<32x8xbf16>
    %c0_20 = arith.constant 0 : index
    %c0_21 = arith.constant 0 : index
    %47 = vector.load %arg38[%c0_20, %c0_21] : memref<128x8xbf16, #tpu.memory_space<vmem>>, vector<128x8xbf16>
    %cst_22 = arith.constant dense<0.000000e+00> : vector<32x128xf32>
    %48 = tpu.matmul %46, %47, %cst_22 {dimension_numbers = #tpu.dot_dimension_numbers<[1], [1], [0], [0], [0, 0, 1, 0], [], []>} : vector<32x8xbf16>, vector<128x8xbf16>, vector<32x128xf32> -> vector<32x128xf32>
    %49 = vector.shape_cast %48 : vector<32x128xf32> to vector<4x8x128xf32>
    %c121_i32 = arith.constant 121 : i32
    %50 = tpu.dynamic_rotate %49 by %c121_i32 dim 2 {stride = 1 : si32, stride_dimension = 1 : si32} : vector<4x8x128xf32>, i32 -> vector<4x8x128xf32>
    %51 = vector.extract_strided_slice %50 {offsets = [0, 0, 0], sizes = [4, 8, 8], strides = [1, 1, 1]} : vector<4x8x128xf32> to vector<4x8x8xf32>
    %52 = arith.addf %45, %51 : vector<4x8x8xf32>
    %cst_23 = arith.constant 0.353553385 : f32
    %53 = vector.broadcast %cst_23 : f32 to vector<4x8x8xf32>
    %54 = arith.mulf %52, %53 : vector<4x8x8xf32>
    %c0_24 = arith.constant 0 : index
    %c0_25 = arith.constant 0 : index
    %c0_26 = arith.constant 0 : index
    %55 = vector.load %arg6[%c0_24, %c0_25, %c0_26] : memref<1x1x8xf32, #tpu.memory_space<vmem>>, vector<1x1x8xf32>
    %56 = vector.shape_cast %55 : vector<1x1x8xf32> to vector<1x8xf32>
    %57 = vector.shape_cast %56 : vector<1x8xf32> to vector<1x1x8xf32>
    %58 = vector.broadcast %57 : vector<1x1x8xf32> to vector<4x8x8xf32>
    %59 = arith.addf %54, %58 : vector<4x8x8xf32>
    %cst_27 = arith.constant dense<0xFF800000> : vector<4x8xf32>
    %60 = vector.multi_reduction <maximumf>, %59, %cst_27 [2] : vector<4x8x8xf32> to vector<4x8xf32>
    %61 = vector.shape_cast %60 : vector<4x8xf32> to vector<4x8x1xf32>
    %62 = vector.broadcast %61 : vector<4x8x1xf32> to vector<4x8x8xf32>
    %63 = arith.subf %59, %62 : vector<4x8x8xf32>
    %64 = math.exp %63 : vector<4x8x8xf32>
    %cst_28 = arith.constant dense<0.000000e+00> : vector<4x8xf32>
    %65 = vector.multi_reduction <add>, %64, %cst_28 [2] : vector<4x8x8xf32> to vector<4x8xf32>
    %66 = vector.shape_cast %65 : vector<4x8xf32> to vector<4x8x1xf32>
    %67 = tpu.reciprocal %66 {approx = true} : vector<4x8x1xf32> -> vector<4x8x1xf32>
    %68 = vector.broadcast %67 : vector<4x8x1xf32> to vector<4x8x8xf32>
    %69 = arith.mulf %64, %68 : vector<4x8x8xf32>
    %70 = arith.truncf %69 : vector<4x8x8xf32> to vector<4x8x8xbf16>
    %cst_29 = arith.constant dense<0.000000e+00> : vector<4x8x8xf32>
    %71 = tpu.matmul %70, %44, %cst_29 {dimension_numbers = #tpu.dot_dimension_numbers<[2], [1], [1], [2], [0, 0, 0, 1, 1, 2], [0], [0]>} : vector<4x8x8xbf16>, vector<4x8x8xbf16>, vector<4x8x8xf32> -> vector<4x8x8xf32>
    %72 = vector.extract_strided_slice %71 {offsets = [0, 0, 0], sizes = [1, 8, 8], strides = [1, 1, 1]} : vector<4x8x8xf32> to vector<1x8x8xf32>
    %73 = vector.shape_cast %72 : vector<1x8x8xf32> to vector<8x8xf32>
    %74 = vector.extract_strided_slice %71 {offsets = [1, 0, 0], sizes = [1, 8, 8], strides = [1, 1, 1]} : vector<4x8x8xf32> to vector<1x8x8xf32>
    %75 = vector.shape_cast %74 : vector<1x8x8xf32> to vector<8x8xf32>
    %76 = vector.extract_strided_slice %71 {offsets = [2, 0, 0], sizes = [1, 8, 8], strides = [1, 1, 1]} : vector<4x8x8xf32> to vector<1x8x8xf32>
    %77 = vector.shape_cast %76 : vector<1x8x8xf32> to vector<8x8xf32>
    %78 = vector.extract_strided_slice %71 {offsets = [3, 0, 0], sizes = [1, 8, 8], strides = [1, 1, 1]} : vector<4x8x8xf32> to vector<1x8x8xf32>
    %79 = vector.shape_cast %78 : vector<1x8x8xf32> to vector<8x8xf32>
    %80 = tpu.concatenate %73, %75, %77, %79 in 1 : vector<8x8xf32>, vector<8x8xf32>, vector<8x8xf32>, vector<8x8xf32> -> vector<8x32xf32>
    %81 = arith.truncf %80 : vector<8x32xf32> to vector<8x32xbf16>
    %c0_30 = arith.constant 0 : index
    %c0_31 = arith.constant 0 : index
    %c0_32 = arith.constant 0 : index
    %82 = vector.load %arg29[%c0_30, %c0_31, %c0_32] : memref<1x32x32xbf16, #tpu.memory_space<vmem>>, vector<1x32x32xbf16>
    %83 = vector.shape_cast %82 : vector<1x32x32xbf16> to vector<32x32xbf16>
    %cst_33 = arith.constant dense<0.000000e+00> : vector<8x32xf32>
    %84 = tpu.matmul %81, %83, %cst_33 {dimension_numbers = #tpu.dot_dimension_numbers<[1], [0], [0], [1], [0, 0, 1, 1], [], []>} : vector<8x32xbf16>, vector<32x32xbf16>, vector<8x32xf32> -> vector<8x32xf32>
    %c0_34 = arith.constant 0 : index
    %c0_35 = arith.constant 0 : index
    %c0_36 = arith.constant 0 : index
    %85 = vector.load %arg30[%c0_34, %c0_35, %c0_36] : memref<1x1x32xf32, #tpu.memory_space<vmem>>, vector<1x1x32xf32>
    %86 = vector.shape_cast %85 : vector<1x1x32xf32> to vector<1x32xf32>
    %87 = vector.broadcast %86 : vector<1x32xf32> to vector<8x32xf32>
    %88 = arith.addf %84, %87 : vector<8x32xf32>
    %89 = arith.addf %3, %88 : vector<8x32xf32>
    %cst_37 = arith.constant dense<0.000000e+00> : vector<8xf32>
    %90 = vector.multi_reduction <add>, %89, %cst_37 [1] : vector<8x32xf32> to vector<8xf32>
    %91 = vector.shape_cast %90 : vector<8xf32> to vector<8x1xf32>
    %cst_38 = arith.constant 3.200000e+01 : f32
    %92 = vector.broadcast %cst_38 : f32 to vector<8x1xf32>
    %93 = arith.divf %91, %92 : vector<8x1xf32>
    %94 = vector.broadcast %93 : vector<8x1xf32> to vector<8x32xf32>
    %95 = arith.subf %89, %94 : vector<8x32xf32>
    %96 = arith.mulf %95, %95 : vector<8x32xf32>
    %cst_39 = arith.constant dense<0.000000e+00> : vector<8xf32>
    %97 = vector.multi_reduction <add>, %96, %cst_39 [1] : vector<8x32xf32> to vector<8xf32>
    %98 = vector.shape_cast %97 : vector<8xf32> to vector<8x1xf32>
    %cst_40 = arith.constant 3.200000e+01 : f32
    %99 = vector.broadcast %cst_40 : f32 to vector<8x1xf32>
    %100 = arith.divf %98, %99 : vector<8x1xf32>
    %101 = vector.broadcast %93 : vector<8x1xf32> to vector<8x32xf32>
    %102 = arith.subf %89, %101 : vector<8x32xf32>
    %cst_41 = arith.constant 9.99999974E-6 : f32
    %103 = vector.broadcast %cst_41 : f32 to vector<8x1xf32>
    %104 = arith.addf %100, %103 : vector<8x1xf32>
    %105 = math.rsqrt %104 : vector<8x1xf32>
    %106 = vector.broadcast %105 : vector<8x1xf32> to vector<8x32xf32>
    %107 = arith.mulf %102, %106 : vector<8x32xf32>
    %c0_42 = arith.constant 0 : index
    %c0_43 = arith.constant 0 : index
    %108 = vector.load %arg24[%c0_42, %c0_43] : memref<1x32xf32, #tpu.memory_space<vmem>>, vector<1x32xf32>
    %109 = vector.broadcast %108 : vector<1x32xf32> to vector<8x32xf32>
    %110 = arith.mulf %107, %109 : vector<8x32xf32>
    %c0_44 = arith.constant 0 : index
    %c0_45 = arith.constant 0 : index
    %111 = vector.load %arg25[%c0_44, %c0_45] : memref<1x32xf32, #tpu.memory_space<vmem>>, vector<1x32xf32>
    %112 = vector.broadcast %111 : vector<1x32xf32> to vector<8x32xf32>
    %113 = arith.addf %110, %112 : vector<8x32xf32>
    %114 = arith.truncf %113 : vector<8x32xf32> to vector<8x32xbf16>
    %c0_46 = arith.constant 0 : index
    %c0_47 = arith.constant 0 : index
    %c0_48 = arith.constant 0 : index
    %115 = vector.load %arg31[%c0_46, %c0_47, %c0_48] : memref<1x32x64xbf16, #tpu.memory_space<vmem>>, vector<1x32x64xbf16>
    %116 = vector.shape_cast %115 : vector<1x32x64xbf16> to vector<32x64xbf16>
    %cst_49 = arith.constant dense<0.000000e+00> : vector<8x64xf32>
    %117 = tpu.matmul %114, %116, %cst_49 {dimension_numbers = #tpu.dot_dimension_numbers<[1], [0], [0], [1], [0, 0, 1, 1], [], []>} : vector<8x32xbf16>, vector<32x64xbf16>, vector<8x64xf32> -> vector<8x64xf32>
    %c0_50 = arith.constant 0 : index
    %c0_51 = arith.constant 0 : index
    %c0_52 = arith.constant 0 : index
    %118 = vector.load %arg32[%c0_50, %c0_51, %c0_52] : memref<1x1x64xf32, #tpu.memory_space<vmem>>, vector<1x1x64xf32>
    %119 = vector.shape_cast %118 : vector<1x1x64xf32> to vector<1x64xf32>
    %120 = vector.broadcast %119 : vector<1x64xf32> to vector<8x64xf32>
    %121 = arith.addf %117, %120 : vector<8x64xf32>
    %c0_53 = arith.constant 0 : index
    %c0_54 = arith.constant 0 : index
    %c0_55 = arith.constant 0 : index
    %122 = vector.load %arg35[%c0_53, %c0_54, %c0_55] : memref<1x1x1xf32, #tpu.memory_space<vmem>>, vector<1x1x1xf32>
    %123 = vector.shape_cast %122 : vector<1x1x1xf32> to vector<1x1xf32>
    %cst_56 = arith.constant 0.000000e+00 : f32
    %124 = vector.broadcast %cst_56 : f32 to vector<8x64xf32>
    %125 = arith.cmpf ogt, %121, %124 : vector<8x64xf32>
    %126 = vector.broadcast %123 : vector<1x1xf32> to vector<8x64xf32>
    %127 = arith.mulf %126, %121 : vector<8x64xf32>
    %128 = arith.select %125, %121, %127 : vector<8x64xi1>, vector<8x64xf32>
    %129 = arith.truncf %128 : vector<8x64xf32> to vector<8x64xbf16>
    %c0_57 = arith.constant 0 : index
    %c0_58 = arith.constant 0 : index
    %c0_59 = arith.constant 0 : index
    %130 = vector.load %arg33[%c0_57, %c0_58, %c0_59] : memref<1x64x32xbf16, #tpu.memory_space<vmem>>, vector<1x64x32xbf16>
    %131 = vector.shape_cast %130 : vector<1x64x32xbf16> to vector<64x32xbf16>
    %cst_60 = arith.constant dense<0.000000e+00> : vector<8x32xf32>
    %132 = tpu.matmul %129, %131, %cst_60 {dimension_numbers = #tpu.dot_dimension_numbers<[1], [0], [0], [1], [0, 0, 1, 1], [], []>} : vector<8x64xbf16>, vector<64x32xbf16>, vector<8x32xf32> -> vector<8x32xf32>
    %c0_61 = arith.constant 0 : index
    %c0_62 = arith.constant 0 : index
    %c0_63 = arith.constant 0 : index
    %133 = vector.load %arg34[%c0_61, %c0_62, %c0_63] : memref<1x1x32xf32, #tpu.memory_space<vmem>>, vector<1x1x32xf32>
    %134 = vector.shape_cast %133 : vector<1x1x32xf32> to vector<1x32xf32>
    %135 = vector.broadcast %134 : vector<1x32xf32> to vector<8x32xf32>
    %136 = arith.addf %132, %135 : vector<8x32xf32>
    %137 = arith.addf %89, %136 : vector<8x32xf32>
    %c0_64 = arith.constant 0 : index
    %c0_65 = arith.constant 0 : index
    %138 = vector.load %arg37[%c0_64, %c0_65] : memref<8x32xf32, #tpu.memory_space<vmem>>, vector<8x32xf32>
    tpu.vector_store %arg37[%c0_64, %c0_65], %137 {strides = array<i32>} : memref<8x32xf32, #tpu.memory_space<vmem>>, vector<8x32xf32>,
    %c1_i32 = arith.constant 1 : i32
    %139 = arith.cmpi eq, %arg1, %c1_i32 : i32
    %140 = arith.extui %139 : i1 to i32
    %c0_i32_66 = arith.constant 0 : i32
    %141 = arith.cmpi ne, %140, %c0_i32_66 : i32
    scf.if %141 {
      %142 = arith.truncf %137 : vector<8x32xf32> to vector<8x32xbf16>
      %c0_67 = arith.constant 0 : index
      %c0_68 = arith.constant 0 : index
      %143 = vector.load %arg20[%c0_67, %c0_68] : memref<32x32xbf16, #tpu.memory_space<vmem>>, vector<32x32xbf16>
      %cst_69 = arith.constant dense<0.000000e+00> : vector<8x32xf32>
      %144 = tpu.matmul %142, %143, %cst_69 {dimension_numbers = #tpu.dot_dimension_numbers<[1], [0], [0], [1], [0, 0, 1, 1], [], []>} : vector<8x32xbf16>, vector<32x32xbf16>, vector<8x32xf32> -> vector<8x32xf32>
      %c0_70 = arith.constant 0 : index
      %c0_71 = arith.constant 0 : index
      %145 = vector.load %arg21[%c0_70, %c0_71] : memref<1x32xf32, #tpu.memory_space<vmem>>, vector<1x32xf32>
      %146 = vector.broadcast %145 : vector<1x32xf32> to vector<8x32xf32>
      %147 = arith.addf %144, %146 : vector<8x32xf32>
      %c0_72 = arith.constant 0 : index
      %c4 = arith.constant 4 : index
      %148 = vector.load %arg26[%c0_72, %c4] : memref<1x5xf32, #tpu.memory_space<vmem>>, vector<1x1xf32>
      %cst_73 = arith.constant 0.000000e+00 : f32
      %149 = vector.broadcast %cst_73 : f32 to vector<8x32xf32>
      %150 = arith.cmpf ogt, %147, %149 : vector<8x32xf32>
      %151 = vector.broadcast %148 : vector<1x1xf32> to vector<8x32xf32>
      %152 = arith.mulf %151, %147 : vector<8x32xf32>
      %153 = arith.select %150, %147, %152 : vector<8x32xi1>, vector<8x32xf32>
      %154 = arith.truncf %153 : vector<8x32xf32> to vector<8x32xbf16>
      %c0_74 = arith.constant 0 : index
      %c0_75 = arith.constant 0 : index
      %155 = vector.load %arg22[%c0_74, %c0_75] : memref<32x8xbf16, #tpu.memory_space<vmem>>, vector<32x8xbf16>
      %cst_76 = arith.constant dense<0.000000e+00> : vector<8x8xf32>
      %156 = tpu.matmul %154, %155, %cst_76 {dimension_numbers = #tpu.dot_dimension_numbers<[1], [0], [0], [1], [0, 0, 1, 1], [], []>} : vector<8x32xbf16>, vector<32x8xbf16>, vector<8x8xf32> -> vector<8x8xf32>
      %c0_77 = arith.constant 0 : index
      %c0_78 = arith.constant 0 : index
      %157 = vector.load %arg23[%c0_77, %c0_78] : memref<1x8xf32, #tpu.memory_space<vmem>>, vector<1x8xf32>
      %158 = vector.broadcast %157 : vector<1x8xf32> to vector<8x8xf32>
      %159 = arith.addf %156, %158 : vector<8x8xf32>
      %c0_79 = arith.constant 0 : index
      %c0_80 = arith.constant 0 : index
      %c0_81 = arith.constant 0 : index
      %160 = vector.load %arg36[%c0_79, %c0_80, %c0_81] : memref<1x8x8xf32, #tpu.memory_space<vmem>>, vector<1x8x8xf32>
      %161 = vector.shape_cast %160 : vector<1x8x8xf32> to vector<8x8xf32>
      %162 = vector.shape_cast %159 : vector<8x8xf32> to vector<1x8x8xf32>
      tpu.vector_store %arg36[%c0_79, %c0_80, %c0_81], %162 {strides = array<i32>} : memref<1x8x8xf32, #tpu.memory_space<vmem>>, vector<1x8x8xf32>,
    } else {
    }
    return
  }
  func.func @transform_0(%arg0: i32, %arg1: i32) -> (i32, i32, i32) {
    %c0_i32 = arith.constant 0 : i32
    %c0_i32_0 = arith.constant 0 : i32
    %c0_i32_1 = arith.constant 0 : i32
    return %arg0, %c0_i32, %c0_i32_0 : i32, i32, i32
  }
  func.func @transform_1(%arg0: i32, %arg1: i32) -> (i32, i32, i32) {
    %c0_i32 = arith.constant 0 : i32
    %c0_i32_0 = arith.constant 0 : i32
    %c0_i32_1 = arith.constant 0 : i32
    return %arg0, %c0_i32, %c0_i32_0 : i32, i32, i32
  }
  func.func @transform_2(%arg0: i32, %arg1: i32) -> (i32, i32, i32) {
    %c0_i32 = arith.constant 0 : i32
    %c0_i32_0 = arith.constant 0 : i32
    %c0_i32_1 = arith.constant 0 : i32
    return %arg0, %c0_i32, %c0_i32_0 : i32, i32, i32
  }
  func.func @transform_3(%arg0: i32, %arg1: i32) -> (i32, i32) {
    %c0_i32 = arith.constant 0 : i32
    %c0_i32_0 = arith.constant 0 : i32
    %c0_i32_1 = arith.constant 0 : i32
    return %c0_i32, %c0_i32_0 : i32, i32
  }
  func.func @transform_4(%arg0: i32, %arg1: i32) -> (i32, i32, i32) {
    %c0_i32 = arith.constant 0 : i32
    %c0_i32_0 = arith.constant 0 : i32
    %c0_i32_1 = arith.constant 0 : i32
    return %arg0, %c0_i32, %c0_i32_0 : i32, i32, i32
  }
  func.func @transform_5(%arg0: i32, %arg1: i32) -> (i32, i32) {
    %c0_i32 = arith.constant 0 : i32
    %c0_i32_0 = arith.constant 0 : i32
    %c0_i32_1 = arith.constant 0 : i32
    return %c0_i32, %c0_i32_0 : i32, i32
  }
  func.func @transform_6(%arg0: i32, %arg1: i32) -> (i32, i32) {
    %c0_i32 = arith.constant 0 : i32
    %c0_i32_0 = arith.constant 0 : i32
    %c0_i32_1 = arith.constant 0 : i32
    return %c0_i32, %c0_i32_0 : i32, i32
  }
  func.func @transform_7(%arg0: i32, %arg1: i32) -> (i32, i32) {
    %c0_i32 = arith.constant 0 : i32
    %c0_i32_0 = arith.constant 0 : i32
    %c0_i32_1 = arith.constant 0 : i32
    return %c0_i32, %c0_i32_0 : i32, i32
  }
  func.func @transform_8(%arg0: i32, %arg1: i32) -> (i32, i32) {
    %c0_i32 = arith.constant 0 : i32
    %c0_i32_0 = arith.constant 0 : i32
    %c0_i32_1 = arith.constant 0 : i32
    return %c0_i32, %c0_i32_0 : i32, i32
  }
  func.func @transform_9(%arg0: i32, %arg1: i32) -> (i32, i32) {
    %c0_i32 = arith.constant 0 : i32
    %c0_i32_0 = arith.constant 0 : i32
    %c0_i32_1 = arith.constant 0 : i32
    return %c0_i32, %c0_i32_0 : i32, i32
  }
  func.func @transform_10(%arg0: i32, %arg1: i32) -> (i32, i32) {
    %c0_i32 = arith.constant 0 : i32
    %c0_i32_0 = arith.constant 0 : i32
    %c0_i32_1 = arith.constant 0 : i32
    return %c0_i32, %c0_i32_0 : i32, i32
  }
  func.func @transform_11(%arg0: i32, %arg1: i32) -> (i32, i32) {
    %c0_i32 = arith.constant 0 : i32
    %c0_i32_0 = arith.constant 0 : i32
    %c0_i32_1 = arith.constant 0 : i32
    return %c0_i32, %c0_i32_0 : i32, i32
  }
  func.func @transform_12(%arg0: i32, %arg1: i32) -> (i32, i32) {
    %c0_i32 = arith.constant 0 : i32
    %c0_i32_0 = arith.constant 0 : i32
    %c0_i32_1 = arith.constant 0 : i32
    return %c0_i32, %c0_i32_0 : i32, i32
  }
  func.func @transform_13(%arg0: i32, %arg1: i32) -> (i32, i32) {
    %c0_i32 = arith.constant 0 : i32
    %c0_i32_0 = arith.constant 0 : i32
    %c0_i32_1 = arith.constant 0 : i32
    return %c0_i32, %c0_i32_0 : i32, i32
  }
  func.func @transform_14(%arg0: i32, %arg1: i32) -> (i32, i32) {
    %c0_i32 = arith.constant 0 : i32
    %c0_i32_0 = arith.constant 0 : i32
    %c0_i32_1 = arith.constant 0 : i32
    return %c0_i32, %c0_i32_0 : i32, i32
  }
  func.func @transform_15(%arg0: i32, %arg1: i32) -> (i32, i32) {
    %c0_i32 = arith.constant 0 : i32
    %c0_i32_0 = arith.constant 0 : i32
    %c0_i32_1 = arith.constant 0 : i32
    return %c0_i32, %c0_i32_0 : i32, i32
  }
  func.func @transform_16(%arg0: i32, %arg1: i32) -> (i32, i32) {
    %c0_i32 = arith.constant 0 : i32
    %c0_i32_0 = arith.constant 0 : i32
    %c0_i32_1 = arith.constant 0 : i32
    return %c0_i32, %c0_i32_0 : i32, i32
  }
  func.func @transform_17(%arg0: i32, %arg1: i32) -> (i32, i32) {
    %c0_i32 = arith.constant 0 : i32
    %c0_i32_0 = arith.constant 0 : i32
    %c0_i32_1 = arith.constant 0 : i32
    return %c0_i32, %c0_i32_0 : i32, i32
  }
  func.func @transform_18(%arg0: i32, %arg1: i32) -> (i32, i32) {
    %c0_i32 = arith.constant 0 : i32
    %c0_i32_0 = arith.constant 0 : i32
    %c0_i32_1 = arith.constant 0 : i32
    return %c0_i32, %c0_i32_0 : i32, i32
  }
  func.func @transform_19(%arg0: i32, %arg1: i32) -> (i32, i32) {
    %c0_i32 = arith.constant 0 : i32
    %c0_i32_0 = arith.constant 0 : i32
    %c0_i32_1 = arith.constant 0 : i32
    return %c0_i32, %c0_i32_0 : i32, i32
  }
  func.func @transform_20(%arg0: i32, %arg1: i32) -> (i32, i32) {
    %c0_i32 = arith.constant 0 : i32
    %c0_i32_0 = arith.constant 0 : i32
    %c0_i32_1 = arith.constant 0 : i32
    return %c0_i32, %c0_i32_0 : i32, i32
  }
  func.func @transform_21(%arg0: i32, %arg1: i32) -> (i32, i32) {
    %c0_i32 = arith.constant 0 : i32
    %c0_i32_0 = arith.constant 0 : i32
    %c0_i32_1 = arith.constant 0 : i32
    return %c0_i32, %c0_i32_0 : i32, i32
  }
  func.func @transform_22(%arg0: i32, %arg1: i32) -> (i32, i32) {
    %c0_i32 = arith.constant 0 : i32
    %c0_i32_0 = arith.constant 0 : i32
    %c0_i32_1 = arith.constant 0 : i32
    return %c0_i32, %c0_i32_0 : i32, i32
  }
  func.func @transform_23(%arg0: i32, %arg1: i32) -> (i32, i32) {
    %c0_i32 = arith.constant 0 : i32
    %c0_i32_0 = arith.constant 0 : i32
    %c0_i32_1 = arith.constant 0 : i32
    return %c0_i32, %c0_i32_0 : i32, i32
  }
  func.func @transform_24(%arg0: i32, %arg1: i32) -> (i32, i32) {
    %c0_i32 = arith.constant 0 : i32
    %c0_i32_0 = arith.constant 0 : i32
    %c0_i32_1 = arith.constant 0 : i32
    return %c0_i32, %c0_i32_0 : i32, i32
  }
  func.func @transform_25(%arg0: i32, %arg1: i32) -> (i32, i32, i32, i32) {
    %c0_i32 = arith.constant 0 : i32
    %c0_i32_0 = arith.constant 0 : i32
    %c0_i32_1 = arith.constant 0 : i32
    %c0_i32_2 = arith.constant 0 : i32
    return %arg1, %c0_i32, %c0_i32_0, %c0_i32_1 : i32, i32, i32, i32
  }
  func.func @transform_26(%arg0: i32, %arg1: i32) -> (i32, i32, i32, i32) {
    %c0_i32 = arith.constant 0 : i32
    %c0_i32_0 = arith.constant 0 : i32
    %c0_i32_1 = arith.constant 0 : i32
    %c0_i32_2 = arith.constant 0 : i32
    return %arg1, %c0_i32, %c0_i32_0, %c0_i32_1 : i32, i32, i32, i32
  }
  func.func @transform_27(%arg0: i32, %arg1: i32) -> (i32, i32, i32) {
    %c0_i32 = arith.constant 0 : i32
    %c0_i32_0 = arith.constant 0 : i32
    %c0_i32_1 = arith.constant 0 : i32
    return %arg1, %c0_i32, %c0_i32_0 : i32, i32, i32
  }
  func.func @transform_28(%arg0: i32, %arg1: i32) -> (i32, i32, i32) {
    %c0_i32 = arith.constant 0 : i32
    %c0_i32_0 = arith.constant 0 : i32
    %c0_i32_1 = arith.constant 0 : i32
    return %arg1, %c0_i32, %c0_i32_0 : i32, i32, i32
  }
  func.func @transform_29(%arg0: i32, %arg1: i32) -> (i32, i32, i32) {
    %c0_i32 = arith.constant 0 : i32
    %c0_i32_0 = arith.constant 0 : i32
    %c0_i32_1 = arith.constant 0 : i32
    return %arg1, %c0_i32, %c0_i32_0 : i32, i32, i32
  }
  func.func @transform_30(%arg0: i32, %arg1: i32) -> (i32, i32, i32) {
    %c0_i32 = arith.constant 0 : i32
    %c0_i32_0 = arith.constant 0 : i32
    %c0_i32_1 = arith.constant 0 : i32
    return %arg1, %c0_i32, %c0_i32_0 : i32, i32, i32
  }
  func.func @transform_31(%arg0: i32, %arg1: i32) -> (i32, i32, i32) {
    %c0_i32 = arith.constant 0 : i32
    %c0_i32_0 = arith.constant 0 : i32
    %c0_i32_1 = arith.constant 0 : i32
    return %arg1, %c0_i32, %c0_i32_0 : i32, i32, i32
  }
  func.func @transform_32(%arg0: i32, %arg1: i32) -> (i32, i32, i32) {
    %c0_i32 = arith.constant 0 : i32
    %c0_i32_0 = arith.constant 0 : i32
    %c0_i32_1 = arith.constant 0 : i32
    return %arg1, %c0_i32, %c0_i32_0 : i32, i32, i32
  }
  func.func @transform_33(%arg0: i32, %arg1: i32) -> (i32, i32, i32) {
    %c0_i32 = arith.constant 0 : i32
    %c0_i32_0 = arith.constant 0 : i32
    %c0_i32_1 = arith.constant 0 : i32
    return %arg1, %c0_i32, %c0_i32_0 : i32, i32, i32
  }
  func.func @transform_34(%arg0: i32, %arg1: i32) -> (i32, i32, i32) {
    %c0_i32 = arith.constant 0 : i32
    %c0_i32_0 = arith.constant 0 : i32
    %c0_i32_1 = arith.constant 0 : i32
    return %arg0, %c0_i32, %c0_i32_0 : i32, i32, i32
  }
}

</mosaic_0001>

<llo_original>
// kernel: tpu_custom_call.1
$region0: #{tpu_custom_call.1}
  #allocation0 [shape = 'u32[]', space=smem, size = 0x4, offset = 0x4, fixed_abs, tag = 'smem constant byte address 0x4 - core index']
  #allocation1 [shape = 'u32[144,128]{1,0:T(1,128)}', space=vmem, size = 0x12000, scoped, tag = 'internal scratch']
  #allocation2 [shape = 'f32[8,32]{1,0:T(8,128)}', space=vmem, size = 0x1000, scoped, tag = 'scratch operand']
  #allocation3 [shape = 'bf16[128,8]{1,0:T(16,128)(2,1)}', space=vmem, size = 0x8000, scoped, tag = 'scratch operand']
  %s0 = inlined_call_operand.smem [shape: u32[35], index: -1, kind: input, shape index: {}]
  %s1 = sld [smem:[%s0]]
  %s2 = scalar_lea.smem %s0, 1
  %s3 = sld [smem:[%s2]]
  %s4 = scalar_lea.smem %s0, 2
  %s5 = sld [smem:[%s4]]
  %s6 = scalar_lea.smem %s0, 3
  %s7 = sld [smem:[%s6]]
  %s8 = scalar_lea.smem %s0, 4
  %s9 = sld [smem:[%s8]]
  %s10 = scalar_lea.smem %s0, 5
  %s11 = sld [smem:[%s10]]
  %s12 = scalar_lea.smem %s0, 6
  %s13 = sld [smem:[%s12]]
  %s14 = scalar_lea.smem %s0, 7
  %s15 = sld [smem:[%s14]]
  %s16 = scalar_lea.smem %s0, 8
  %s17 = sld [smem:[%s16]]
  %s18 = scalar_lea.smem %s0, 9
  %s19 = sld [smem:[%s18]]
  %s20 = scalar_lea.smem %s0, 10
  %s21 = sld [smem:[%s20]]
  %s22 = scalar_lea.smem %s0, 11
  %s23 = sld [smem:[%s22]]
  %s24 = scalar_lea.smem %s0, 12
  %s25 = sld [smem:[%s24]]
  %s26 = scalar_lea.smem %s0, 13
  %s27 = sld [smem:[%s26]]
  %s28 = scalar_lea.smem %s0, 14
  %s29 = sld [smem:[%s28]]
  %s30 = scalar_lea.smem %s0, 15
  %s31 = sld [smem:[%s30]]
  %s32 = scalar_lea.smem %s0, 16
  %s33 = sld [smem:[%s32]]
  %s34 = scalar_lea.smem %s0, 17
  %s35 = sld [smem:[%s34]]
  %s36 = scalar_lea.smem %s0, 18
  %s37 = sld [smem:[%s36]]
  %s38 = scalar_lea.smem %s0, 19
  %s39 = sld [smem:[%s38]]
  %s40 = scalar_lea.smem %s0, 20
  %s41 = sld [smem:[%s40]]
  %s42 = scalar_lea.smem %s0, 21
  %s43 = sld [smem:[%s42]]
  %s44 = scalar_lea.smem %s0, 22
  %s45 = sld [smem:[%s44]]
  %s46 = scalar_lea.smem %s0, 23
  %s47 = sld [smem:[%s46]]
  %s48 = scalar_lea.smem %s0, 24
  %s49 = sld [smem:[%s48]]
  %s50 = scalar_lea.smem %s0, 25
  %s51 = sld [smem:[%s50]]
  %s52 = scalar_lea.smem %s0, 26
  %s53 = sld [smem:[%s52]]
  %s54 = scalar_lea.smem %s0, 27
  %s55 = sld [smem:[%s54]]
  %s56 = scalar_lea.smem %s0, 28
  %s57 = sld [smem:[%s56]]
  %s58 = scalar_lea.smem %s0, 29
  %s59 = sld [smem:[%s58]]
  %s60 = scalar_lea.smem %s0, 30
  %s61 = sld [smem:[%s60]]
  %s62 = scalar_lea.smem %s0, 31
  %s63 = sld [smem:[%s62]]
  %s64 = scalar_lea.smem %s0, 32
  %s65 = sld [smem:[%s64]]
  %s66 = scalar_lea.smem %s0, 33
  %s67 = sld [smem:[%s66]]
  %s68 = scalar_lea.smem %s0, 34
  %s69 = sld [smem:[%s68]]
  %s70 = sld [smem:[#allocation0]]
  $region177: #{tpu_custom_call.1} parent=0
    _
  %s72 = ssub.s32 1, %s70
  %s73 = scalar_select 0, %s72, %s70
  $region1: #{tpu_custom_call.1} parent=0
    #allocation4 [shape = 'u8[8192]{0}', space=vmem, size = 0x2000, scoped, tag = 'output window, operand 0']
    #allocation5 [shape = 's32[2]{0}', space=sflag, size = 0x8, scoped, tag = 'scoped memory for tpu_custom_call.1']
    %74 = vsyncpa [#allocation5], 0
    %s75 = scalar_lea.sflag [#allocation5], 1
    %76 = vsyncpa %s75, 0
    loop: start=0, step=1, limit=6
    $region2: #{tpu_custom_call.1} parent=1 // loop_pre_header
      _
    $region3: #{tpu_custom_call.1} parent=1 // loop_header
      %s78 = sphi 0, %s82
      %p79 = scmp.ge.s32.totalorder %s78, 6
      %s85 = sphi 0, %s97
      %s86 = sphi 0, %s93
      %s87 = sphi 0, %s85
      %s88 = sphi 0, %s86
      %s89 = sphi 0, %s87
      %s90 = sphi 0, %s88
      %s100 = sphi 0, %s102
      %s103 = sphi 0, %s100
      %s104 = sphi 0, %s103
      %s120 = sphi 0, %s104
      %s126 = sphi 0, %s128
      %s129 = sphi 0, %s126
      %s130 = sphi 0, %s129
      %s146 = sphi 0, %s130
      %s152 = sphi 0, %s154
      %s155 = sphi 0, %s152
      %s156 = sphi 0, %s155
      %s172 = sphi 0, %s156
      %s176 = sphi 0, %s176
      %s178 = sphi 0, %s176
      %s179 = sphi 0, %s178
      %s193 = sphi 0, %s179
      %s199 = sphi 0, %s201
      %s202 = sphi 0, %s199
      %s203 = sphi 0, %s202
      %s219 = sphi 0, %s203
      %s223 = sphi 0, %s223
      %s225 = sphi 0, %s223
      %s226 = sphi 0, %s225
      %s240 = sphi 0, %s226
      %s244 = sphi 0, %s244
      %s246 = sphi 0, %s244
      %s247 = sphi 0, %s246
      %s261 = sphi 0, %s247
      %s265 = sphi 0, %s265
      %s267 = sphi 0, %s265
      %s268 = sphi 0, %s267
      %s282 = sphi 0, %s268
      %s286 = sphi 0, %s286
      %s288 = sphi 0, %s286
      %s289 = sphi 0, %s288
      %s303 = sphi 0, %s289
      %s307 = sphi 0, %s307
      %s309 = sphi 0, %s307
      %s310 = sphi 0, %s309
      %s324 = sphi 0, %s310
      %s328 = sphi 0, %s328
      %s330 = sphi 0, %s328
      %s331 = sphi 0, %s330
      %s345 = sphi 0, %s331
      %s349 = sphi 0, %s349
      %s351 = sphi 0, %s349
      %s352 = sphi 0, %s351
      %s366 = sphi 0, %s352
      %s370 = sphi 0, %s370
      %s372 = sphi 0, %s370
      %s373 = sphi 0, %s372
      %s387 = sphi 0, %s373
      %s391 = sphi 0, %s391
      %s393 = sphi 0, %s391
      %s394 = sphi 0, %s393
      %s408 = sphi 0, %s394
      %s412 = sphi 0, %s412
      %s414 = sphi 0, %s412
      %s415 = sphi 0, %s414
      %s429 = sphi 0, %s415
      %s433 = sphi 0, %s433
      %s435 = sphi 0, %s433
      %s436 = sphi 0, %s435
      %s450 = sphi 0, %s436
      %s454 = sphi 0, %s454
      %s456 = sphi 0, %s454
      %s457 = sphi 0, %s456
      %s471 = sphi 0, %s457
      %s475 = sphi 0, %s475
      %s477 = sphi 0, %s475
      %s478 = sphi 0, %s477
      %s492 = sphi 0, %s478
      %s496 = sphi 0, %s496
      %s498 = sphi 0, %s496
      %s499 = sphi 0, %s498
      %s513 = sphi 0, %s499
      %s517 = sphi 0, %s517
      %s519 = sphi 0, %s517
      %s520 = sphi 0, %s519
      %s534 = sphi 0, %s520
      %s538 = sphi 0, %s538
      %s540 = sphi 0, %s538
      %s541 = sphi 0, %s540
      %s555 = sphi 0, %s541
      %s559 = sphi 0, %s559
      %s561 = sphi 0, %s559
      %s562 = sphi 0, %s561
      %s576 = sphi 0, %s562
      %s580 = sphi 0, %s580
      %s582 = sphi 0, %s580
      %s583 = sphi 0, %s582
      %s597 = sphi 0, %s583
      %s601 = sphi 0, %s601
      %s603 = sphi 0, %s601
      %s604 = sphi 0, %s603
      %s618 = sphi 0, %s604
      %s622 = sphi 0, %s622
      %s624 = sphi 0, %s622
      %s625 = sphi 0, %s624
      %s639 = sphi 0, %s625
      %s645 = sphi 0, %s647
      %s648 = sphi 0, %s645
      %s649 = sphi 0, %s648
      %s665 = sphi 0, %s649
      %s671 = sphi 0, %s673
      %s674 = sphi 0, %s671
      %s675 = sphi 0, %s674
      %s691 = sphi 0, %s675
      %s697 = sphi 0, %s699
      %s700 = sphi 0, %s697
      %s701 = sphi 0, %s700
      %s717 = sphi 0, %s701
      %s723 = sphi 0, %s725
      %s726 = sphi 0, %s723
      %s727 = sphi 0, %s726
      %s743 = sphi 0, %s727
      %s749 = sphi 0, %s751
      %s752 = sphi 0, %s749
      %s753 = sphi 0, %s752
      %s769 = sphi 0, %s753
      %s775 = sphi 0, %s777
      %s778 = sphi 0, %s775
      %s779 = sphi 0, %s778
      %s795 = sphi 0, %s779
      %s801 = sphi 0, %s803
      %s804 = sphi 0, %s801
      %s805 = sphi 0, %s804
      %s821 = sphi 0, %s805
      %s827 = sphi 0, %s829
      %s830 = sphi 0, %s827
      %s831 = sphi 0, %s830
      %s847 = sphi 0, %s831
      %s853 = sphi 0, %s855
      %s856 = sphi 0, %s853
      %s857 = sphi 0, %s856
      %s873 = sphi 0, %s857
      %s879 = sphi 0, %s881
      %s882 = sphi 0, %s879
      %s883 = sphi 0, %s882
      %s899 = sphi 0, %s883
    $region4: #{tpu_custom_call.1} parent=1 // loop_header_branch
      %81 = sbr.rel (%p79) target = $region8
    $region5: #{tpu_custom_call.1} parent=1 // loop_body
      %s83 = ssub.s32 %s78, 1
      %s84 = ssub.s32 %s78, 2
      %s91 = sadd.s32 1, %s86
      %p92 = scmp.ge.s32.totalorder %s91, 2
      %s93 = scalar_select %p92, 0, %s91
      %s94 = sadd.s32 1, %s85
      %s95 = scalar_select %p92, %s94, %s85
      %p96 = scmp.ge.s32.totalorder %s95, 2
      %s97 = scalar_select %p96, 0, %s95
      %s98 = ssub.s32 %s85, %s97
      %p99 = scmp.eq.s32.totalorder %s98, 0
      %s101 = sadd.s32 %s100, 1
      %s102 = scalar_select %p99, %s100, %s101
      %p105 = pneg %p99
      %p106 = scmp.eq.s32.totalorder %s78, 3
      %p107 = por %p105, %p106
      %p108 = scmp.ne.s32.totalorder %s100, %s103
      %p109 = scmp.eq.s32.totalorder %s78, 0
      %p110 = por %p108, %p109
      %p111 = scmp.ne.s32.totalorder %s100, %s103
      %p112 = scmp.eq.s32.totalorder %s83, 3
      %p113 = por %p111, %p112
      %p114 = scmp.ne.s32.totalorder %s103, %s104
      %p115 = scmp.eq.s32.totalorder %s83, 0
      %p116 = por %p114, %p115
      %p117 = scmp.ne.s32.totalorder %s103, %s104
      %p118 = scmp.eq.s32.totalorder %s84, 3
      %p119 = por %p117, %p118
      %p121 = scmp.ne.s32.totalorder %s104, %s120
      %p122 = scmp.eq.s32.totalorder %s84, 0
      %p123 = por %p121, %p122
      %s124 = ssub.s32 %s85, %s97
      %p125 = scmp.eq.s32.totalorder %s124, 0
      %s127 = sadd.s32 %s126, 1
      %s128 = scalar_select %p125, %s126, %s127
      %p131 = pneg %p125
      %p132 = scmp.eq.s32.totalorder %s78, 3
      %p133 = por %p131, %p132
      %p134 = scmp.ne.s32.totalorder %s126, %s129
      %p135 = scmp.eq.s32.totalorder %s78, 0
      %p136 = por %p134, %p135
      %p137 = scmp.ne.s32.totalorder %s126, %s129
      %p138 = scmp.eq.s32.totalorder %s83, 3
      %p139 = por %p137, %p138
      %p140 = scmp.ne.s32.totalorder %s129, %s130
      %p141 = scmp.eq.s32.totalorder %s83, 0
      %p142 = por %p140, %p141
      %p143 = scmp.ne.s32.totalorder %s129, %s130
      %p144 = scmp.eq.s32.totalorder %s84, 3
      %p145 = por %p143, %p144
      %p147 = scmp.ne.s32.totalorder %s130, %s146
      %p148 = scmp.eq.s32.totalorder %s84, 0
      %p149 = por %p147, %p148
      %s150 = ssub.s32 %s85, %s97
      %p151 = scmp.eq.s32.totalorder %s150, 0
      %s153 = sadd.s32 %s152, 1
      %s154 = scalar_select %p151, %s152, %s153
      %p157 = pneg %p151
      %p158 = scmp.eq.s32.totalorder %s78, 3
      %p159 = por %p157, %p158
      %p160 = scmp.ne.s32.totalorder %s152, %s155
      %p161 = scmp.eq.s32.totalorder %s78, 0
      %p162 = por %p160, %p161
      %p163 = scmp.ne.s32.totalorder %s152, %s155
      %p164 = scmp.eq.s32.totalorder %s83, 3
      %p165 = por %p163, %p164
      %p166 = scmp.ne.s32.totalorder %s155, %s156
      %p167 = scmp.eq.s32.totalorder %s83, 0
      %p168 = por %p166, %p167
      %p169 = scmp.ne.s32.totalorder %s155, %s156
      %p170 = scmp.eq.s32.totalorder %s84, 3
      %p171 = por %p169, %p170
      %p173 = scmp.ne.s32.totalorder %s156, %s172
      %p174 = scmp.eq.s32.totalorder %s84, 0
      %p175 = por %p173, %p174
      %s177 = sadd.s32 %s176, 1
      %p180 = scmp.eq.s32.totalorder %s78, 3
      %p181 = scmp.ne.s32.totalorder %s176, %s178
      %p182 = scmp.eq.s32.totalorder %s78, 0
      %p183 = por %p181, %p182
      %p184 = scmp.ne.s32.totalorder %s176, %s178
      %p185 = scmp.eq.s32.totalorder %s83, 3
      %p186 = por %p184, %p185
      %p187 = scmp.ne.s32.totalorder %s178, %s179
      %p188 = scmp.eq.s32.totalorder %s83, 0
      %p189 = por %p187, %p188
      %p190 = scmp.ne.s32.totalorder %s178, %s179
      %p191 = scmp.eq.s32.totalorder %s84, 3
      %p192 = por %p190, %p191
      %p194 = scmp.ne.s32.totalorder %s179, %s193
      %p195 = scmp.eq.s32.totalorder %s84, 0
      %p196 = por %p194, %p195
      %s197 = ssub.s32 %s85, %s97
      %p198 = scmp.eq.s32.totalorder %s197, 0
      %s200 = sadd.s32 %s199, 1
      %s201 = scalar_select %p198, %s199, %s200
      %p204 = pneg %p198
      %p205 = scmp.eq.s32.totalorder %s78, 3
      %p206 = por %p204, %p205
      %p207 = scmp.ne.s32.totalorder %s199, %s202
      %p208 = scmp.eq.s32.totalorder %s78, 0
      %p209 = por %p207, %p208
      %p210 = scmp.ne.s32.totalorder %s199, %s202
      %p211 = scmp.eq.s32.totalorder %s83, 3
      %p212 = por %p210, %p211
      %p213 = scmp.ne.s32.totalorder %s202, %s203
      %p214 = scmp.eq.s32.totalorder %s83, 0
      %p215 = por %p213, %p214
      %p216 = scmp.ne.s32.totalorder %s202, %s203
      %p217 = scmp.eq.s32.totalorder %s84, 3
      %p218 = por %p216, %p217
      %p220 = scmp.ne.s32.totalorder %s203, %s219
      %p221 = scmp.eq.s32.totalorder %s84, 0
      %p222 = por %p220, %p221
      %s224 = sadd.s32 %s223, 1
      %p227 = scmp.eq.s32.totalorder %s78, 3
      %p228 = scmp.ne.s32.totalorder %s223, %s225
      %p229 = scmp.eq.s32.totalorder %s78, 0
      %p230 = por %p228, %p229
      %p231 = scmp.ne.s32.totalorder %s223, %s225
      %p232 = scmp.eq.s32.totalorder %s83, 3
      %p233 = por %p231, %p232
      %p234 = scmp.ne.s32.totalorder %s225, %s226
      %p235 = scmp.eq.s32.totalorder %s83, 0
      %p236 = por %p234, %p235
      %p237 = scmp.ne.s32.totalorder %s225, %s226
      %p238 = scmp.eq.s32.totalorder %s84, 3
      %p239 = por %p237, %p238
      %p241 = scmp.ne.s32.totalorder %s226, %s240
      %p242 = scmp.eq.s32.totalorder %s84, 0
      %p243 = por %p241, %p242
      %s245 = sadd.s32 %s244, 1
      %p248 = scmp.eq.s32.totalorder %s78, 3
      %p249 = scmp.ne.s32.totalorder %s244, %s246
      %p250 = scmp.eq.s32.totalorder %s78, 0
      %p251 = por %p249, %p250
      %p252 = scmp.ne.s32.totalorder %s244, %s246
      %p253 = scmp.eq.s32.totalorder %s83, 3
      %p254 = por %p252, %p253
      %p255 = scmp.ne.s32.totalorder %s246, %s247
      %p256 = scmp.eq.s32.totalorder %s83, 0
      %p257 = por %p255, %p256
      %p258 = scmp.ne.s32.totalorder %s246, %s247
      %p259 = scmp.eq.s32.totalorder %s84, 3
      %p260 = por %p258, %p259
      %p262 = scmp.ne.s32.totalorder %s247, %s261
      %p263 = scmp.eq.s32.totalorder %s84, 0
      %p264 = por %p262, %p263
      %s266 = sadd.s32 %s265, 1
      %p269 = scmp.eq.s32.totalorder %s78, 3
      %p270 = scmp.ne.s32.totalorder %s265, %s267
      %p271 = scmp.eq.s32.totalorder %s78, 0
      %p272 = por %p270, %p271
      %p273 = scmp.ne.s32.totalorder %s265, %s267
      %p274 = scmp.eq.s32.totalorder %s83, 3
      %p275 = por %p273, %p274
      %p276 = scmp.ne.s32.totalorder %s267, %s268
      %p277 = scmp.eq.s32.totalorder %s83, 0
      %p278 = por %p276, %p277
      %p279 = scmp.ne.s32.totalorder %s267, %s268
      %p280 = scmp.eq.s32.totalorder %s84, 3
      %p281 = por %p279, %p280
      %p283 = scmp.ne.s32.totalorder %s268, %s282
      %p284 = scmp.eq.s32.totalorder %s84, 0
      %p285 = por %p283, %p284
      %s287 = sadd.s32 %s286, 1
      %p290 = scmp.eq.s32.totalorder %s78, 3
      %p291 = scmp.ne.s32.totalorder %s286, %s288
      %p292 = scmp.eq.s32.totalorder %s78, 0
      %p293 = por %p291, %p292
      %p294 = scmp.ne.s32.totalorder %s286, %s288
      %p295 = scmp.eq.s32.totalorder %s83, 3
      %p296 = por %p294, %p295
      %p297 = scmp.ne.s32.totalorder %s288, %s289
      %p298 = scmp.eq.s32.totalorder %s83, 0
      %p299 = por %p297, %p298
      %p300 = scmp.ne.s32.totalorder %s288, %s289
      %p301 = scmp.eq.s32.totalorder %s84, 3
      %p302 = por %p300, %p301
      %p304 = scmp.ne.s32.totalorder %s289, %s303
      %p305 = scmp.eq.s32.totalorder %s84, 0
      %p306 = por %p304, %p305
      %s308 = sadd.s32 %s307, 1
      %p311 = scmp.eq.s32.totalorder %s78, 3
      %p312 = scmp.ne.s32.totalorder %s307, %s309
      %p313 = scmp.eq.s32.totalorder %s78, 0
      %p314 = por %p312, %p313
      %p315 = scmp.ne.s32.totalorder %s307, %s309
      %p316 = scmp.eq.s32.totalorder %s83, 3
      %p317 = por %p315, %p316
      %p318 = scmp.ne.s32.totalorder %s309, %s310
      %p319 = scmp.eq.s32.totalorder %s83, 0
      %p320 = por %p318, %p319
      %p321 = scmp.ne.s32.totalorder %s309, %s310
      %p322 = scmp.eq.s32.totalorder %s84, 3
      %p323 = por %p321, %p322
      %p325 = scmp.ne.s32.totalorder %s310, %s324
      %p326 = scmp.eq.s32.totalorder %s84, 0
      %p327 = por %p325, %p326
      %s329 = sadd.s32 %s328, 1
      %p332 = scmp.eq.s32.totalorder %s78, 3
      %p333 = scmp.ne.s32.totalorder %s328, %s330
      %p334 = scmp.eq.s32.totalorder %s78, 0
      %p335 = por %p333, %p334
      %p336 = scmp.ne.s32.totalorder %s328, %s330
      %p337 = scmp.eq.s32.totalorder %s83, 3
      %p338 = por %p336, %p337
      %p339 = scmp.ne.s32.totalorder %s330, %s331
      %p340 = scmp.eq.s32.totalorder %s83, 0
      %p341 = por %p339, %p340
      %p342 = scmp.ne.s32.totalorder %s330, %s331
      %p343 = scmp.eq.s32.totalorder %s84, 3
      %p344 = por %p342, %p343
      %p346 = scmp.ne.s32.totalorder %s331, %s345
      %p347 = scmp.eq.s32.totalorder %s84, 0
      %p348 = por %p346, %p347
      %s350 = sadd.s32 %s349, 1
      %p353 = scmp.eq.s32.totalorder %s78, 3
      %p354 = scmp.ne.s32.totalorder %s349, %s351
      %p355 = scmp.eq.s32.totalorder %s78, 0
      %p356 = por %p354, %p355
      %p357 = scmp.ne.s32.totalorder %s349, %s351
      %p358 = scmp.eq.s32.totalorder %s83, 3
      %p359 = por %p357, %p358
      %p360 = scmp.ne.s32.totalorder %s351, %s352
      %p361 = scmp.eq.s32.totalorder %s83, 0
      %p362 = por %p360, %p361
      %p363 = scmp.ne.s32.totalorder %s351, %s352
      %p364 = scmp.eq.s32.totalorder %s84, 3
      %p365 = por %p363, %p364
      %p367 = scmp.ne.s32.totalorder %s352, %s366
      %p368 = scmp.eq.s32.totalorder %s84, 0
      %p369 = por %p367, %p368
      %s371 = sadd.s32 %s370, 1
      %p374 = scmp.eq.s32.totalorder %s78, 3
      %p375 = scmp.ne.s32.totalorder %s370, %s372
      %p376 = scmp.eq.s32.totalorder %s78, 0
      %p377 = por %p375, %p376
      %p378 = scmp.ne.s32.totalorder %s370, %s372
      %p379 = scmp.eq.s32.totalorder %s83, 3
      %p380 = por %p378, %p379
      %p381 = scmp.ne.s32.totalorder %s372, %s373
      %p382 = scmp.eq.s32.totalorder %s83, 0
      %p383 = por %p381, %p382
      %p384 = scmp.ne.s32.totalorder %s372, %s373
      %p385 = scmp.eq.s32.totalorder %s84, 3
      %p386 = por %p384, %p385
      %p388 = scmp.ne.s32.totalorder %s373, %s387
      %p389 = scmp.eq.s32.totalorder %s84, 0
      %p390 = por %p388, %p389
      %s392 = sadd.s32 %s391, 1
      %p395 = scmp.eq.s32.totalorder %s78, 3
      %p396 = scmp.ne.s32.totalorder %s391, %s393
      %p397 = scmp.eq.s32.totalorder %s78, 0
      %p398 = por %p396, %p397
      %p399 = scmp.ne.s32.totalorder %s391, %s393
      %p400 = scmp.eq.s32.totalorder %s83, 3
      %p401 = por %p399, %p400
      %p402 = scmp.ne.s32.totalorder %s393, %s394
      %p403 = scmp.eq.s32.totalorder %s83, 0
      %p404 = por %p402, %p403
      %p405 = scmp.ne.s32.totalorder %s393, %s394
      %p406 = scmp.eq.s32.totalorder %s84, 3
      %p407 = por %p405, %p406
      %p409 = scmp.ne.s32.totalorder %s394, %s408
      %p410 = scmp.eq.s32.totalorder %s84, 0
      %p411 = por %p409, %p410
      %s413 = sadd.s32 %s412, 1
      %p416 = scmp.eq.s32.totalorder %s78, 3
      %p417 = scmp.ne.s32.totalorder %s412, %s414
      %p418 = scmp.eq.s32.totalorder %s78, 0
      %p419 = por %p417, %p418
      %p420 = scmp.ne.s32.totalorder %s412, %s414
      %p421 = scmp.eq.s32.totalorder %s83, 3
      %p422 = por %p420, %p421
      %p423 = scmp.ne.s32.totalorder %s414, %s415
      %p424 = scmp.eq.s32.totalorder %s83, 0
      %p425 = por %p423, %p424
      %p426 = scmp.ne.s32.totalorder %s414, %s415
      %p427 = scmp.eq.s32.totalorder %s84, 3
      %p428 = por %p426, %p427
      %p430 = scmp.ne.s32.totalorder %s415, %s429
      %p431 = scmp.eq.s32.totalorder %s84, 0
      %p432 = por %p430, %p431
      %s434 = sadd.s32 %s433, 1
      %p437 = scmp.eq.s32.totalorder %s78, 3
      %p438 = scmp.ne.s32.totalorder %s433, %s435
      %p439 = scmp.eq.s32.totalorder %s78, 0
      %p440 = por %p438, %p439
      %p441 = scmp.ne.s32.totalorder %s433, %s435
      %p442 = scmp.eq.s32.totalorder %s83, 3
      %p443 = por %p441, %p442
      %p444 = scmp.ne.s32.totalorder %s435, %s436
      %p445 = scmp.eq.s32.totalorder %s83, 0
      %p446 = por %p444, %p445
      %p447 = scmp.ne.s32.totalorder %s435, %s436
      %p448 = scmp.eq.s32.totalorder %s84, 3
      %p449 = por %p447, %p448
      %p451 = scmp.ne.s32.totalorder %s436, %s450
      %p452 = scmp.eq.s32.totalorder %s84, 0
      %p453 = por %p451, %p452
      %s455 = sadd.s32 %s454, 1
      %p458 = scmp.eq.s32.totalorder %s78, 3
      %p459 = scmp.ne.s32.totalorder %s454, %s456
      %p460 = scmp.eq.s32.totalorder %s78, 0
      %p461 = por %p459, %p460
      %p462 = scmp.ne.s32.totalorder %s454, %s456
      %p463 = scmp.eq.s32.totalorder %s83, 3
      %p464 = por %p462, %p463
      %p465 = scmp.ne.s32.totalorder %s456, %s457
      %p466 = scmp.eq.s32.totalorder %s83, 0
      %p467 = por %p465, %p466
      %p468 = scmp.ne.s32.totalorder %s456, %s457
      %p469 = scmp.eq.s32.totalorder %s84, 3
      %p470 = por %p468, %p469
      %p472 = scmp.ne.s32.totalorder %s457, %s471
      %p473 = scmp.eq.s32.totalorder %s84, 0
      %p474 = por %p472, %p473
      %s476 = sadd.s32 %s475, 1
      %p479 = scmp.eq.s32.totalorder %s78, 3
      %p480 = scmp.ne.s32.totalorder %s475, %s477
      %p481 = scmp.eq.s32.totalorder %s78, 0
      %p482 = por %p480, %p481
      %p483 = scmp.ne.s32.totalorder %s475, %s477
      %p484 = scmp.eq.s32.totalorder %s83, 3
      %p485 = por %p483, %p484
      %p486 = scmp.ne.s32.totalorder %s477, %s478
      %p487 = scmp.eq.s32.totalorder %s83, 0
      %p488 = por %p486, %p487
      %p489 = scmp.ne.s32.totalorder %s477, %s478
      %p490 = scmp.eq.s32.totalorder %s84, 3
      %p491 = por %p489, %p490
      %p493 = scmp.ne.s32.totalorder %s478, %s492
      %p494 = scmp.eq.s32.totalorder %s84, 0
      %p495 = por %p493, %p494
      %s497 = sadd.s32 %s496, 1
      %p500 = scmp.eq.s32.totalorder %s78, 3
      %p501 = scmp.ne.s32.totalorder %s496, %s498
      %p502 = scmp.eq.s32.totalorder %s78, 0
      %p503 = por %p501, %p502
      %p504 = scmp.ne.s32.totalorder %s496, %s498
      %p505 = scmp.eq.s32.totalorder %s83, 3
      %p506 = por %p504, %p505
      %p507 = scmp.ne.s32.totalorder %s498, %s499
      %p508 = scmp.eq.s32.totalorder %s83, 0
      %p509 = por %p507, %p508
      %p510 = scmp.ne.s32.totalorder %s498, %s499
      %p511 = scmp.eq.s32.totalorder %s84, 3
      %p512 = por %p510, %p511
      %p514 = scmp.ne.s32.totalorder %s499, %s513
      %p515 = scmp.eq.s32.totalorder %s84, 0
      %p516 = por %p514, %p515
      %s518 = sadd.s32 %s517, 1
      %p521 = scmp.eq.s32.totalorder %s78, 3
      %p522 = scmp.ne.s32.totalorder %s517, %s519
      %p523 = scmp.eq.s32.totalorder %s78, 0
      %p524 = por %p522, %p523
      %p525 = scmp.ne.s32.totalorder %s517, %s519
      %p526 = scmp.eq.s32.totalorder %s83, 3
      %p527 = por %p525, %p526
      %p528 = scmp.ne.s32.totalorder %s519, %s520
      %p529 = scmp.eq.s32.totalorder %s83, 0
      %p530 = por %p528, %p529
      %p531 = scmp.ne.s32.totalorder %s519, %s520
      %p532 = scmp.eq.s32.totalorder %s84, 3
      %p533 = por %p531, %p532
      %p535 = scmp.ne.s32.totalorder %s520, %s534
      %p536 = scmp.eq.s32.totalorder %s84, 0
      %p537 = por %p535, %p536
      %s539 = sadd.s32 %s538, 1
      %p542 = scmp.eq.s32.totalorder %s78, 3
      %p543 = scmp.ne.s32.totalorder %s538, %s540
      %p544 = scmp.eq.s32.totalorder %s78, 0
      %p545 = por %p543, %p544
      %p546 = scmp.ne.s32.totalorder %s538, %s540
      %p547 = scmp.eq.s32.totalorder %s83, 3
      %p548 = por %p546, %p547
      %p549 = scmp.ne.s32.totalorder %s540, %s541
      %p550 = scmp.eq.s32.totalorder %s83, 0
      %p551 = por %p549, %p550
      %p552 = scmp.ne.s32.totalorder %s540, %s541
      %p553 = scmp.eq.s32.totalorder %s84, 3
      %p554 = por %p552, %p553
      %p556 = scmp.ne.s32.totalorder %s541, %s555
      %p557 = scmp.eq.s32.totalorder %s84, 0
      %p558 = por %p556, %p557
      %s560 = sadd.s32 %s559, 1
      %p563 = scmp.eq.s32.totalorder %s78, 3
      %p564 = scmp.ne.s32.totalorder %s559, %s561
      %p565 = scmp.eq.s32.totalorder %s78, 0
      %p566 = por %p564, %p565
      %p567 = scmp.ne.s32.totalorder %s559, %s561
      %p568 = scmp.eq.s32.totalorder %s83, 3
      %p569 = por %p567, %p568
      %p570 = scmp.ne.s32.totalorder %s561, %s562
      %p571 = scmp.eq.s32.totalorder %s83, 0
      %p572 = por %p570, %p571
      %p573 = scmp.ne.s32.totalorder %s561, %s562
      %p574 = scmp.eq.s32.totalorder %s84, 3
      %p575 = por %p573, %p574
      %p577 = scmp.ne.s32.totalorder %s562, %s576
      %p578 = scmp.eq.s32.totalorder %s84, 0
      %p579 = por %p577, %p578
      %s581 = sadd.s32 %s580, 1
      %p584 = scmp.eq.s32.totalorder %s78, 3
      %p585 = scmp.ne.s32.totalorder %s580, %s582
      %p586 = scmp.eq.s32.totalorder %s78, 0
      %p587 = por %p585, %p586
      %p588 = scmp.ne.s32.totalorder %s580, %s582
      %p589 = scmp.eq.s32.totalorder %s83, 3
      %p590 = por %p588, %p589
      %p591 = scmp.ne.s32.totalorder %s582, %s583
      %p592 = scmp.eq.s32.totalorder %s83, 0
      %p593 = por %p591, %p592
      %p594 = scmp.ne.s32.totalorder %s582, %s583
      %p595 = scmp.eq.s32.totalorder %s84, 3
      %p596 = por %p594, %p595
      %p598 = scmp.ne.s32.totalorder %s583, %s597
      %p599 = scmp.eq.s32.totalorder %s84, 0
      %p600 = por %p598, %p599
      %s602 = sadd.s32 %s601, 1
      %p605 = scmp.eq.s32.totalorder %s78, 3
      %p606 = scmp.ne.s32.totalorder %s601, %s603
      %p607 = scmp.eq.s32.totalorder %s78, 0
      %p608 = por %p606, %p607
      %p609 = scmp.ne.s32.totalorder %s601, %s603
      %p610 = scmp.eq.s32.totalorder %s83, 3
      %p611 = por %p609, %p610
      %p612 = scmp.ne.s32.totalorder %s603, %s604
      %p613 = scmp.eq.s32.totalorder %s83, 0
      %p614 = por %p612, %p613
      %p615 = scmp.ne.s32.totalorder %s603, %s604
      %p616 = scmp.eq.s32.totalorder %s84, 3
      %p617 = por %p615, %p616
      %p619 = scmp.ne.s32.totalorder %s604, %s618
      %p620 = scmp.eq.s32.totalorder %s84, 0
      %p621 = por %p619, %p620
      %s623 = sadd.s32 %s622, 1
      %p626 = scmp.eq.s32.totalorder %s78, 3
      %p627 = scmp.ne.s32.totalorder %s622, %s624
      %p628 = scmp.eq.s32.totalorder %s78, 0
      %p629 = por %p627, %p628
      %p630 = scmp.ne.s32.totalorder %s622, %s624
      %p631 = scmp.eq.s32.totalorder %s83, 3
      %p632 = por %p630, %p631
      %p633 = scmp.ne.s32.totalorder %s624, %s625
      %p634 = scmp.eq.s32.totalorder %s83, 0
      %p635 = por %p633, %p634
      %p636 = scmp.ne.s32.totalorder %s624, %s625
      %p637 = scmp.eq.s32.totalorder %s84, 3
      %p638 = por %p636, %p637
      %p640 = scmp.ne.s32.totalorder %s625, %s639
      %p641 = scmp.eq.s32.totalorder %s84, 0
      %p642 = por %p640, %p641
      %s643 = ssub.s32 %s86, %s93
      %p644 = scmp.eq.s32.totalorder %s643, 0
      %s646 = sadd.s32 %s645, 1
      %s647 = scalar_select %p644, %s645, %s646
      %p650 = pneg %p644
      %p651 = scmp.eq.s32.totalorder %s78, 3
      %p652 = por %p650, %p651
      %p653 = scmp.ne.s32.totalorder %s645, %s648
      %p654 = scmp.eq.s32.totalorder %s78, 0
      %p655 = por %p653, %p654
      %p656 = scmp.ne.s32.totalorder %s645, %s648
      %p657 = scmp.eq.s32.totalorder %s83, 3
      %p658 = por %p656, %p657
      %p659 = scmp.ne.s32.totalorder %s648, %s649
      %p660 = scmp.eq.s32.totalorder %s83, 0
      %p661 = por %p659, %p660
      %p662 = scmp.ne.s32.totalorder %s648, %s649
      %p663 = scmp.eq.s32.totalorder %s84, 3
      %p664 = por %p662, %p663
      %p666 = scmp.ne.s32.totalorder %s649, %s665
      %p667 = scmp.eq.s32.totalorder %s84, 0
      %p668 = por %p666, %p667
      %s669 = ssub.s32 %s86, %s93
      %p670 = scmp.eq.s32.totalorder %s669, 0
      %s672 = sadd.s32 %s671, 1
      %s673 = scalar_select %p670, %s671, %s672
      %p676 = pneg %p670
      %p677 = scmp.eq.s32.totalorder %s78, 3
      %p678 = por %p676, %p677
      %p679 = scmp.ne.s32.totalorder %s671, %s674
      %p680 = scmp.eq.s32.totalorder %s78, 0
      %p681 = por %p679, %p680
      %p682 = scmp.ne.s32.totalorder %s671, %s674
      %p683 = scmp.eq.s32.totalorder %s83, 3
      %p684 = por %p682, %p683
      %p685 = scmp.ne.s32.totalorder %s674, %s675
      %p686 = scmp.eq.s32.totalorder %s83, 0
      %p687 = por %p685, %p686
      %p688 = scmp.ne.s32.totalorder %s674, %s675
      %p689 = scmp.eq.s32.totalorder %s84, 3
      %p690 = por %p688, %p689
      %p692 = scmp.ne.s32.totalorder %s675, %s691
      %p693 = scmp.eq.s32.totalorder %s84, 0
      %p694 = por %p692, %p693
      %s695 = ssub.s32 %s86, %s93
      %p696 = scmp.eq.s32.totalorder %s695, 0
      %s698 = sadd.s32 %s697, 1
      %s699 = scalar_select %p696, %s697, %s698
      %p702 = pneg %p696
      %p703 = scmp.eq.s32.totalorder %s78, 3
      %p704 = por %p702, %p703
      %p705 = scmp.ne.s32.totalorder %s697, %s700
      %p706 = scmp.eq.s32.totalorder %s78, 0
      %p707 = por %p705, %p706
      %p708 = scmp.ne.s32.totalorder %s697, %s700
      %p709 = scmp.eq.s32.totalorder %s83, 3
      %p710 = por %p708, %p709
      %p711 = scmp.ne.s32.totalorder %s700, %s701
      %p712 = scmp.eq.s32.totalorder %s83, 0
      %p713 = por %p711, %p712
      %p714 = scmp.ne.s32.totalorder %s700, %s701
      %p715 = scmp.eq.s32.totalorder %s84, 3
      %p716 = por %p714, %p715
      %p718 = scmp.ne.s32.totalorder %s701, %s717
      %p719 = scmp.eq.s32.totalorder %s84, 0
      %p720 = por %p718, %p719
      %s721 = ssub.s32 %s86, %s93
      %p722 = scmp.eq.s32.totalorder %s721, 0
      %s724 = sadd.s32 %s723, 1
      %s725 = scalar_select %p722, %s723, %s724
      %p728 = pneg %p722
      %p729 = scmp.eq.s32.totalorder %s78, 3
      %p730 = por %p728, %p729
      %p731 = scmp.ne.s32.totalorder %s723, %s726
      %p732 = scmp.eq.s32.totalorder %s78, 0
      %p733 = por %p731, %p732
      %p734 = scmp.ne.s32.totalorder %s723, %s726
      %p735 = scmp.eq.s32.totalorder %s83, 3
      %p736 = por %p734, %p735
      %p737 = scmp.ne.s32.totalorder %s726, %s727
      %p738 = scmp.eq.s32.totalorder %s83, 0
      %p739 = por %p737, %p738
      %p740 = scmp.ne.s32.totalorder %s726, %s727
      %p741 = scmp.eq.s32.totalorder %s84, 3
      %p742 = por %p740, %p741
      %p744 = scmp.ne.s32.totalorder %s727, %s743
      %p745 = scmp.eq.s32.totalorder %s84, 0
      %p746 = por %p744, %p745
      %s747 = ssub.s32 %s86, %s93
      %p748 = scmp.eq.s32.totalorder %s747, 0
      %s750 = sadd.s32 %s749, 1
      %s751 = scalar_select %p748, %s749, %s750
      %p754 = pneg %p748
      %p755 = scmp.eq.s32.totalorder %s78, 3
      %p756 = por %p754, %p755
      %p757 = scmp.ne.s32.totalorder %s749, %s752
      %p758 = scmp.eq.s32.totalorder %s78, 0
      %p759 = por %p757, %p758
      %p760 = scmp.ne.s32.totalorder %s749, %s752
      %p761 = scmp.eq.s32.totalorder %s83, 3
      %p762 = por %p760, %p761
      %p763 = scmp.ne.s32.totalorder %s752, %s753
      %p764 = scmp.eq.s32.totalorder %s83, 0
      %p765 = por %p763, %p764
      %p766 = scmp.ne.s32.totalorder %s752, %s753
      %p767 = scmp.eq.s32.totalorder %s84, 3
      %p768 = por %p766, %p767
      %p770 = scmp.ne.s32.totalorder %s753, %s769
      %p771 = scmp.eq.s32.totalorder %s84, 0
      %p772 = por %p770, %p771
      %s773 = ssub.s32 %s86, %s93
      %p774 = scmp.eq.s32.totalorder %s773, 0
      %s776 = sadd.s32 %s775, 1
      %s777 = scalar_select %p774, %s775, %s776
      %p780 = pneg %p774
      %p781 = scmp.eq.s32.totalorder %s78, 3
      %p782 = por %p780, %p781
      %p783 = scmp.ne.s32.totalorder %s775, %s778
      %p784 = scmp.eq.s32.totalorder %s78, 0
      %p785 = por %p783, %p784
      %p786 = scmp.ne.s32.totalorder %s775, %s778
      %p787 = scmp.eq.s32.totalorder %s83, 3
      %p788 = por %p786, %p787
      %p789 = scmp.ne.s32.totalorder %s778, %s779
      %p790 = scmp.eq.s32.totalorder %s83, 0
      %p791 = por %p789, %p790
      %p792 = scmp.ne.s32.totalorder %s778, %s779
      %p793 = scmp.eq.s32.totalorder %s84, 3
      %p794 = por %p792, %p793
      %p796 = scmp.ne.s32.totalorder %s779, %s795
      %p797 = scmp.eq.s32.totalorder %s84, 0
      %p798 = por %p796, %p797
      %s799 = ssub.s32 %s86, %s93
      %p800 = scmp.eq.s32.totalorder %s799, 0
      %s802 = sadd.s32 %s801, 1
      %s803 = scalar_select %p800, %s801, %s802
      %p806 = pneg %p800
      %p807 = scmp.eq.s32.totalorder %s78, 3
      %p808 = por %p806, %p807
      %p809 = scmp.ne.s32.totalorder %s801, %s804
      %p810 = scmp.eq.s32.totalorder %s78, 0
      %p811 = por %p809, %p810
      %p812 = scmp.ne.s32.totalorder %s801, %s804
      %p813 = scmp.eq.s32.totalorder %s83, 3
      %p814 = por %p812, %p813
      %p815 = scmp.ne.s32.totalorder %s804, %s805
      %p816 = scmp.eq.s32.totalorder %s83, 0
      %p817 = por %p815, %p816
      %p818 = scmp.ne.s32.totalorder %s804, %s805
      %p819 = scmp.eq.s32.totalorder %s84, 3
      %p820 = por %p818, %p819
      %p822 = scmp.ne.s32.totalorder %s805, %s821
      %p823 = scmp.eq.s32.totalorder %s84, 0
      %p824 = por %p822, %p823
      %s825 = ssub.s32 %s86, %s93
      %p826 = scmp.eq.s32.totalorder %s825, 0
      %s828 = sadd.s32 %s827, 1
      %s829 = scalar_select %p826, %s827, %s828
      %p832 = pneg %p826
      %p833 = scmp.eq.s32.totalorder %s78, 3
      %p834 = por %p832, %p833
      %p835 = scmp.ne.s32.totalorder %s827, %s830
      %p836 = scmp.eq.s32.totalorder %s78, 0
      %p837 = por %p835, %p836
      %p838 = scmp.ne.s32.totalorder %s827, %s830
      %p839 = scmp.eq.s32.totalorder %s83, 3
      %p840 = por %p838, %p839
      %p841 = scmp.ne.s32.totalorder %s830, %s831
      %p842 = scmp.eq.s32.totalorder %s83, 0
      %p843 = por %p841, %p842
      %p844 = scmp.ne.s32.totalorder %s830, %s831
      %p845 = scmp.eq.s32.totalorder %s84, 3
      %p846 = por %p844, %p845
      %p848 = scmp.ne.s32.totalorder %s831, %s847
      %p849 = scmp.eq.s32.totalorder %s84, 0
      %p850 = por %p848, %p849
      %s851 = ssub.s32 %s86, %s93
      %p852 = scmp.eq.s32.totalorder %s851, 0
      %s854 = sadd.s32 %s853, 1
      %s855 = scalar_select %p852, %s853, %s854
      %p858 = pneg %p852
      %p859 = scmp.eq.s32.totalorder %s78, 3
      %p860 = por %p858, %p859
      %p861 = scmp.ne.s32.totalorder %s853, %s856
      %p862 = scmp.eq.s32.totalorder %s78, 0
      %p863 = por %p861, %p862
      %p864 = scmp.ne.s32.totalorder %s853, %s856
      %p865 = scmp.eq.s32.totalorder %s83, 3
      %p866 = por %p864, %p865
      %p867 = scmp.ne.s32.totalorder %s856, %s857
      %p868 = scmp.eq.s32.totalorder %s83, 0
      %p869 = por %p867, %p868
      %p870 = scmp.ne.s32.totalorder %s856, %s857
      %p871 = scmp.eq.s32.totalorder %s84, 3
      %p872 = por %p870, %p871
      %p874 = scmp.ne.s32.totalorder %s857, %s873
      %p875 = scmp.eq.s32.totalorder %s84, 0
      %p876 = por %p874, %p875
      %s877 = ssub.s32 %s85, %s97
      %p878 = scmp.eq.s32.totalorder %s877, 0
      %s880 = sadd.s32 %s879, 1
      %s881 = scalar_select %p878, %s879, %s880
      %p884 = pneg %p878
      %p885 = scmp.eq.s32.totalorder %s78, 3
      %p886 = por %p884, %p885
      %p887 = scmp.ne.s32.totalorder %s879, %s882
      %p888 = scmp.eq.s32.totalorder %s78, 0
      %p889 = por %p887, %p888
      %p890 = scmp.ne.s32.totalorder %s879, %s882
      %p891 = scmp.eq.s32.totalorder %s83, 3
      %p892 = por %p890, %p891
      %p893 = scmp.ne.s32.totalorder %s882, %s883
      %p894 = scmp.eq.s32.totalorder %s83, 0
      %p895 = por %p893, %p894
      %p896 = scmp.ne.s32.totalorder %s882, %s883
      %p897 = scmp.eq.s32.totalorder %s84, 3
      %p898 = por %p896, %p897
      %p900 = scmp.ne.s32.totalorder %s883, %s899
      %p901 = scmp.eq.s32.totalorder %s84, 0
      %p902 = por %p900, %p901
      %p903 = scmp.le.s32.totalorder 1, %s78
      %p904 = scmp.lt.s32.totalorder %s78, 5
      %p905 = pnand %p903, %p904
      %p906 = pneg %p905
      // Predicated region
      $region9: #{tpu_custom_call.1} parent=5 // pred_check
        _
      $region10: #{tpu_custom_call.1} parent=5 // pred_check_branch
        %908 = sbr.rel (%p905) target = $region12
      $region11: #{tpu_custom_call.1} parent=5 // pred_region
        %s909 = ssub.s32 %s78, 1
        // Predicated region
        $region13: #{tpu_custom_call.1} parent=11 // pred_check
          %p910 = pneg %p189
        $region14: #{tpu_custom_call.1} parent=11 // pred_check_branch
          %912 = sbr.rel (%p910) target = $region16
        $region15: #{tpu_custom_call.1} parent=11 // pred_region
          _
        $region16: #{tpu_custom_call.1} parent=11 // pred_fallthru
          _
        // Predicated region
        $region17: #{tpu_custom_call.1} parent=11 // pred_check
          %p913 = pneg %p236
        $region18: #{tpu_custom_call.1} parent=11 // pred_check_branch
          %915 = sbr.rel (%p913) target = $region20
        $region19: #{tpu_custom_call.1} parent=11 // pred_region
          _
        $region20: #{tpu_custom_call.1} parent=11 // pred_fallthru
          _
        // Predicated region
        $region21: #{tpu_custom_call.1} parent=11 // pred_check
          %p916 = pneg %p257
        $region22: #{tpu_custom_call.1} parent=11 // pred_check_branch
          %918 = sbr.rel (%p916) target = $region24
        $region23: #{tpu_custom_call.1} parent=11 // pred_region
          _
        $region24: #{tpu_custom_call.1} parent=11 // pred_fallthru
          _
        // Predicated region
        $region25: #{tpu_custom_call.1} parent=11 // pred_check
          %p919 = pneg %p278
        $region26: #{tpu_custom_call.1} parent=11 // pred_check_branch
          %921 = sbr.rel (%p919) target = $region28
        $region27: #{tpu_custom_call.1} parent=11 // pred_region
          _
        $region28: #{tpu_custom_call.1} parent=11 // pred_fallthru
          _
        // Predicated region
        $region29: #{tpu_custom_call.1} parent=11 // pred_check
          %p922 = pneg %p299
        $region30: #{tpu_custom_call.1} parent=11 // pred_check_branch
          %924 = sbr.rel (%p922) target = $region32
        $region31: #{tpu_custom_call.1} parent=11 // pred_region
          _
        $region32: #{tpu_custom_call.1} parent=11 // pred_fallthru
          _
        // Predicated region
        $region33: #{tpu_custom_call.1} parent=11 // pred_check
          %p925 = pneg %p320
        $region34: #{tpu_custom_call.1} parent=11 // pred_check_branch
          %927 = sbr.rel (%p925) target = $region36
        $region35: #{tpu_custom_call.1} parent=11 // pred_region
          _
        $region36: #{tpu_custom_call.1} parent=11 // pred_fallthru
          _
        // Predicated region
        $region37: #{tpu_custom_call.1} parent=11 // pred_check
          %p928 = pneg %p341
        $region38: #{tpu_custom_call.1} parent=11 // pred_check_branch
          %930 = sbr.rel (%p928) target = $region40
        $region39: #{tpu_custom_call.1} parent=11 // pred_region
          _
        $region40: #{tpu_custom_call.1} parent=11 // pred_fallthru
          _
        // Predicated region
        $region41: #{tpu_custom_call.1} parent=11 // pred_check
          %p931 = pneg %p362
        $region42: #{tpu_custom_call.1} parent=11 // pred_check_branch
          %933 = sbr.rel (%p931) target = $region44
        $region43: #{tpu_custom_call.1} parent=11 // pred_region
          _
        $region44: #{tpu_custom_call.1} parent=11 // pred_fallthru
          _
        // Predicated region
        $region45: #{tpu_custom_call.1} parent=11 // pred_check
          %p934 = pneg %p383
        $region46: #{tpu_custom_call.1} parent=11 // pred_check_branch
          %936 = sbr.rel (%p934) target = $region48
        $region47: #{tpu_custom_call.1} parent=11 // pred_region
          _
        $region48: #{tpu_custom_call.1} parent=11 // pred_fallthru
          _
        // Predicated region
        $region49: #{tpu_custom_call.1} parent=11 // pred_check
          %p937 = pneg %p404
        $region50: #{tpu_custom_call.1} parent=11 // pred_check_branch
          %939 = sbr.rel (%p937) target = $region52
        $region51: #{tpu_custom_call.1} parent=11 // pred_region
          _
        $region52: #{tpu_custom_call.1} parent=11 // pred_fallthru
          _
        // Predicated region
        $region53: #{tpu_custom_call.1} parent=11 // pred_check
          %p940 = pneg %p425
        $region54: #{tpu_custom_call.1} parent=11 // pred_check_branch
          %942 = sbr.rel (%p940) target = $region56
        $region55: #{tpu_custom_call.1} parent=11 // pred_region
          _
        $region56: #{tpu_custom_call.1} parent=11 // pred_fallthru
          _
        // Predicated region
        $region57: #{tpu_custom_call.1} parent=11 // pred_check
          %p943 = pneg %p446
        $region58: #{tpu_custom_call.1} parent=11 // pred_check_branch
          %945 = sbr.rel (%p943) target = $region60
        $region59: #{tpu_custom_call.1} parent=11 // pred_region
          _
        $region60: #{tpu_custom_call.1} parent=11 // pred_fallthru
          _
        // Predicated region
        $region61: #{tpu_custom_call.1} parent=11 // pred_check
          %p946 = pneg %p467
        $region62: #{tpu_custom_call.1} parent=11 // pred_check_branch
          %948 = sbr.rel (%p946) target = $region64
        $region63: #{tpu_custom_call.1} parent=11 // pred_region
          _
        $region64: #{tpu_custom_call.1} parent=11 // pred_fallthru
          _
        // Predicated region
        $region65: #{tpu_custom_call.1} parent=11 // pred_check
          %p949 = pneg %p488
        $region66: #{tpu_custom_call.1} parent=11 // pred_check_branch
          %951 = sbr.rel (%p949) target = $region68
        $region67: #{tpu_custom_call.1} parent=11 // pred_region
          _
        $region68: #{tpu_custom_call.1} parent=11 // pred_fallthru
          _
        // Predicated region
        $region69: #{tpu_custom_call.1} parent=11 // pred_check
          %p952 = pneg %p509
        $region70: #{tpu_custom_call.1} parent=11 // pred_check_branch
          %954 = sbr.rel (%p952) target = $region72
        $region71: #{tpu_custom_call.1} parent=11 // pred_region
          _
        $region72: #{tpu_custom_call.1} parent=11 // pred_fallthru
          _
        // Predicated region
        $region73: #{tpu_custom_call.1} parent=11 // pred_check
          %p955 = pneg %p530
        $region74: #{tpu_custom_call.1} parent=11 // pred_check_branch
          %957 = sbr.rel (%p955) target = $region76
        $region75: #{tpu_custom_call.1} parent=11 // pred_region
          _
        $region76: #{tpu_custom_call.1} parent=11 // pred_fallthru
          _
        // Predicated region
        $region77: #{tpu_custom_call.1} parent=11 // pred_check
          %p958 = pneg %p551
        $region78: #{tpu_custom_call.1} parent=11 // pred_check_branch
          %960 = sbr.rel (%p958) target = $region80
        $region79: #{tpu_custom_call.1} parent=11 // pred_region
          _
        $region80: #{tpu_custom_call.1} parent=11 // pred_fallthru
          _
        // Predicated region
        $region81: #{tpu_custom_call.1} parent=11 // pred_check
          %p961 = pneg %p572
        $region82: #{tpu_custom_call.1} parent=11 // pred_check_branch
          %963 = sbr.rel (%p961) target = $region84
        $region83: #{tpu_custom_call.1} parent=11 // pred_region
          _
        $region84: #{tpu_custom_call.1} parent=11 // pred_fallthru
          _
        // Predicated region
        $region85: #{tpu_custom_call.1} parent=11 // pred_check
          %p964 = pneg %p593
        $region86: #{tpu_custom_call.1} parent=11 // pred_check_branch
          %966 = sbr.rel (%p964) target = $region88
        $region87: #{tpu_custom_call.1} parent=11 // pred_region
          _
        $region88: #{tpu_custom_call.1} parent=11 // pred_fallthru
          _
        // Predicated region
        $region89: #{tpu_custom_call.1} parent=11 // pred_check
          %p967 = pneg %p614
        $region90: #{tpu_custom_call.1} parent=11 // pred_check_branch
          %969 = sbr.rel (%p967) target = $region92
        $region91: #{tpu_custom_call.1} parent=11 // pred_region
          _
        $region92: #{tpu_custom_call.1} parent=11 // pred_fallthru
          _
        // Predicated region
        $region93: #{tpu_custom_call.1} parent=11 // pred_check
          %p970 = pneg %p635
        $region94: #{tpu_custom_call.1} parent=11 // pred_check_branch
          %972 = sbr.rel (%p970) target = $region96
        $region95: #{tpu_custom_call.1} parent=11 // pred_region
          _
        $region96: #{tpu_custom_call.1} parent=11 // pred_fallthru
          _
      $region12: #{tpu_custom_call.1} parent=5 // pred_fallthru
        _
      %p973 = scmp.lt.s32.totalorder %s78, 4
      // Predicated region
      $region97: #{tpu_custom_call.1} parent=5 // pred_check
        %p974 = pneg %p973
      $region98: #{tpu_custom_call.1} parent=5 // pred_check_branch
        %976 = sbr.rel (%p974) target = $region100
      $region99: #{tpu_custom_call.1} parent=5 // pred_region
        // Predicated region
        $region101: #{tpu_custom_call.1} parent=99 // pred_check
          %p977 = pneg %p110
        $region102: #{tpu_custom_call.1} parent=99 // pred_check_branch
          %979 = sbr.rel (%p977) target = $region104
        $region103: #{tpu_custom_call.1} parent=99 // pred_region
          %p980 = scmp.lt.s32.totalorder %s85, 1
          %s981 = scalar_select %p980, %s85, 1
          %s982 = smul.addr %s981, 8
          %s983 = scalar_lea.vmem %s1, %s982
        $region104: #{tpu_custom_call.1} parent=99 // pred_fallthru
          _
        // Predicated region
        $region105: #{tpu_custom_call.1} parent=99 // pred_check
          %p984 = pneg %p136
        $region106: #{tpu_custom_call.1} parent=99 // pred_check_branch
          %986 = sbr.rel (%p984) target = $region108
        $region107: #{tpu_custom_call.1} parent=99 // pred_region
          %p987 = scmp.lt.s32.totalorder %s85, 1
          %s988 = scalar_select %p987, %s85, 1
          %s989 = smul.addr %s988, 8
          %s990 = scalar_lea.vmem %s3, %s989
        $region108: #{tpu_custom_call.1} parent=99 // pred_fallthru
          _
        // Predicated region
        $region109: #{tpu_custom_call.1} parent=99 // pred_check
          %p991 = pneg %p162
        $region110: #{tpu_custom_call.1} parent=99 // pred_check_branch
          %993 = sbr.rel (%p991) target = $region112
        $region111: #{tpu_custom_call.1} parent=99 // pred_region
          %p994 = scmp.lt.s32.totalorder %s85, 1
          %s995 = scalar_select %p994, %s85, 1
          %s996 = smul.addr %s995, 8
          %s997 = scalar_lea.vmem %s5, %s996
        $region112: #{tpu_custom_call.1} parent=99 // pred_fallthru
          _
        // Predicated region
        $region113: #{tpu_custom_call.1} parent=99 // pred_check
          %p998 = pneg %p209
        $region114: #{tpu_custom_call.1} parent=99 // pred_check_branch
          %1000 = sbr.rel (%p998) target = $region116
        $region115: #{tpu_custom_call.1} parent=99 // pred_region
          %p1001 = scmp.lt.s32.totalorder %s85, 1
          %s1002 = scalar_select %p1001, %s85, 1
          %s1003 = scalar_lea.vmem %s9, %s1002
        $region116: #{tpu_custom_call.1} parent=99 // pred_fallthru
          _
        // Predicated region
        $region117: #{tpu_custom_call.1} parent=99 // pred_check
          %p1004 = pneg %p655
        $region118: #{tpu_custom_call.1} parent=99 // pred_check_branch
          %1006 = sbr.rel (%p1004) target = $region120
        $region119: #{tpu_custom_call.1} parent=99 // pred_region
          %p1007 = scmp.lt.s32.totalorder %s86, 1
          %s1008 = scalar_select %p1007, %s86, 1
          %s1009 = smul.addr %s1008, 48
          %s1010 = smul.addr %s1009, 4
          %s1011 = scalar_lea.vmem %s51, %s1010
        $region120: #{tpu_custom_call.1} parent=99 // pred_fallthru
          _
        // Predicated region
        $region121: #{tpu_custom_call.1} parent=99 // pred_check
          %p1012 = pneg %p681
        $region122: #{tpu_custom_call.1} parent=99 // pred_check_branch
          %1014 = sbr.rel (%p1012) target = $region124
        $region123: #{tpu_custom_call.1} parent=99 // pred_region
          %p1015 = scmp.lt.s32.totalorder %s86, 1
          %s1016 = scalar_select %p1015, %s86, 1
          %s1017 = smul.addr %s1016, 12
          %s1018 = scalar_lea.vmem %s53, %s1017
        $region124: #{tpu_custom_call.1} parent=99 // pred_fallthru
          _
        // Predicated region
        $region125: #{tpu_custom_call.1} parent=99 // pred_check
          %p1019 = pneg %p707
        $region126: #{tpu_custom_call.1} parent=99 // pred_check_branch
          %1021 = sbr.rel (%p1019) target = $region128
        $region127: #{tpu_custom_call.1} parent=99 // pred_region
          %p1022 = scmp.lt.s32.totalorder %s86, 1
          %s1023 = scalar_select %p1022, %s86, 1
          %s1024 = smul.addr %s1023, 4
          %s1025 = smul.addr %s1024, 4
          %s1026 = scalar_lea.vmem %s55, %s1025
        $region128: #{tpu_custom_call.1} parent=99 // pred_fallthru
          _
        // Predicated region
        $region129: #{tpu_custom_call.1} parent=99 // pred_check
          %p1027 = pneg %p733
        $region130: #{tpu_custom_call.1} parent=99 // pred_check_branch
          %1029 = sbr.rel (%p1027) target = $region132
        $region131: #{tpu_custom_call.1} parent=99 // pred_region
          %p1030 = scmp.lt.s32.totalorder %s86, 1
          %s1031 = scalar_select %p1030, %s86, 1
          %s1032 = scalar_lea.vmem %s57, %s1031
        $region132: #{tpu_custom_call.1} parent=99 // pred_fallthru
          _
        // Predicated region
        $region133: #{tpu_custom_call.1} parent=99 // pred_check
          %p1033 = pneg %p759
        $region134: #{tpu_custom_call.1} parent=99 // pred_check_branch
          %1035 = sbr.rel (%p1033) target = $region136
        $region135: #{tpu_custom_call.1} parent=99 // pred_region
          %p1036 = scmp.lt.s32.totalorder %s86, 1
          %s1037 = scalar_select %p1036, %s86, 1
          %s1038 = smul.addr %s1037, 4
          %s1039 = smul.addr %s1038, 4
          %s1040 = scalar_lea.vmem %s59, %s1039
        $region136: #{tpu_custom_call.1} parent=99 // pred_fallthru
          _
        // Predicated region
        $region137: #{tpu_custom_call.1} parent=99 // pred_check
          %p1041 = pneg %p785
        $region138: #{tpu_custom_call.1} parent=99 // pred_check_branch
          %1043 = sbr.rel (%p1041) target = $region140
        $region139: #{tpu_custom_call.1} parent=99 // pred_region
          %p1044 = scmp.lt.s32.totalorder %s86, 1
          %s1045 = scalar_select %p1044, %s86, 1
          %s1046 = scalar_lea.vmem %s61, %s1045
        $region140: #{tpu_custom_call.1} parent=99 // pred_fallthru
          _
        // Predicated region
        $region141: #{tpu_custom_call.1} parent=99 // pred_check
          %p1047 = pneg %p811
        $region142: #{tpu_custom_call.1} parent=99 // pred_check_branch
          %1049 = sbr.rel (%p1047) target = $region144
        $region143: #{tpu_custom_call.1} parent=99 // pred_region
          %p1050 = scmp.lt.s32.totalorder %s86, 1
          %s1051 = scalar_select %p1050, %s86, 1
          %s1052 = smul.addr %s1051, 8
          %s1053 = smul.addr %s1052, 4
          %s1054 = scalar_lea.vmem %s63, %s1053
        $region144: #{tpu_custom_call.1} parent=99 // pred_fallthru
          _
        // Predicated region
        $region145: #{tpu_custom_call.1} parent=99 // pred_check
          %p1055 = pneg %p837
        $region146: #{tpu_custom_call.1} parent=99 // pred_check_branch
          %1057 = sbr.rel (%p1055) target = $region148
        $region147: #{tpu_custom_call.1} parent=99 // pred_region
          %p1058 = scmp.lt.s32.totalorder %s86, 1
          %s1059 = scalar_select %p1058, %s86, 1
          %s1060 = scalar_lea.vmem %s65, %s1059
        $region148: #{tpu_custom_call.1} parent=99 // pred_fallthru
          _
        // Predicated region
        $region149: #{tpu_custom_call.1} parent=99 // pred_check
          %p1061 = pneg %p863
        $region150: #{tpu_custom_call.1} parent=99 // pred_check_branch
          %1063 = sbr.rel (%p1061) target = $region152
        $region151: #{tpu_custom_call.1} parent=99 // pred_region
          %p1064 = scmp.lt.s32.totalorder %s86, 1
          %s1065 = scalar_select %p1064, %s86, 1
          %s1066 = scalar_lea.vmem %s67, %s1065
        $region152: #{tpu_custom_call.1} parent=99 // pred_fallthru
          _
      $region100: #{tpu_custom_call.1} parent=5 // pred_fallthru
        _
      %p1067 = scmp.le.s32.totalorder 1, %s78
      %p1068 = scmp.lt.s32.totalorder %s78, 5
      %p1069 = pnand %p1067, %p1068
      %p1070 = pneg %p1069
      // Predicated region
      $region153: #{tpu_custom_call.1} parent=5 // pred_check
        _
      $region154: #{tpu_custom_call.1} parent=5 // pred_check_branch
        %1072 = sbr.rel (%p1069) target = $region156
      $region155: #{tpu_custom_call.1} parent=5 // pred_region
        %s1073 = ssub.s32 %s78, 1
        %p1074 = scmp.lt.s32.totalorder %s87, 1
        %s1075 = scalar_select %p1074, %s87, 1
        %s1076 = smul.addr %s1075, 8
        %s1077 = scalar_lea.vmem %s1, %s1076
        %p1078 = pneg %p116
        %p1079 = pneg %p113
        %p1080 = scmp.lt.s32.totalorder %s87, 1
        %s1081 = scalar_select %p1080, %s87, 1
        %s1082 = smul.addr %s1081, 8
        %s1083 = scalar_lea.vmem %s3, %s1082
        %p1084 = pneg %p142
        %p1085 = pneg %p139
        %p1086 = scmp.lt.s32.totalorder %s87, 1
        %s1087 = scalar_select %p1086, %s87, 1
        %s1088 = smul.addr %s1087, 8
        %s1089 = scalar_lea.vmem %s5, %s1088
        %p1090 = pneg %p168
        %p1091 = pneg %p165
        %p1092 = pneg %p189
        %p1093 = pneg %p186
        %p1094 = scmp.lt.s32.totalorder %s87, 1
        %s1095 = scalar_select %p1094, %s87, 1
        %s1096 = scalar_lea.vmem %s9, %s1095
        %p1097 = pneg %p215
        %p1098 = pneg %p212
        %p1099 = pneg %p236
        %p1100 = pneg %p233
        %p1101 = pneg %p257
        %p1102 = pneg %p254
        %p1103 = pneg %p278
        %p1104 = pneg %p275
        %p1105 = pneg %p299
        %p1106 = pneg %p296
        %p1107 = pneg %p320
        %p1108 = pneg %p317
        %p1109 = pneg %p341
        %p1110 = pneg %p338
        %p1111 = pneg %p362
        %p1112 = pneg %p359
        %p1113 = pneg %p383
        %p1114 = pneg %p380
        %p1115 = pneg %p404
        %p1116 = pneg %p401
        %p1117 = pneg %p425
        %p1118 = pneg %p422
        %p1119 = pneg %p446
        %p1120 = pneg %p443
        %p1121 = pneg %p467
        %p1122 = pneg %p464
        %p1123 = pneg %p488
        %p1124 = pneg %p485
        %p1125 = pneg %p509
        %p1126 = pneg %p506
        %p1127 = pneg %p530
        %p1128 = pneg %p527
        %p1129 = pneg %p551
        %p1130 = pneg %p548
        %p1131 = pneg %p572
        %p1132 = pneg %p569
        %p1133 = pneg %p593
        %p1134 = pneg %p590
        %p1135 = pneg %p614
        %p1136 = pneg %p611
        %p1137 = pneg %p635
        %p1138 = pneg %p632
        %p1139 = scmp.lt.s32.totalorder %s88, 1
        %s1140 = scalar_select %p1139, %s88, 1
        %s1141 = smul.addr %s1140, 48
        %s1142 = smul.addr %s1141, 4
        %s1143 = scalar_lea.vmem %s51, %s1142
        %p1144 = pneg %p661
        %p1145 = pneg %p658
        %p1146 = scmp.lt.s32.totalorder %s88, 1
        %s1147 = scalar_select %p1146, %s88, 1
        %s1148 = smul.addr %s1147, 12
        %s1149 = scalar_lea.vmem %s53, %s1148
        %p1150 = pneg %p687
        %p1151 = pneg %p684
        %p1152 = scmp.lt.s32.totalorder %s88, 1
        %s1153 = scalar_select %p1152, %s88, 1
        %s1154 = smul.addr %s1153, 4
        %s1155 = smul.addr %s1154, 4
        %s1156 = scalar_lea.vmem %s55, %s1155
        %p1157 = pneg %p713
        %p1158 = pneg %p710
        %p1159 = scmp.lt.s32.totalorder %s88, 1
        %s1160 = scalar_select %p1159, %s88, 1
        %s1161 = scalar_lea.vmem %s57, %s1160
        %p1162 = pneg %p739
        %p1163 = pneg %p736
        %p1164 = scmp.lt.s32.totalorder %s88, 1
        %s1165 = scalar_select %p1164, %s88, 1
        %s1166 = smul.addr %s1165, 4
        %s1167 = smul.addr %s1166, 4
        %s1168 = scalar_lea.vmem %s59, %s1167
        %p1169 = pneg %p765
        %p1170 = pneg %p762
        %p1171 = scmp.lt.s32.totalorder %s88, 1
        %s1172 = scalar_select %p1171, %s88, 1
        %s1173 = scalar_lea.vmem %s61, %s1172
        %p1174 = pneg %p791
        %p1175 = pneg %p788
        %p1176 = scmp.lt.s32.totalorder %s88, 1
        %s1177 = scalar_select %p1176, %s88, 1
        %s1178 = smul.addr %s1177, 8
        %s1179 = smul.addr %s1178, 4
        %s1180 = scalar_lea.vmem %s63, %s1179
        %p1181 = pneg %p817
        %p1182 = pneg %p814
        %p1183 = scmp.lt.s32.totalorder %s88, 1
        %s1184 = scalar_select %p1183, %s88, 1
        %s1185 = scalar_lea.vmem %s65, %s1184
        %p1186 = pneg %p843
        %p1187 = pneg %p840
        %p1188 = scmp.lt.s32.totalorder %s88, 1
        %s1189 = scalar_select %p1188, %s88, 1
        %s1190 = scalar_lea.vmem %s67, %s1189
        %p1191 = pneg %p869
        %p1192 = pneg %p866
        %p1193 = pneg %p895
        %p1194 = pneg %p892
        %s1195 = sand.u32 %s882, 1
        %s1196 = scalar_lea.sflag [#allocation5], %s1195
        %s1197 = sand.u32 %s882, 1
        %s1198 = smul.addr %s1197, 8
        %s1199 = scalar_lea.vmem [#allocation4], %s1198
        %p1200 = scmp.lt.s32.totalorder %s87, 1
        %s1201 = scalar_select %p1200, %s87, 1
        %s1202 = smul.addr %s1201, 8
        %s1203 = scalar_lea.vmem %s1, %s1202
        %p1204 = scmp.lt.s32.totalorder %s87, 1
        %s1205 = scalar_select %p1204, %s87, 1
        %s1206 = smul.addr %s1205, 8
        %s1207 = scalar_lea.vmem %s3, %s1206
        %p1208 = scmp.lt.s32.totalorder %s87, 1
        %s1209 = scalar_select %p1208, %s87, 1
        %s1210 = smul.addr %s1209, 8
        %s1211 = scalar_lea.vmem %s5, %s1210
        %p1212 = scmp.lt.s32.totalorder %s87, 1
        %s1213 = scalar_select %p1212, %s87, 1
        %s1214 = scalar_lea.vmem %s9, %s1213
        %p1215 = scmp.lt.s32.totalorder %s88, 1
        %s1216 = scalar_select %p1215, %s88, 1
        %s1217 = smul.addr %s1216, 48
        %s1218 = smul.addr %s1217, 4
        %s1219 = scalar_lea.vmem %s51, %s1218
        %p1220 = scmp.lt.s32.totalorder %s88, 1
        %s1221 = scalar_select %p1220, %s88, 1
        %s1222 = smul.addr %s1221, 12
        %s1223 = scalar_lea.vmem %s53, %s1222
        %p1224 = scmp.lt.s32.totalorder %s88, 1
        %s1225 = scalar_select %p1224, %s88, 1
        %s1226 = smul.addr %s1225, 4
        %s1227 = smul.addr %s1226, 4
        %s1228 = scalar_lea.vmem %s55, %s1227
        %p1229 = scmp.lt.s32.totalorder %s88, 1
        %s1230 = scalar_select %p1229, %s88, 1
        %s1231 = scalar_lea.vmem %s57, %s1230
        %p1232 = scmp.lt.s32.totalorder %s88, 1
        %s1233 = scalar_select %p1232, %s88, 1
        %s1234 = smul.addr %s1233, 4
        %s1235 = smul.addr %s1234, 4
        %s1236 = scalar_lea.vmem %s59, %s1235
        %p1237 = scmp.lt.s32.totalorder %s88, 1
        %s1238 = scalar_select %p1237, %s88, 1
        %s1239 = scalar_lea.vmem %s61, %s1238
        %p1240 = scmp.lt.s32.totalorder %s88, 1
        %s1241 = scalar_select %p1240, %s88, 1
        %s1242 = smul.addr %s1241, 8
        %s1243 = smul.addr %s1242, 4
        %s1244 = scalar_lea.vmem %s63, %s1243
        %p1245 = scmp.lt.s32.totalorder %s88, 1
        %s1246 = scalar_select %p1245, %s88, 1
        %s1247 = scalar_lea.vmem %s65, %s1246
        %p1248 = scmp.lt.s32.totalorder %s88, 1
        %s1249 = scalar_select %p1248, %s88, 1
        %s1250 = scalar_lea.vmem %s67, %s1249
        %p1252 = scmp.eq.s32.totalorder %s88, 0
        // Predicated region
        $region157: #{tpu_custom_call.1} parent=155 // pred_check
          %p1253 = pneg %p1252
        $region158: #{tpu_custom_call.1} parent=155 // pred_check_branch
          %1255 = sbr.rel (%p1253) target = $region160
        $region159: #{tpu_custom_call.1} parent=155 // pred_region
          %v1256 = vld [vmem:[%s1211] sm:$0xff]
          %v1257 = vpack.c.bf16 %v1256, %v1256
          %v1258 = vld [vmem:[%s21] sm:$0x1]
          %v1259 = vld [vmem:[%s23] sm:$0x1]
          %v1261 = vlaneseq
          %v1262 = vshrl.u32 %v1261, 7
          %v1263 = vsub.s32 0, %v1262
          %v1264 = vrot.slane %v1259, %v1263
          %vm1266 = vcmask 15360
          %v1268 = vsel %vm1266, %v1257, 0
          %vm1270 = vcmask 1040384
          %v1272 = vsel %vm1270, %v1258, 0
          %1274 = vmatprep.subr.bf16.mxu0 0
          %1275 = vmatpush1.bf16.msra.mxu0 %v1272
          %1276 = vmatprep.subr.bf16.mxu0 0
          %1277 = vmatpush1.bf16.msra.mxu0 0
          %1278 = vmatprep.subr.bf16.mxu0 0
          %1279 = vmatpush1.bf16.msra.mxu0 0
          %1280 = vmatprep.subr.bf16.mxu0 0
          %1281 = vmatpush1.bf16.msra.mxu0 0
          %1282 = vmatprep.subr.bf16.mxu0 0
          %1283 = vmatpush1.bf16.msra.mxu0 0
          %1284 = vmatprep.subr.bf16.mxu0 0
          %1285 = vmatpush1.bf16.msra.mxu0 0
          %1286 = vmatprep.subr.bf16.mxu0 0
          %1287 = vmatpush1.bf16.msra.mxu0 0
          %1288 = vmatprep.subr.bf16.mxu0 0
          %1289 = vmatpush1.bf16.msra.mxu0 0
          %1290 = vmatprep.subr.bf16.mxu0 0
          %1291 = vmatpush1.bf16.msra.mxu0 0
          %1292 = vmatprep.subr.bf16.mxu0 0
          %1293 = vmatpush1.bf16.msra.mxu0 0
          %1294 = vmatprep.subr.bf16.mxu0 0
          %1295 = vmatpush1.bf16.msra.mxu0 0
          %1296 = vmatprep.subr.bf16.mxu0 0
          %1297 = vmatpush1.bf16.msra.mxu0 0
          %1298 = vmatprep.subr.bf16.mxu0 0
          %1299 = vmatpush1.bf16.msra.mxu0 0
          %1300 = vmatprep.subr.bf16.mxu0 0
          %1301 = vmatpush1.bf16.msra.mxu0 0
          %1302 = vmatprep.subr.bf16.mxu0 0
          %1303 = vmatpush1.bf16.msra.mxu0 0
          %1304 = vmatprep.subr.bf16.mxu0 0
          %1305 = vmatpush1.bf16.msra.mxu0 0
          %1306 = vmatprep.mubr.bf16.mxu0 0
          %1307 = vmatmul.mubr.bf16.gmra.mrb[0].mxu0 %v1268
          %v1308 = vpop.f32.mrb[0].mxu0
          %v1309 = vadd.f32 %v1264, %v1308
          %v1310 = vpop.f32.mrb[0].mxu0
          %v1311 = vpop.f32.mrb[0].mxu0
          %v1312 = vpop.f32.mrb[0].mxu0
          %1313 = vdwg.mxu0
          %v1314 = vld [vmem:[%s49] sm:$0x1]
          %vm1315 = vcmp.gt.f32.partialorder %v1309, 0.0
          %v1317 = vlaneseq
          %v1318 = vshrl.u32 %v1317, 7
          %v1319 = vsub.s32 0, %v1318
          %v1320 = vrot.slane %v1314, %v1319
          %1321 = vset.pattern.permute.xlu0 2
          %1322 = vperm.xlu0 %1321, %v1320
          %v1323 = vpop.permute.xlu0 %1322
          %v1325 = vmul.f32 %v1323, %v1309
          %v1326 = vsel %vm1315, %v1309, %v1325
          %v1327 = vpack.c.bf16 %v1326, %v1326
          %v1328 = vld [vmem:[%s25] sm:$0xf]
          %v1329 = vld [vmem:[%s25 + $0x4] sm:$0xf]
          %v1330 = vld [vmem:[%s25 + $0x8] sm:$0xf]
          %v1331 = vld [vmem:[%s25 + $0xc] sm:$0xf]
          %v1332 = vld [vmem:[%s27] sm:$0x1]
          %v1334 = vlaneseq
          %v1335 = vshrl.u32 %v1334, 7
          %v1336 = vsub.s32 0, %v1335
          %v1337 = vrot.slane %v1332, %v1336
          %v1343 = vunpack.c.l.b16 %v1328
          %v1344 = vunpack.c.l.b16 %v1329
          %v1345 = vunpack.c.l.b16 %v1330
          %v1346 = vunpack.c.l.b16 %v1331
          %v1347 = vpack.c.b16 %v1344, %v1343
          %v1348 = vpack.c.b16 %v1346, %v1345
          %vm1351 = vcmask 261120
          %v1353 = vsel %vm1351, %v1327, 0
          %1355 = vmatprep.subr.bf16.mxu0 0
          %1356 = vmatpush1.bf16.msra.mxu0 %v1347
          %1357 = vmatprep.subr.bf16.mxu0 0
          %1358 = vmatpush1.bf16.msra.mxu0 %v1348
          %1359 = vmatprep.subr.bf16.mxu0 0
          %1360 = vmatpush1.bf16.msra.mxu0 0
          %1361 = vmatprep.subr.bf16.mxu0 0
          %1362 = vmatpush1.bf16.msra.mxu0 0
          %1363 = vmatprep.subr.bf16.mxu0 0
          %1364 = vmatpush1.bf16.msra.mxu0 0
          %1365 = vmatprep.subr.bf16.mxu0 0
          %1366 = vmatpush1.bf16.msra.mxu0 0
          %1367 = vmatprep.subr.bf16.mxu0 0
          %1368 = vmatpush1.bf16.msra.mxu0 0
          %1369 = vmatprep.subr.bf16.mxu0 0
          %1370 = vmatpush1.bf16.msra.mxu0 0
          %1371 = vmatprep.subr.bf16.mxu0 0
          %1372 = vmatpush1.bf16.msra.mxu0 0
          %1373 = vmatprep.subr.bf16.mxu0 0
          %1374 = vmatpush1.bf16.msra.mxu0 0
          %1375 = vmatprep.subr.bf16.mxu0 0
          %1376 = vmatpush1.bf16.msra.mxu0 0
          %1377 = vmatprep.subr.bf16.mxu0 0
          %1378 = vmatpush1.bf16.msra.mxu0 0
          %1379 = vmatprep.subr.bf16.mxu0 0
          %1380 = vmatpush1.bf16.msra.mxu0 0
          %1381 = vmatprep.subr.bf16.mxu0 0
          %1382 = vmatpush1.bf16.msra.mxu0 0
          %1383 = vmatprep.subr.bf16.mxu0 0
          %1384 = vmatpush1.bf16.msra.mxu0 0
          %1385 = vmatprep.subr.bf16.mxu0 0
          %1386 = vmatpush1.bf16.msra.mxu0 0
          %1387 = vmatprep.mubr.bf16.mxu0 0
          %1388 = vmatmul.mubr.bf16.gmra.mrb[0].mxu0 %v1353
          %v1389 = vpop.f32.mrb[0].mxu0
          %v1390 = vadd.f32 %v1337, %v1389
          %v1391 = vpop.f32.mrb[0].mxu0
          %v1392 = vpop.f32.mrb[0].mxu0
          %v1393 = vpop.f32.mrb[0].mxu0
          %1394 = vdwg.mxu0
          %v1395 = vld [vmem:[%s1203] sm:$0xff]
          %v1396 = vpack.c.bf16 %v1395, %v1395
          %v1397 = vld [vmem:[%s11] sm:$0xf]
          %v1398 = vld [vmem:[%s1207] sm:$0xff]
          %v1399 = vpack.c.bf16 %v1398, %v1398
          %v1400 = vld [vmem:[%s13] sm:$0xf]
          %vm1401 = vcmask 64512
          %v1403 = vsel %vm1401, %v1399, 0
          %vm1405 = vcmask 1043456
          %v1407 = vsel %vm1405, %v1400, 0
          %1409 = vmatprep.subr.bf16.mxu0 0
          %1410 = vmatpush1.bf16.msra.mxu0 %v1407
          %1411 = vmatprep.subr.bf16.mxu0 0
          %1412 = vmatpush1.bf16.msra.mxu0 0
          %1413 = vmatprep.subr.bf16.mxu0 0
          %1414 = vmatpush1.bf16.msra.mxu0 0
          %1415 = vmatprep.subr.bf16.mxu0 0
          %1416 = vmatpush1.bf16.msra.mxu0 0
          %1417 = vmatprep.subr.bf16.mxu0 0
          %1418 = vmatpush1.bf16.msra.mxu0 0
          %1419 = vmatprep.subr.bf16.mxu0 0
          %1420 = vmatpush1.bf16.msra.mxu0 0
          %1421 = vmatprep.subr.bf16.mxu0 0
          %1422 = vmatpush1.bf16.msra.mxu0 0
          %1423 = vmatprep.subr.bf16.mxu0 0
          %1424 = vmatpush1.bf16.msra.mxu0 0
          %1425 = vmatprep.subr.bf16.mxu0 0
          %1426 = vmatpush1.bf16.msra.mxu0 0
          %1427 = vmatprep.subr.bf16.mxu0 0
          %1428 = vmatpush1.bf16.msra.mxu0 0
          %1429 = vmatprep.subr.bf16.mxu0 0
          %1430 = vmatpush1.bf16.msra.mxu0 0
          %1431 = vmatprep.subr.bf16.mxu0 0
          %1432 = vmatpush1.bf16.msra.mxu0 0
          %1433 = vmatprep.subr.bf16.mxu0 0
          %1434 = vmatpush1.bf16.msra.mxu0 0
          %1435 = vmatprep.subr.bf16.mxu0 0
          %1436 = vmatpush1.bf16.msra.mxu0 0
          %1437 = vmatprep.subr.bf16.mxu0 0
          %1438 = vmatpush1.bf16.msra.mxu0 0
          %1439 = vmatprep.subr.bf16.mxu0 0
          %1440 = vmatpush1.bf16.msra.mxu0 0
          %1441 = vmatprep.mubr.bf16.mxu0 0
          %1442 = vmatmul.mubr.bf16.gmra.mrb[0].mxu0 %v1403
          %v1443 = vpop.f32.mrb[0].mxu0
          %v1444 = vadd.f32 0.0, %v1443
          %v1445 = vpop.f32.mrb[0].mxu0
          %v1446 = vpop.f32.mrb[0].mxu0
          %v1447 = vpop.f32.mrb[0].mxu0
          %1448 = vdwg.mxu0
          %v1450 = vsel %vm1401, %v1396, 0
          %v1453 = vsel %vm1405, %v1397, 0
          %1455 = vmatprep.subr.bf16.mxu0 0
          %1456 = vmatpush1.bf16.msra.mxu0 %v1453
          %1457 = vmatprep.subr.bf16.mxu0 0
          %1458 = vmatpush1.bf16.msra.mxu0 0
          %1459 = vmatprep.subr.bf16.mxu0 0
          %1460 = vmatpush1.bf16.msra.mxu0 0
          %1461 = vmatprep.subr.bf16.mxu0 0
          %1462 = vmatpush1.bf16.msra.mxu0 0
          %1463 = vmatprep.subr.bf16.mxu0 0
          %1464 = vmatpush1.bf16.msra.mxu0 0
          %1465 = vmatprep.subr.bf16.mxu0 0
          %1466 = vmatpush1.bf16.msra.mxu0 0
          %1467 = vmatprep.subr.bf16.mxu0 0
          %1468 = vmatpush1.bf16.msra.mxu0 0
          %1469 = vmatprep.subr.bf16.mxu0 0
          %1470 = vmatpush1.bf16.msra.mxu0 0
          %1471 = vmatprep.subr.bf16.mxu0 0
          %1472 = vmatpush1.bf16.msra.mxu0 0
          %1473 = vmatprep.subr.bf16.mxu0 0
          %1474 = vmatpush1.bf16.msra.mxu0 0
          %1475 = vmatprep.subr.bf16.mxu0 0
          %1476 = vmatpush1.bf16.msra.mxu0 0
          %1477 = vmatprep.subr.bf16.mxu0 0
          %1478 = vmatpush1.bf16.msra.mxu0 0
          %1479 = vmatprep.subr.bf16.mxu0 0
          %1480 = vmatpush1.bf16.msra.mxu0 0
          %1481 = vmatprep.subr.bf16.mxu0 0
          %1482 = vmatpush1.bf16.msra.mxu0 0
          %1483 = vmatprep.subr.bf16.mxu0 0
          %1484 = vmatpush1.bf16.msra.mxu0 0
          %1485 = vmatprep.subr.bf16.mxu0 0
          %1486 = vmatpush1.bf16.msra.mxu0 0
          %1487 = vmatprep.mubr.bf16.mxu0 0
          %1488 = vmatmul.mubr.bf16.gmra.mrb[0].mxu0 %v1450
          %v1489 = vpop.f32.mrb[0].mxu0
          %v1490 = vadd.f32 %v1444, %v1489
          %v1491 = vpop.f32.mrb[0].mxu0
          %v1492 = vpop.f32.mrb[0].mxu0
          %v1493 = vpop.f32.mrb[0].mxu0
          %1494 = vdwg.mxu0
          %v1495 = vld [vmem:[%s15] sm:$0x1]
          %v1497 = vlaneseq
          %v1498 = vshrl.u32 %v1497, 7
          %v1499 = vsub.s32 0, %v1498
          %v1500 = vrot.slane %v1495, %v1499
          %v1502 = vadd.f32 %v1490, %v1500
          %vm1503 = vcmp.gt.f32.partialorder %v1502, 0.0
          %1504 = vset.pattern.permute.xlu0 0
          %1505 = vperm.xlu0 %1504, %v1320
          %v1506 = vpop.permute.xlu0 %1505
          %v1508 = vmul.f32 %v1506, %v1502
          %v1509 = vsel %vm1503, %v1502, %v1508
          %v1510 = vpack.c.bf16 %v1509, %v1509
          %v1511 = vld [vmem:[%s17] sm:$0xf]
          %v1512 = vld [vmem:[%s17 + $0x4] sm:$0xf]
          %v1513 = vld [vmem:[%s17 + $0x8] sm:$0xf]
          %v1514 = vld [vmem:[%s17 + $0xc] sm:$0xf]
          %v1515 = vld [vmem:[%s19] sm:$0x1]
          %v1517 = vlaneseq
          %v1518 = vshrl.u32 %v1517, 7
          %v1519 = vsub.s32 0, %v1518
          %v1520 = vrot.slane %v1515, %v1519
          %v1526 = vunpack.c.l.b16 %v1511
          %v1527 = vunpack.c.l.b16 %v1512
          %v1528 = vunpack.c.l.b16 %v1513
          %v1529 = vunpack.c.l.b16 %v1514
          %v1530 = vpack.c.b16 %v1527, %v1526
          %v1531 = vpack.c.b16 %v1529, %v1528
          %v1535 = vsel %vm1351, %v1510, 0
          %1537 = vmatprep.subr.bf16.mxu0 0
          %1538 = vmatpush1.bf16.msra.mxu0 %v1530
          %1539 = vmatprep.subr.bf16.mxu0 0
          %1540 = vmatpush1.bf16.msra.mxu0 %v1531
          %1541 = vmatprep.subr.bf16.mxu0 0
          %1542 = vmatpush1.bf16.msra.mxu0 0
          %1543 = vmatprep.subr.bf16.mxu0 0
          %1544 = vmatpush1.bf16.msra.mxu0 0
          %1545 = vmatprep.subr.bf16.mxu0 0
          %1546 = vmatpush1.bf16.msra.mxu0 0
          %1547 = vmatprep.subr.bf16.mxu0 0
          %1548 = vmatpush1.bf16.msra.mxu0 0
          %1549 = vmatprep.subr.bf16.mxu0 0
          %1550 = vmatpush1.bf16.msra.mxu0 0
          %1551 = vmatprep.subr.bf16.mxu0 0
          %1552 = vmatpush1.bf16.msra.mxu0 0
          %1553 = vmatprep.subr.bf16.mxu0 0
          %1554 = vmatpush1.bf16.msra.mxu0 0
          %1555 = vmatprep.subr.bf16.mxu0 0
          %1556 = vmatpush1.bf16.msra.mxu0 0
          %1557 = vmatprep.subr.bf16.mxu0 0
          %1558 = vmatpush1.bf16.msra.mxu0 0
          %1559 = vmatprep.subr.bf16.mxu0 0
          %1560 = vmatpush1.bf16.msra.mxu0 0
          %1561 = vmatprep.subr.bf16.mxu0 0
          %1562 = vmatpush1.bf16.msra.mxu0 0
          %1563 = vmatprep.subr.bf16.mxu0 0
          %1564 = vmatpush1.bf16.msra.mxu0 0
          %1565 = vmatprep.subr.bf16.mxu0 0
          %1566 = vmatpush1.bf16.msra.mxu0 0
          %1567 = vmatprep.subr.bf16.mxu0 0
          %1568 = vmatpush1.bf16.msra.mxu0 0
          %1569 = vmatprep.mubr.bf16.mxu0 0
          %1570 = vmatmul.mubr.bf16.gmra.mrb[0].mxu0 %v1535
          %v1571 = vpop.f32.mrb[0].mxu0
          %v1572 = vadd.f32 %v1520, %v1571
          %v1573 = vpop.f32.mrb[0].mxu0
          %v1574 = vpop.f32.mrb[0].mxu0
          %v1575 = vpop.f32.mrb[0].mxu0
          %1576 = vdwg.mxu0
          %vm1577 = vcmp.gt.f32.partialorder %v1572, 0.0
          %1578 = vset.pattern.permute.xlu0 1
          %1579 = vperm.xlu0 %1578, %v1320
          %v1580 = vpop.permute.xlu0 %1579
          %v1582 = vmul.f32 %v1580, %v1572
          %v1583 = vsel %vm1577, %v1572, %v1582
          %v1584 = vadd.f32 %v1583, %v1390
          %1585 = vst.msk [vmem:[#allocation2] sm:$0xff] %vm1351, %v1584
          %v1586 = vld [vmem:[%s7] sm:$0xff]
          %v1587 = vld [vmem:[%s7 + $0x8] sm:$0xff]
          %v1588 = vld [vmem:[%s7 + $0x10] sm:$0xff]
          %v1589 = vld [vmem:[%s7 + $0x18] sm:$0xff]
          %v1590 = vld [vmem:[%s7 + $0x20] sm:$0xff]
          %v1591 = vld [vmem:[%s7 + $0x28] sm:$0xff]
          %v1592 = vld [vmem:[%s7 + $0x30] sm:$0xff]
          %v1593 = vld [vmem:[%s7 + $0x38] sm:$0xff]
          %v1594 = vld [vmem:[%s7 + $0x40] sm:$0xff]
          %v1595 = vld [vmem:[%s7 + $0x48] sm:$0xff]
          %v1596 = vld [vmem:[%s7 + $0x50] sm:$0xff]
          %v1597 = vld [vmem:[%s7 + $0x58] sm:$0xff]
          %v1598 = vld [vmem:[%s7 + $0x60] sm:$0xff]
          %v1599 = vld [vmem:[%s7 + $0x68] sm:$0xff]
          %v1600 = vld [vmem:[%s7 + $0x70] sm:$0xff]
          %v1601 = vld [vmem:[%s7 + $0x78] sm:$0xff]
          %v1602 = vld [vmem:[%s29] sm:$0x1]
          %v1603 = vunpack.c.l.bf16 %v1602
          %1605 = vset.pattern.permute.xlu0 0
          %1606 = vperm.xlu0 %1605, %v1586
          %v1607 = vpop.permute.xlu0 %1606
          %1610 = vset.pattern.permute.xlu0 0
          %1611 = vperm.xlu0 %1610, %v1587
          %v1612 = vpop.permute.xlu0 %1611
          %1615 = vset.pattern.permute.xlu0 0
          %1616 = vperm.xlu0 %1615, %v1588
          %v1617 = vpop.permute.xlu0 %1616
          %1620 = vset.pattern.permute.xlu0 0
          %1621 = vperm.xlu0 %1620, %v1589
          %v1622 = vpop.permute.xlu0 %1621
          %1625 = vset.pattern.permute.xlu0 0
          %1626 = vperm.xlu0 %1625, %v1590
          %v1627 = vpop.permute.xlu0 %1626
          %1630 = vset.pattern.permute.xlu0 0
          %1631 = vperm.xlu0 %1630, %v1591
          %v1632 = vpop.permute.xlu0 %1631
          %1635 = vset.pattern.permute.xlu0 0
          %1636 = vperm.xlu0 %1635, %v1592
          %v1637 = vpop.permute.xlu0 %1636
          %1640 = vset.pattern.permute.xlu0 0
          %1641 = vperm.xlu0 %1640, %v1593
          %v1642 = vpop.permute.xlu0 %1641
          %1645 = vset.pattern.permute.xlu0 0
          %1646 = vperm.xlu0 %1645, %v1594
          %v1647 = vpop.permute.xlu0 %1646
          %1650 = vset.pattern.permute.xlu0 0
          %1651 = vperm.xlu0 %1650, %v1595
          %v1652 = vpop.permute.xlu0 %1651
          %1655 = vset.pattern.permute.xlu0 0
          %1656 = vperm.xlu0 %1655, %v1596
          %v1657 = vpop.permute.xlu0 %1656
          %1660 = vset.pattern.permute.xlu0 0
          %1661 = vperm.xlu0 %1660, %v1597
          %v1662 = vpop.permute.xlu0 %1661
          %1665 = vset.pattern.permute.xlu0 0
          %1666 = vperm.xlu0 %1665, %v1598
          %v1667 = vpop.permute.xlu0 %1666
          %1670 = vset.pattern.permute.xlu0 0
          %1671 = vperm.xlu0 %1670, %v1599
          %v1672 = vpop.permute.xlu0 %1671
          %1675 = vset.pattern.permute.xlu0 0
          %1676 = vperm.xlu0 %1675, %v1600
          %v1677 = vpop.permute.xlu0 %1676
          %1680 = vset.pattern.permute.xlu0 0
          %1681 = vperm.xlu0 %1680, %v1601
          %v1682 = vpop.permute.xlu0 %1681
          %v1684 = vlaneseq
          %v1685 = vshrl.u32 %v1684, 7
          %v1686 = vsub.s32 0, %v1685
          %v1687 = vrot.slane %v1603, %v1686
          %v1688 = vmul.f32 %v1607, %v1687
          %v1689 = vmul.f32 %v1612, %v1687
          %v1690 = vmul.f32 %v1617, %v1687
          %v1691 = vmul.f32 %v1622, %v1687
          %v1692 = vmul.f32 %v1627, %v1687
          %v1693 = vmul.f32 %v1632, %v1687
          %v1694 = vmul.f32 %v1637, %v1687
          %v1695 = vmul.f32 %v1642, %v1687
          %v1696 = vmul.f32 %v1647, %v1687
          %v1697 = vmul.f32 %v1652, %v1687
          %v1698 = vmul.f32 %v1657, %v1687
          %v1699 = vmul.f32 %v1662, %v1687
          %v1700 = vmul.f32 %v1667, %v1687
          %v1701 = vmul.f32 %v1672, %v1687
          %v1702 = vmul.f32 %v1677, %v1687
          %v1703 = vmul.f32 %v1682, %v1687
          %v1704 = vld [vmem:[%s31] sm:$0x1]
          %v1706 = vlaneseq
          %v1707 = vshrl.u32 %v1706, 7
          %v1708 = vsub.s32 0, %v1707
          %v1709 = vrot.slane %v1704, %v1708
          %v1711 = vadd.f32 %v1688, %v1709
          %v1712 = vadd.f32 %v1689, %v1709
          %v1713 = vadd.f32 %v1690, %v1709
          %v1714 = vadd.f32 %v1691, %v1709
          %v1715 = vadd.f32 %v1692, %v1709
          %v1716 = vadd.f32 %v1693, %v1709
          %v1717 = vadd.f32 %v1694, %v1709
          %v1718 = vadd.f32 %v1695, %v1709
          %v1719 = vadd.f32 %v1696, %v1709
          %v1720 = vadd.f32 %v1697, %v1709
          %v1721 = vadd.f32 %v1698, %v1709
          %v1722 = vadd.f32 %v1699, %v1709
          %v1723 = vadd.f32 %v1700, %v1709
          %v1724 = vadd.f32 %v1701, %v1709
          %v1725 = vadd.f32 %v1702, %v1709
          %v1726 = vadd.f32 %v1703, %v1709
          %v1727 = vld [vmem:[%s49] sm:$0x1]
          %vm1728 = vcmp.gt.f32.partialorder %v1711, 0.0
          %vm1729 = vcmp.gt.f32.partialorder %v1712, 0.0
          %vm1730 = vcmp.gt.f32.partialorder %v1713, 0.0
          %vm1731 = vcmp.gt.f32.partialorder %v1714, 0.0
          %vm1732 = vcmp.gt.f32.partialorder %v1715, 0.0
          %vm1733 = vcmp.gt.f32.partialorder %v1716, 0.0
          %vm1734 = vcmp.gt.f32.partialorder %v1717, 0.0
          %vm1735 = vcmp.gt.f32.partialorder %v1718, 0.0
          %vm1736 = vcmp.gt.f32.partialorder %v1719, 0.0
          %vm1737 = vcmp.gt.f32.partialorder %v1720, 0.0
          %vm1738 = vcmp.gt.f32.partialorder %v1721, 0.0
          %vm1739 = vcmp.gt.f32.partialorder %v1722, 0.0
          %vm1740 = vcmp.gt.f32.partialorder %v1723, 0.0
          %vm1741 = vcmp.gt.f32.partialorder %v1724, 0.0
          %vm1742 = vcmp.gt.f32.partialorder %v1725, 0.0
          %vm1743 = vcmp.gt.f32.partialorder %v1726, 0.0
          %v1745 = vlaneseq
          %v1746 = vshrl.u32 %v1745, 7
          %v1747 = vsub.s32 0, %v1746
          %v1748 = vrot.slane %v1727, %v1747
          %1749 = vset.pattern.permute.xlu0 3
          %1750 = vperm.xlu0 %1749, %v1748
          %v1751 = vpop.permute.xlu0 %1750
          %v1753 = vmul.f32 %v1751, %v1711
          %v1754 = vmul.f32 %v1751, %v1712
          %v1755 = vmul.f32 %v1751, %v1713
          %v1756 = vmul.f32 %v1751, %v1714
          %v1757 = vmul.f32 %v1751, %v1715
          %v1758 = vmul.f32 %v1751, %v1716
          %v1759 = vmul.f32 %v1751, %v1717
          %v1760 = vmul.f32 %v1751, %v1718
          %v1761 = vmul.f32 %v1751, %v1719
          %v1762 = vmul.f32 %v1751, %v1720
          %v1763 = vmul.f32 %v1751, %v1721
          %v1764 = vmul.f32 %v1751, %v1722
          %v1765 = vmul.f32 %v1751, %v1723
          %v1766 = vmul.f32 %v1751, %v1724
          %v1767 = vmul.f32 %v1751, %v1725
          %v1768 = vmul.f32 %v1751, %v1726
          %v1769 = vsel %vm1728, %v1711, %v1753
          %v1770 = vsel %vm1729, %v1712, %v1754
          %v1771 = vsel %vm1730, %v1713, %v1755
          %v1772 = vsel %vm1731, %v1714, %v1756
          %v1773 = vsel %vm1732, %v1715, %v1757
          %v1774 = vsel %vm1733, %v1716, %v1758
          %v1775 = vsel %vm1734, %v1717, %v1759
          %v1776 = vsel %vm1735, %v1718, %v1760
          %v1777 = vsel %vm1736, %v1719, %v1761
          %v1778 = vsel %vm1737, %v1720, %v1762
          %v1779 = vsel %vm1738, %v1721, %v1763
          %v1780 = vsel %vm1739, %v1722, %v1764
          %v1781 = vsel %vm1740, %v1723, %v1765
          %v1782 = vsel %vm1741, %v1724, %v1766
          %v1783 = vsel %vm1742, %v1725, %v1767
          %v1784 = vsel %vm1743, %v1726, %v1768
          %v1785 = vpack.c.bf16 %v1770, %v1769
          %v1786 = vpack.c.bf16 %v1772, %v1771
          %v1787 = vpack.c.bf16 %v1774, %v1773
          %v1788 = vpack.c.bf16 %v1776, %v1775
          %v1789 = vpack.c.bf16 %v1778, %v1777
          %v1790 = vpack.c.bf16 %v1780, %v1779
          %v1791 = vpack.c.bf16 %v1782, %v1781
          %v1792 = vpack.c.bf16 %v1784, %v1783
          %v1793 = vld [vmem:[%s33] sm:$0xf]
          %v1794 = vld [vmem:[%s33 + $0x4] sm:$0xf]
          %v1795 = vld [vmem:[%s33 + $0x8] sm:$0xf]
          %v1796 = vld [vmem:[%s33 + $0xc] sm:$0xf]
          %v1797 = vld [vmem:[%s35] sm:$0x1]
          %v1799 = vlaneseq
          %v1800 = vshrl.u32 %v1799, 7
          %v1801 = vsub.s32 0, %v1800
          %v1802 = vrot.slane %v1797, %v1801
          %v1808 = vunpack.c.l.b16 %v1793
          %v1809 = vunpack.c.l.b16 %v1794
          %v1810 = vunpack.c.l.b16 %v1795
          %v1811 = vunpack.c.l.b16 %v1796
          %v1812 = vpack.c.b16 %v1809, %v1808
          %v1813 = vpack.c.b16 %v1811, %v1810
          %v1817 = vsel %vm1351, %v1785, 0
          %v1820 = vsel %vm1351, %v1786, 0
          %v1823 = vsel %vm1351, %v1787, 0
          %v1826 = vsel %vm1351, %v1788, 0
          %v1829 = vsel %vm1351, %v1789, 0
          %v1832 = vsel %vm1351, %v1790, 0
          %v1835 = vsel %vm1351, %v1791, 0
          %v1838 = vsel %vm1351, %v1792, 0
          %1840 = vmatprep.subr.bf16.mxu0 0
          %1841 = vmatpush1.bf16.msra.mxu0 %v1812
          %1842 = vmatprep.subr.bf16.mxu0 0
          %1843 = vmatpush1.bf16.msra.mxu0 %v1813
          %1844 = vmatprep.subr.bf16.mxu0 0
          %1845 = vmatpush1.bf16.msra.mxu0 0
          %1846 = vmatprep.subr.bf16.mxu0 0
          %1847 = vmatpush1.bf16.msra.mxu0 0
          %1848 = vmatprep.subr.bf16.mxu0 0
          %1849 = vmatpush1.bf16.msra.mxu0 0
          %1850 = vmatprep.subr.bf16.mxu0 0
          %1851 = vmatpush1.bf16.msra.mxu0 0
          %1852 = vmatprep.subr.bf16.mxu0 0
          %1853 = vmatpush1.bf16.msra.mxu0 0
          %1854 = vmatprep.subr.bf16.mxu0 0
          %1855 = vmatpush1.bf16.msra.mxu0 0
          %1856 = vmatprep.subr.bf16.mxu0 0
          %1857 = vmatpush1.bf16.msra.mxu0 0
          %1858 = vmatprep.subr.bf16.mxu0 0
          %1859 = vmatpush1.bf16.msra.mxu0 0
          %1860 = vmatprep.subr.bf16.mxu0 0
          %1861 = vmatpush1.bf16.msra.mxu0 0
          %1862 = vmatprep.subr.bf16.mxu0 0
          %1863 = vmatpush1.bf16.msra.mxu0 0
          %1864 = vmatprep.subr.bf16.mxu0 0
          %1865 = vmatpush1.bf16.msra.mxu0 0
          %1866 = vmatprep.subr.bf16.mxu0 0
          %1867 = vmatpush1.bf16.msra.mxu0 0
          %1868 = vmatprep.subr.bf16.mxu0 0
          %1869 = vmatpush1.bf16.msra.mxu0 0
          %1870 = vmatprep.subr.bf16.mxu0 0
          %1871 = vmatpush1.bf16.msra.mxu0 0
          %1872 = vmatprep.mubr.bf16.mxu0 0
          %1873 = vmatmul.mubr.bf16.gmra.mrb[0].mxu0 %v1817
          %v1874 = vpop.f32.mrb[0].mxu0
          %v1875 = vadd.f32 %v1802, %v1874
          %v1876 = vpop.f32.mrb[0].mxu0
          %v1877 = vpop.f32.mrb[0].mxu0
          %v1878 = vadd.f32 %v1802, %v1877
          %v1879 = vpop.f32.mrb[0].mxu0
          %1880 = vmatprep.mubr.bf16.mxu0 0
          %1881 = vmatmul.mubr.bf16.gmra.mrb[0].mxu0 %v1820
          %v1882 = vpop.f32.mrb[0].mxu0
          %v1883 = vadd.f32 %v1802, %v1882
          %v1884 = vpop.f32.mrb[0].mxu0
          %v1885 = vpop.f32.mrb[0].mxu0
          %v1886 = vadd.f32 %v1802, %v1885
          %v1887 = vpop.f32.mrb[0].mxu0
          %1888 = vmatprep.mubr.bf16.mxu0 0
          %1889 = vmatmul.mubr.bf16.gmra.mrb[0].mxu0 %v1823
          %v1890 = vpop.f32.mrb[0].mxu0
          %v1891 = vadd.f32 %v1802, %v1890
          %v1892 = vpop.f32.mrb[0].mxu0
          %v1893 = vpop.f32.mrb[0].mxu0
          %v1894 = vadd.f32 %v1802, %v1893
          %v1895 = vpop.f32.mrb[0].mxu0
          %1896 = vmatprep.mubr.bf16.mxu0 0
          %1897 = vmatmul.mubr.bf16.gmra.mrb[0].mxu0 %v1826
          %v1898 = vpop.f32.mrb[0].mxu0
          %v1899 = vadd.f32 %v1802, %v1898
          %v1900 = vpop.f32.mrb[0].mxu0
          %v1901 = vpop.f32.mrb[0].mxu0
          %v1902 = vadd.f32 %v1802, %v1901
          %v1903 = vpop.f32.mrb[0].mxu0
          %1904 = vmatprep.mubr.bf16.mxu0 0
          %1905 = vmatmul.mubr.bf16.gmra.mrb[0].mxu0 %v1829
          %v1906 = vpop.f32.mrb[0].mxu0
          %v1907 = vadd.f32 %v1802, %v1906
          %v1908 = vpop.f32.mrb[0].mxu0
          %v1909 = vpop.f32.mrb[0].mxu0
          %v1910 = vadd.f32 %v1802, %v1909
          %v1911 = vpop.f32.mrb[0].mxu0
          %1912 = vmatprep.mubr.bf16.mxu0 0
          %1913 = vmatmul.mubr.bf16.gmra.mrb[0].mxu0 %v1832
          %v1914 = vpop.f32.mrb[0].mxu0
          %v1915 = vadd.f32 %v1802, %v1914
          %v1916 = vpop.f32.mrb[0].mxu0
          %v1917 = vpop.f32.mrb[0].mxu0
          %v1918 = vadd.f32 %v1802, %v1917
          %v1919 = vpop.f32.mrb[0].mxu0
          %1920 = vmatprep.mubr.bf16.mxu0 0
          %1921 = vmatmul.mubr.bf16.gmra.mrb[0].mxu0 %v1835
          %v1922 = vpop.f32.mrb[0].mxu0
          %v1923 = vadd.f32 %v1802, %v1922
          %v1924 = vpop.f32.mrb[0].mxu0
          %v1925 = vpop.f32.mrb[0].mxu0
          %v1926 = vadd.f32 %v1802, %v1925
          %v1927 = vpop.f32.mrb[0].mxu0
          %1928 = vmatprep.mubr.bf16.mxu0 0
          %1929 = vmatmul.mubr.bf16.gmra.mrb[0].mxu0 %v1838
          %v1930 = vpop.f32.mrb[0].mxu0
          %v1931 = vadd.f32 %v1802, %v1930
          %v1932 = vpop.f32.mrb[0].mxu0
          %v1933 = vpop.f32.mrb[0].mxu0
          %v1934 = vadd.f32 %v1802, %v1933
          %v1935 = vpop.f32.mrb[0].mxu0
          %1936 = vdwg.mxu0
          %v1937 = vpack.c.bf16 %v1878, %v1875
          %v1938 = vpack.c.bf16 %v1886, %v1883
          %v1939 = vpack.c.bf16 %v1894, %v1891
          %v1940 = vpack.c.bf16 %v1902, %v1899
          %v1941 = vpack.c.bf16 %v1910, %v1907
          %v1942 = vpack.c.bf16 %v1918, %v1915
          %v1943 = vpack.c.bf16 %v1926, %v1923
          %v1944 = vpack.c.bf16 %v1934, %v1931
          %1945 = vst.msk [vmem:[#allocation3] sm:$0xff] %vm1401, %v1937
          %1946 = vst.msk [vmem:[#allocation3 + $0x8] sm:$0xff] %vm1401, %v1938
          %1947 = vst.msk [vmem:[#allocation3 + $0x10] sm:$0xff] %vm1401, %v1939
          %1948 = vst.msk [vmem:[#allocation3 + $0x18] sm:$0xff] %vm1401, %v1940
          %1949 = vst.msk [vmem:[#allocation3 + $0x20] sm:$0xff] %vm1401, %v1941
          %1950 = vst.msk [vmem:[#allocation3 + $0x28] sm:$0xff] %vm1401, %v1942
          %1951 = vst.msk [vmem:[#allocation3 + $0x30] sm:$0xff] %vm1401, %v1943
          %1952 = vst.msk [vmem:[#allocation3 + $0x38] sm:$0xff] %vm1401, %v1944
        $region160: #{tpu_custom_call.1} parent=155 // pred_fallthru
          _
        %v1953 = vld [vmem:[#allocation2] sm:$0xff]
        %vm1954 = vcmask 261120
        %v1955 = vsel %vm1954, %v1953, 0.0
        %1956 = vadd.xlane.f32.xlu0 %v1955
        %v1957 = vpop.xlane.xlu0 %1956
        %v1958 = vrcp.pop 32.0
        %v1959 = vmul.f32 %v1957, %v1958
        %v1960 = vsub.f32 %v1953, %v1959
        %v1961 = vmul.f32 %v1960, %v1960
        %v1962 = vsel %vm1954, %v1961, 0.0
        %1963 = vadd.xlane.f32.xlu0 %v1962
        %v1964 = vpop.xlane.xlu0 %1963
        %v1965 = vmul.f32 %v1964, %v1958
        %v1966 = vadd.f32 %v1965, 1e-05
        %v1967 = vrsqrt.pop %v1966
        %v1968 = vmul.f32 %v1960, %v1967
        %v1969 = vld [vmem:[%s45] sm:$0x1]
        %v1971 = vlaneseq
        %v1972 = vshrl.u32 %v1971, 7
        %v1973 = vsub.s32 0, %v1972
        %v1974 = vrot.slane %v1969, %v1973
        %v1976 = vmul.f32 %v1968, %v1974
        %v1977 = vld [vmem:[%s47] sm:$0x1]
        %v1979 = vlaneseq
        %v1980 = vshrl.u32 %v1979, 7
        %v1981 = vsub.s32 0, %v1980
        %v1982 = vrot.slane %v1977, %v1981
        %v1984 = vadd.f32 %v1976, %v1982
        %v1985 = vpack.c.bf16 %v1984, %v1984
        %v1986 = vld [vmem:[%s1219] sm:$0xf]
        %v1987 = vld [vmem:[%s1219 + $0x4] sm:$0xf]
        %v1988 = vld [vmem:[%s1219 + $0x8] sm:$0xf]
        %v1989 = vld [vmem:[%s1219 + $0xc] sm:$0xf]
        %v1990 = vld [vmem:[%s1219 + $0x10] sm:$0xf]
        %v1991 = vld [vmem:[%s1219 + $0x14] sm:$0xf]
        %v1992 = vld [vmem:[%s1219 + $0x18] sm:$0xf]
        %v1993 = vld [vmem:[%s1219 + $0x1c] sm:$0xf]
        %v1994 = vld [vmem:[%s1219 + $0x20] sm:$0xf]
        %v1995 = vld [vmem:[%s1219 + $0x24] sm:$0xf]
        %v1996 = vld [vmem:[%s1219 + $0x28] sm:$0xf]
        %v1997 = vld [vmem:[%s1219 + $0x2c] sm:$0xf]
        %v1998 = vld [vmem:[%s1219 + $0x30] sm:$0xf]
        %v1999 = vld [vmem:[%s1219 + $0x34] sm:$0xf]
        %v2000 = vld [vmem:[%s1219 + $0x38] sm:$0xf]
        %v2001 = vld [vmem:[%s1219 + $0x3c] sm:$0xf]
        %v2002 = vld [vmem:[%s1219 + $0x40] sm:$0xf]
        %v2003 = vld [vmem:[%s1219 + $0x44] sm:$0xf]
        %v2004 = vld [vmem:[%s1219 + $0x48] sm:$0xf]
        %v2005 = vld [vmem:[%s1219 + $0x4c] sm:$0xf]
        %v2006 = vld [vmem:[%s1219 + $0x50] sm:$0xf]
        %v2007 = vld [vmem:[%s1219 + $0x54] sm:$0xf]
        %v2008 = vld [vmem:[%s1219 + $0x58] sm:$0xf]
        %v2009 = vld [vmem:[%s1219 + $0x5c] sm:$0xf]
        %v2010 = vld [vmem:[%s1219 + $0x60] sm:$0xf]
        %v2011 = vld [vmem:[%s1219 + $0x64] sm:$0xf]
        %v2012 = vld [vmem:[%s1219 + $0x68] sm:$0xf]
        %v2013 = vld [vmem:[%s1219 + $0x6c] sm:$0xf]
        %v2014 = vld [vmem:[%s1219 + $0x70] sm:$0xf]
        %v2015 = vld [vmem:[%s1219 + $0x74] sm:$0xf]
        %v2016 = vld [vmem:[%s1219 + $0x78] sm:$0xf]
        %v2017 = vld [vmem:[%s1219 + $0x7c] sm:$0xf]
        %v2018 = vld [vmem:[%s1219 + $0x80] sm:$0xf]
        %v2019 = vld [vmem:[%s1219 + $0x84] sm:$0xf]
        %v2020 = vld [vmem:[%s1219 + $0x88] sm:$0xf]
        %v2021 = vld [vmem:[%s1219 + $0x8c] sm:$0xf]
        %v2022 = vld [vmem:[%s1219 + $0x90] sm:$0xf]
        %v2023 = vld [vmem:[%s1219 + $0x94] sm:$0xf]
        %v2024 = vld [vmem:[%s1219 + $0x98] sm:$0xf]
        %v2025 = vld [vmem:[%s1219 + $0x9c] sm:$0xf]
        %v2026 = vld [vmem:[%s1219 + $0xa0] sm:$0xf]
        %v2027 = vld [vmem:[%s1219 + $0xa4] sm:$0xf]
        %v2028 = vld [vmem:[%s1219 + $0xa8] sm:$0xf]
        %v2029 = vld [vmem:[%s1219 + $0xac] sm:$0xf]
        %v2030 = vld [vmem:[%s1219 + $0xb0] sm:$0xf]
        %v2031 = vld [vmem:[%s1219 + $0xb4] sm:$0xf]
        %v2032 = vld [vmem:[%s1219 + $0xb8] sm:$0xf]
        %v2033 = vld [vmem:[%s1219 + $0xbc] sm:$0xf]
        %v2034 = vld [vmem:[%s1223] sm:$0x1]
        %v2035 = vld [vmem:[%s1223 + $0x1] sm:$0x1]
        %v2036 = vld [vmem:[%s1223 + $0x2] sm:$0x1]
        %v2037 = vld [vmem:[%s1223 + $0x3] sm:$0x1]
        %v2038 = vld [vmem:[%s1223 + $0x4] sm:$0x1]
        %v2039 = vld [vmem:[%s1223 + $0x5] sm:$0x1]
        %v2040 = vld [vmem:[%s1223 + $0x6] sm:$0x1]
        %v2041 = vld [vmem:[%s1223 + $0x7] sm:$0x1]
        %v2042 = vld [vmem:[%s1223 + $0x8] sm:$0x1]
        %v2043 = vld [vmem:[%s1223 + $0x9] sm:$0x1]
        %v2044 = vld [vmem:[%s1223 + $0xa] sm:$0x1]
        %v2045 = vld [vmem:[%s1223 + $0xb] sm:$0x1]
        %v2058 = vlaneseq
        %v2059 = vshrl.u32 %v2058, 7
        %v2060 = vsub.s32 0, %v2059
        %v2061 = vrot.slane %v2034, %v2060
        %v2062 = vlaneseq
        %v2063 = vshrl.u32 %v2062, 7
        %v2064 = vsub.s32 0, %v2063
        %v2065 = vrot.slane %v2035, %v2064
        %v2066 = vlaneseq
        %v2067 = vshrl.u32 %v2066, 7
        %v2068 = vsub.s32 0, %v2067
        %v2069 = vrot.slane %v2036, %v2068
        %v2070 = vlaneseq
        %v2071 = vshrl.u32 %v2070, 7
        %v2072 = vsub.s32 0, %v2071
        %v2073 = vrot.slane %v2037, %v2072
        %v2074 = vlaneseq
        %v2075 = vshrl.u32 %v2074, 7
        %v2076 = vsub.s32 0, %v2075
        %v2077 = vrot.slane %v2038, %v2076
        %v2078 = vlaneseq
        %v2079 = vshrl.u32 %v2078, 7
        %v2080 = vsub.s32 0, %v2079
        %v2081 = vrot.slane %v2039, %v2080
        %v2082 = vlaneseq
        %v2083 = vshrl.u32 %v2082, 7
        %v2084 = vsub.s32 0, %v2083
        %v2085 = vrot.slane %v2040, %v2084
        %v2086 = vlaneseq
        %v2087 = vshrl.u32 %v2086, 7
        %v2088 = vsub.s32 0, %v2087
        %v2089 = vrot.slane %v2041, %v2088
        %v2090 = vlaneseq
        %v2091 = vshrl.u32 %v2090, 7
        %v2092 = vsub.s32 0, %v2091
        %v2093 = vrot.slane %v2042, %v2092
        %v2094 = vlaneseq
        %v2095 = vshrl.u32 %v2094, 7
        %v2096 = vsub.s32 0, %v2095
        %v2097 = vrot.slane %v2043, %v2096
        %v2098 = vlaneseq
        %v2099 = vshrl.u32 %v2098, 7
        %v2100 = vsub.s32 0, %v2099
        %v2101 = vrot.slane %v2044, %v2100
        %v2102 = vlaneseq
        %v2103 = vshrl.u32 %v2102, 7
        %v2104 = vsub.s32 0, %v2103
        %v2105 = vrot.slane %v2045, %v2104
        %v2122 = vunpack.c.l.b16 %v1986
        %v2123 = vunpack.c.l.b16 %v1987
        %v2124 = vunpack.c.l.b16 %v1988
        %v2125 = vunpack.c.l.b16 %v1989
        %v2126 = vpack.c.b16 %v2123, %v2122
        %v2127 = vpack.c.b16 %v2125, %v2124
        %v2131 = vsel %vm1954, %v1985, 0
        %2133 = vmatprep.subr.bf16.mxu0 0
        %2134 = vmatpush1.bf16.msra.mxu0 %v2126
        %2135 = vmatprep.subr.bf16.mxu0 0
        %2136 = vmatpush1.bf16.msra.mxu0 %v2127
        %2137 = vmatprep.subr.bf16.mxu0 0
        %2138 = vmatpush1.bf16.msra.mxu0 0
        %2139 = vmatprep.subr.bf16.mxu0 0
        %2140 = vmatpush1.bf16.msra.mxu0 0
        %2141 = vmatprep.subr.bf16.mxu0 0
        %2142 = vmatpush1.bf16.msra.mxu0 0
        %2143 = vmatprep.subr.bf16.mxu0 0
        %2144 = vmatpush1.bf16.msra.mxu0 0
        %2145 = vmatprep.subr.bf16.mxu0 0
        %2146 = vmatpush1.bf16.msra.mxu0 0
        %2147 = vmatprep.subr.bf16.mxu0 0
        %2148 = vmatpush1.bf16.msra.mxu0 0
        %2149 = vmatprep.subr.bf16.mxu0 0
        %2150 = vmatpush1.bf16.msra.mxu0 0
        %2151 = vmatprep.subr.bf16.mxu0 0
        %2152 = vmatpush1.bf16.msra.mxu0 0
        %2153 = vmatprep.subr.bf16.mxu0 0
        %2154 = vmatpush1.bf16.msra.mxu0 0
        %2155 = vmatprep.subr.bf16.mxu0 0
        %2156 = vmatpush1.bf16.msra.mxu0 0
        %2157 = vmatprep.subr.bf16.mxu0 0
        %2158 = vmatpush1.bf16.msra.mxu0 0
        %2159 = vmatprep.subr.bf16.mxu0 0
        %2160 = vmatpush1.bf16.msra.mxu0 0
        %2161 = vmatprep.subr.bf16.mxu0 0
        %2162 = vmatpush1.bf16.msra.mxu0 0
        %2163 = vmatprep.subr.bf16.mxu0 0
        %2164 = vmatpush1.bf16.msra.mxu0 0
        %2165 = vmatprep.mubr.bf16.mxu0 0
        %2166 = vmatmul.mubr.bf16.gmra.mrb[0].mxu0 %v2131
        %v2167 = vpop.f32.mrb[0].mxu0
        %v2168 = vadd.f32 %v2061, %v2167
        %v2169 = vpop.f32.mrb[0].mxu0
        %v2170 = vpop.f32.mrb[0].mxu0
        %v2171 = vpop.f32.mrb[0].mxu0
        %2172 = vdwg.mxu0
        %v2177 = vunpack.c.l.b16 %v1990
        %v2178 = vunpack.c.l.b16 %v1991
        %v2179 = vunpack.c.l.b16 %v1992
        %v2180 = vunpack.c.l.b16 %v1993
        %v2181 = vpack.c.b16 %v2178, %v2177
        %v2182 = vpack.c.b16 %v2180, %v2179
        %2185 = vmatprep.subr.bf16.mxu0 0
        %2186 = vmatpush1.bf16.msra.mxu0 %v2181
        %2187 = vmatprep.subr.bf16.mxu0 0
        %2188 = vmatpush1.bf16.msra.mxu0 %v2182
        %2189 = vmatprep.subr.bf16.mxu0 0
        %2190 = vmatpush1.bf16.msra.mxu0 0
        %2191 = vmatprep.subr.bf16.mxu0 0
        %2192 = vmatpush1.bf16.msra.mxu0 0
        %2193 = vmatprep.subr.bf16.mxu0 0
        %2194 = vmatpush1.bf16.msra.mxu0 0
        %2195 = vmatprep.subr.bf16.mxu0 0
        %2196 = vmatpush1.bf16.msra.mxu0 0
        %2197 = vmatprep.subr.bf16.mxu0 0
        %2198 = vmatpush1.bf16.msra.mxu0 0
        %2199 = vmatprep.subr.bf16.mxu0 0
        %2200 = vmatpush1.bf16.msra.mxu0 0
        %2201 = vmatprep.subr.bf16.mxu0 0
        %2202 = vmatpush1.bf16.msra.mxu0 0
        %2203 = vmatprep.subr.bf16.mxu0 0
        %2204 = vmatpush1.bf16.msra.mxu0 0
        %2205 = vmatprep.subr.bf16.mxu0 0
        %2206 = vmatpush1.bf16.msra.mxu0 0
        %2207 = vmatprep.subr.bf16.mxu0 0
        %2208 = vmatpush1.bf16.msra.mxu0 0
        %2209 = vmatprep.subr.bf16.mxu0 0
        %2210 = vmatpush1.bf16.msra.mxu0 0
        %2211 = vmatprep.subr.bf16.mxu0 0
        %2212 = vmatpush1.bf16.msra.mxu0 0
        %2213 = vmatprep.subr.bf16.mxu0 0
        %2214 = vmatpush1.bf16.msra.mxu0 0
        %2215 = vmatprep.subr.bf16.mxu0 0
        %2216 = vmatpush1.bf16.msra.mxu0 0
        %2217 = vmatprep.mubr.bf16.mxu0 0
        %2218 = vmatmul.mubr.bf16.gmra.mrb[0].mxu0 %v2131
        %v2219 = vpop.f32.mrb[0].mxu0
        %v2220 = vadd.f32 %v2065, %v2219
        %v2221 = vpop.f32.mrb[0].mxu0
        %v2222 = vpop.f32.mrb[0].mxu0
        %v2223 = vpop.f32.mrb[0].mxu0
        %2224 = vdwg.mxu0
        %v2229 = vunpack.c.l.b16 %v1994
        %v2230 = vunpack.c.l.b16 %v1995
        %v2231 = vunpack.c.l.b16 %v1996
        %v2232 = vunpack.c.l.b16 %v1997
        %v2233 = vpack.c.b16 %v2230, %v2229
        %v2234 = vpack.c.b16 %v2232, %v2231
        %2237 = vmatprep.subr.bf16.mxu0 0
        %2238 = vmatpush1.bf16.msra.mxu0 %v2233
        %2239 = vmatprep.subr.bf16.mxu0 0
        %2240 = vmatpush1.bf16.msra.mxu0 %v2234
        %2241 = vmatprep.subr.bf16.mxu0 0
        %2242 = vmatpush1.bf16.msra.mxu0 0
        %2243 = vmatprep.subr.bf16.mxu0 0
        %2244 = vmatpush1.bf16.msra.mxu0 0
        %2245 = vmatprep.subr.bf16.mxu0 0
        %2246 = vmatpush1.bf16.msra.mxu0 0
        %2247 = vmatprep.subr.bf16.mxu0 0
        %2248 = vmatpush1.bf16.msra.mxu0 0
        %2249 = vmatprep.subr.bf16.mxu0 0
        %2250 = vmatpush1.bf16.msra.mxu0 0
        %2251 = vmatprep.subr.bf16.mxu0 0
        %2252 = vmatpush1.bf16.msra.mxu0 0
        %2253 = vmatprep.subr.bf16.mxu0 0
        %2254 = vmatpush1.bf16.msra.mxu0 0
        %2255 = vmatprep.subr.bf16.mxu0 0
        %2256 = vmatpush1.bf16.msra.mxu0 0
        %2257 = vmatprep.subr.bf16.mxu0 0
        %2258 = vmatpush1.bf16.msra.mxu0 0
        %2259 = vmatprep.subr.bf16.mxu0 0
        %2260 = vmatpush1.bf16.msra.mxu0 0
        %2261 = vmatprep.subr.bf16.mxu0 0
        %2262 = vmatpush1.bf16.msra.mxu0 0
        %2263 = vmatprep.subr.bf16.mxu0 0
        %2264 = vmatpush1.bf16.msra.mxu0 0
        %2265 = vmatprep.subr.bf16.mxu0 0
        %2266 = vmatpush1.bf16.msra.mxu0 0
        %2267 = vmatprep.subr.bf16.mxu0 0
        %2268 = vmatpush1.bf16.msra.mxu0 0
        %2269 = vmatprep.mubr.bf16.mxu0 0
        %2270 = vmatmul.mubr.bf16.gmra.mrb[0].mxu0 %v2131
        %v2271 = vpop.f32.mrb[0].mxu0
        %v2272 = vadd.f32 %v2069, %v2271
        %v2273 = vpop.f32.mrb[0].mxu0
        %v2274 = vpop.f32.mrb[0].mxu0
        %v2275 = vpop.f32.mrb[0].mxu0
        %2276 = vdwg.mxu0
        %v2281 = vunpack.c.l.b16 %v1998
        %v2282 = vunpack.c.l.b16 %v1999
        %v2283 = vunpack.c.l.b16 %v2000
        %v2284 = vunpack.c.l.b16 %v2001
        %v2285 = vpack.c.b16 %v2282, %v2281
        %v2286 = vpack.c.b16 %v2284, %v2283
        %2289 = vmatprep.subr.bf16.mxu0 0
        %2290 = vmatpush1.bf16.msra.mxu0 %v2285
        %2291 = vmatprep.subr.bf16.mxu0 0
        %2292 = vmatpush1.bf16.msra.mxu0 %v2286
        %2293 = vmatprep.subr.bf16.mxu0 0
        %2294 = vmatpush1.bf16.msra.mxu0 0
        %2295 = vmatprep.subr.bf16.mxu0 0
        %2296 = vmatpush1.bf16.msra.mxu0 0
        %2297 = vmatprep.subr.bf16.mxu0 0
        %2298 = vmatpush1.bf16.msra.mxu0 0
        %2299 = vmatprep.subr.bf16.mxu0 0
        %2300 = vmatpush1.bf16.msra.mxu0 0
        %2301 = vmatprep.subr.bf16.mxu0 0
        %2302 = vmatpush1.bf16.msra.mxu0 0
        %2303 = vmatprep.subr.bf16.mxu0 0
        %2304 = vmatpush1.bf16.msra.mxu0 0
        %2305 = vmatprep.subr.bf16.mxu0 0
        %2306 = vmatpush1.bf16.msra.mxu0 0
        %2307 = vmatprep.subr.bf16.mxu0 0
        %2308 = vmatpush1.bf16.msra.mxu0 0
        %2309 = vmatprep.subr.bf16.mxu0 0
        %2310 = vmatpush1.bf16.msra.mxu0 0
        %2311 = vmatprep.subr.bf16.mxu0 0
        %2312 = vmatpush1.bf16.msra.mxu0 0
        %2313 = vmatprep.subr.bf16.mxu0 0
        %2314 = vmatpush1.bf16.msra.mxu0 0
        %2315 = vmatprep.subr.bf16.mxu0 0
        %2316 = vmatpush1.bf16.msra.mxu0 0
        %2317 = vmatprep.subr.bf16.mxu0 0
        %2318 = vmatpush1.bf16.msra.mxu0 0
        %2319 = vmatprep.subr.bf16.mxu0 0
        %2320 = vmatpush1.bf16.msra.mxu0 0
        %2321 = vmatprep.mubr.bf16.mxu0 0
        %2322 = vmatmul.mubr.bf16.gmra.mrb[0].mxu0 %v2131
        %v2323 = vpop.f32.mrb[0].mxu0
        %v2324 = vadd.f32 %v2073, %v2323
        %v2325 = vpop.f32.mrb[0].mxu0
        %v2326 = vpop.f32.mrb[0].mxu0
        %v2327 = vpop.f32.mrb[0].mxu0
        %2328 = vdwg.mxu0
        %v2333 = vunpack.c.l.b16 %v2002
        %v2334 = vunpack.c.l.b16 %v2003
        %v2335 = vunpack.c.l.b16 %v2004
        %v2336 = vunpack.c.l.b16 %v2005
        %v2337 = vpack.c.b16 %v2334, %v2333
        %v2338 = vpack.c.b16 %v2336, %v2335
        %2341 = vmatprep.subr.bf16.mxu0 0
        %2342 = vmatpush1.bf16.msra.mxu0 %v2337
        %2343 = vmatprep.subr.bf16.mxu0 0
        %2344 = vmatpush1.bf16.msra.mxu0 %v2338
        %2345 = vmatprep.subr.bf16.mxu0 0
        %2346 = vmatpush1.bf16.msra.mxu0 0
        %2347 = vmatprep.subr.bf16.mxu0 0
        %2348 = vmatpush1.bf16.msra.mxu0 0
        %2349 = vmatprep.subr.bf16.mxu0 0
        %2350 = vmatpush1.bf16.msra.mxu0 0
        %2351 = vmatprep.subr.bf16.mxu0 0
        %2352 = vmatpush1.bf16.msra.mxu0 0
        %2353 = vmatprep.subr.bf16.mxu0 0
        %2354 = vmatpush1.bf16.msra.mxu0 0
        %2355 = vmatprep.subr.bf16.mxu0 0
        %2356 = vmatpush1.bf16.msra.mxu0 0
        %2357 = vmatprep.subr.bf16.mxu0 0
        %2358 = vmatpush1.bf16.msra.mxu0 0
        %2359 = vmatprep.subr.bf16.mxu0 0
        %2360 = vmatpush1.bf16.msra.mxu0 0
        %2361 = vmatprep.subr.bf16.mxu0 0
        %2362 = vmatpush1.bf16.msra.mxu0 0
        %2363 = vmatprep.subr.bf16.mxu0 0
        %2364 = vmatpush1.bf16.msra.mxu0 0
        %2365 = vmatprep.subr.bf16.mxu0 0
        %2366 = vmatpush1.bf16.msra.mxu0 0
        %2367 = vmatprep.subr.bf16.mxu0 0
        %2368 = vmatpush1.bf16.msra.mxu0 0
        %2369 = vmatprep.subr.bf16.mxu0 0
        %2370 = vmatpush1.bf16.msra.mxu0 0
        %2371 = vmatprep.subr.bf16.mxu0 0
        %2372 = vmatpush1.bf16.msra.mxu0 0
        %2373 = vmatprep.mubr.bf16.mxu0 0
        %2374 = vmatmul.mubr.bf16.gmra.mrb[0].mxu0 %v2131
        %v2375 = vpop.f32.mrb[0].mxu0
        %v2376 = vadd.f32 %v2077, %v2375
        %v2377 = vpop.f32.mrb[0].mxu0
        %v2378 = vpop.f32.mrb[0].mxu0
        %v2379 = vpop.f32.mrb[0].mxu0
        %2380 = vdwg.mxu0
        %v2385 = vunpack.c.l.b16 %v2006
        %v2386 = vunpack.c.l.b16 %v2007
        %v2387 = vunpack.c.l.b16 %v2008
        %v2388 = vunpack.c.l.b16 %v2009
        %v2389 = vpack.c.b16 %v2386, %v2385
        %v2390 = vpack.c.b16 %v2388, %v2387
        %2393 = vmatprep.subr.bf16.mxu0 0
        %2394 = vmatpush1.bf16.msra.mxu0 %v2389
        %2395 = vmatprep.subr.bf16.mxu0 0
        %2396 = vmatpush1.bf16.msra.mxu0 %v2390
        %2397 = vmatprep.subr.bf16.mxu0 0
        %2398 = vmatpush1.bf16.msra.mxu0 0
        %2399 = vmatprep.subr.bf16.mxu0 0
        %2400 = vmatpush1.bf16.msra.mxu0 0
        %2401 = vmatprep.subr.bf16.mxu0 0
        %2402 = vmatpush1.bf16.msra.mxu0 0
        %2403 = vmatprep.subr.bf16.mxu0 0
        %2404 = vmatpush1.bf16.msra.mxu0 0
        %2405 = vmatprep.subr.bf16.mxu0 0
        %2406 = vmatpush1.bf16.msra.mxu0 0
        %2407 = vmatprep.subr.bf16.mxu0 0
        %2408 = vmatpush1.bf16.msra.mxu0 0
        %2409 = vmatprep.subr.bf16.mxu0 0
        %2410 = vmatpush1.bf16.msra.mxu0 0
        %2411 = vmatprep.subr.bf16.mxu0 0
        %2412 = vmatpush1.bf16.msra.mxu0 0
        %2413 = vmatprep.subr.bf16.mxu0 0
        %2414 = vmatpush1.bf16.msra.mxu0 0
        %2415 = vmatprep.subr.bf16.mxu0 0
        %2416 = vmatpush1.bf16.msra.mxu0 0
        %2417 = vmatprep.subr.bf16.mxu0 0
        %2418 = vmatpush1.bf16.msra.mxu0 0
        %2419 = vmatprep.subr.bf16.mxu0 0
        %2420 = vmatpush1.bf16.msra.mxu0 0
        %2421 = vmatprep.subr.bf16.mxu0 0
        %2422 = vmatpush1.bf16.msra.mxu0 0
        %2423 = vmatprep.subr.bf16.mxu0 0
        %2424 = vmatpush1.bf16.msra.mxu0 0
        %2425 = vmatprep.mubr.bf16.mxu0 0
        %2426 = vmatmul.mubr.bf16.gmra.mrb[0].mxu0 %v2131
        %v2427 = vpop.f32.mrb[0].mxu0
        %v2428 = vadd.f32 %v2081, %v2427
        %v2429 = vpop.f32.mrb[0].mxu0
        %v2430 = vpop.f32.mrb[0].mxu0
        %v2431 = vpop.f32.mrb[0].mxu0
        %2432 = vdwg.mxu0
        %v2437 = vunpack.c.l.b16 %v2010
        %v2438 = vunpack.c.l.b16 %v2011
        %v2439 = vunpack.c.l.b16 %v2012
        %v2440 = vunpack.c.l.b16 %v2013
        %v2441 = vpack.c.b16 %v2438, %v2437
        %v2442 = vpack.c.b16 %v2440, %v2439
        %2445 = vmatprep.subr.bf16.mxu0 0
        %2446 = vmatpush1.bf16.msra.mxu0 %v2441
        %2447 = vmatprep.subr.bf16.mxu0 0
        %2448 = vmatpush1.bf16.msra.mxu0 %v2442
        %2449 = vmatprep.subr.bf16.mxu0 0
        %2450 = vmatpush1.bf16.msra.mxu0 0
        %2451 = vmatprep.subr.bf16.mxu0 0
        %2452 = vmatpush1.bf16.msra.mxu0 0
        %2453 = vmatprep.subr.bf16.mxu0 0
        %2454 = vmatpush1.bf16.msra.mxu0 0
        %2455 = vmatprep.subr.bf16.mxu0 0
        %2456 = vmatpush1.bf16.msra.mxu0 0
        %2457 = vmatprep.subr.bf16.mxu0 0
        %2458 = vmatpush1.bf16.msra.mxu0 0
        %2459 = vmatprep.subr.bf16.mxu0 0
        %2460 = vmatpush1.bf16.msra.mxu0 0
        %2461 = vmatprep.subr.bf16.mxu0 0
        %2462 = vmatpush1.bf16.msra.mxu0 0
        %2463 = vmatprep.subr.bf16.mxu0 0
        %2464 = vmatpush1.bf16.msra.mxu0 0
        %2465 = vmatprep.subr.bf16.mxu0 0
        %2466 = vmatpush1.bf16.msra.mxu0 0
        %2467 = vmatprep.subr.bf16.mxu0 0
        %2468 = vmatpush1.bf16.msra.mxu0 0
        %2469 = vmatprep.subr.bf16.mxu0 0
        %2470 = vmatpush1.bf16.msra.mxu0 0
        %2471 = vmatprep.subr.bf16.mxu0 0
        %2472 = vmatpush1.bf16.msra.mxu0 0
        %2473 = vmatprep.subr.bf16.mxu0 0
        %2474 = vmatpush1.bf16.msra.mxu0 0
        %2475 = vmatprep.subr.bf16.mxu0 0
        %2476 = vmatpush1.bf16.msra.mxu0 0
        %2477 = vmatprep.mubr.bf16.mxu0 0
        %2478 = vmatmul.mubr.bf16.gmra.mrb[0].mxu0 %v2131
        %v2479 = vpop.f32.mrb[0].mxu0
        %v2480 = vadd.f32 %v2085, %v2479
        %v2481 = vpop.f32.mrb[0].mxu0
        %v2482 = vpop.f32.mrb[0].mxu0
        %v2483 = vpop.f32.mrb[0].mxu0
        %2484 = vdwg.mxu0
        %v2489 = vunpack.c.l.b16 %v2014
        %v2490 = vunpack.c.l.b16 %v2015
        %v2491 = vunpack.c.l.b16 %v2016
        %v2492 = vunpack.c.l.b16 %v2017
        %v2493 = vpack.c.b16 %v2490, %v2489
        %v2494 = vpack.c.b16 %v2492, %v2491
        %2497 = vmatprep.subr.bf16.mxu0 0
        %2498 = vmatpush1.bf16.msra.mxu0 %v2493
        %2499 = vmatprep.subr.bf16.mxu0 0
        %2500 = vmatpush1.bf16.msra.mxu0 %v2494
        %2501 = vmatprep.subr.bf16.mxu0 0
        %2502 = vmatpush1.bf16.msra.mxu0 0
        %2503 = vmatprep.subr.bf16.mxu0 0
        %2504 = vmatpush1.bf16.msra.mxu0 0
        %2505 = vmatprep.subr.bf16.mxu0 0
        %2506 = vmatpush1.bf16.msra.mxu0 0
        %2507 = vmatprep.subr.bf16.mxu0 0
        %2508 = vmatpush1.bf16.msra.mxu0 0
        %2509 = vmatprep.subr.bf16.mxu0 0
        %2510 = vmatpush1.bf16.msra.mxu0 0
        %2511 = vmatprep.subr.bf16.mxu0 0
        %2512 = vmatpush1.bf16.msra.mxu0 0
        %2513 = vmatprep.subr.bf16.mxu0 0
        %2514 = vmatpush1.bf16.msra.mxu0 0
        %2515 = vmatprep.subr.bf16.mxu0 0
        %2516 = vmatpush1.bf16.msra.mxu0 0
        %2517 = vmatprep.subr.bf16.mxu0 0
        %2518 = vmatpush1.bf16.msra.mxu0 0
        %2519 = vmatprep.subr.bf16.mxu0 0
        %2520 = vmatpush1.bf16.msra.mxu0 0
        %2521 = vmatprep.subr.bf16.mxu0 0
        %2522 = vmatpush1.bf16.msra.mxu0 0
        %2523 = vmatprep.subr.bf16.mxu0 0
        %2524 = vmatpush1.bf16.msra.mxu0 0
        %2525 = vmatprep.subr.bf16.mxu0 0
        %2526 = vmatpush1.bf16.msra.mxu0 0
        %2527 = vmatprep.subr.bf16.mxu0 0
        %2528 = vmatpush1.bf16.msra.mxu0 0
        %2529 = vmatprep.mubr.bf16.mxu0 0
        %2530 = vmatmul.mubr.bf16.gmra.mrb[0].mxu0 %v2131
        %v2531 = vpop.f32.mrb[0].mxu0
        %v2532 = vadd.f32 %v2089, %v2531
        %v2533 = vpop.f32.mrb[0].mxu0
        %v2534 = vpop.f32.mrb[0].mxu0
        %v2535 = vpop.f32.mrb[0].mxu0
        %2536 = vdwg.mxu0
        %v2541 = vunpack.c.l.b16 %v2018
        %v2542 = vunpack.c.l.b16 %v2019
        %v2543 = vunpack.c.l.b16 %v2020
        %v2544 = vunpack.c.l.b16 %v2021
        %v2545 = vpack.c.b16 %v2542, %v2541
        %v2546 = vpack.c.b16 %v2544, %v2543
        %2549 = vmatprep.subr.bf16.mxu0 0
        %2550 = vmatpush1.bf16.msra.mxu0 %v2545
        %2551 = vmatprep.subr.bf16.mxu0 0
        %2552 = vmatpush1.bf16.msra.mxu0 %v2546
        %2553 = vmatprep.subr.bf16.mxu0 0
        %2554 = vmatpush1.bf16.msra.mxu0 0
        %2555 = vmatprep.subr.bf16.mxu0 0
        %2556 = vmatpush1.bf16.msra.mxu0 0
        %2557 = vmatprep.subr.bf16.mxu0 0
        %2558 = vmatpush1.bf16.msra.mxu0 0
        %2559 = vmatprep.subr.bf16.mxu0 0
        %2560 = vmatpush1.bf16.msra.mxu0 0
        %2561 = vmatprep.subr.bf16.mxu0 0
        %2562 = vmatpush1.bf16.msra.mxu0 0
        %2563 = vmatprep.subr.bf16.mxu0 0
        %2564 = vmatpush1.bf16.msra.mxu0 0
        %2565 = vmatprep.subr.bf16.mxu0 0
        %2566 = vmatpush1.bf16.msra.mxu0 0
        %2567 = vmatprep.subr.bf16.mxu0 0
        %2568 = vmatpush1.bf16.msra.mxu0 0
        %2569 = vmatprep.subr.bf16.mxu0 0
        %2570 = vmatpush1.bf16.msra.mxu0 0
        %2571 = vmatprep.subr.bf16.mxu0 0
        %2572 = vmatpush1.bf16.msra.mxu0 0
        %2573 = vmatprep.subr.bf16.mxu0 0
        %2574 = vmatpush1.bf16.msra.mxu0 0
        %2575 = vmatprep.subr.bf16.mxu0 0
        %2576 = vmatpush1.bf16.msra.mxu0 0
        %2577 = vmatprep.subr.bf16.mxu0 0
        %2578 = vmatpush1.bf16.msra.mxu0 0
        %2579 = vmatprep.subr.bf16.mxu0 0
        %2580 = vmatpush1.bf16.msra.mxu0 0
        %2581 = vmatprep.mubr.bf16.mxu0 0
        %2582 = vmatmul.mubr.bf16.gmra.mrb[0].mxu0 %v2131
        %v2583 = vpop.f32.mrb[0].mxu0
        %v2584 = vadd.f32 %v2093, %v2583
        %v2585 = vpop.f32.mrb[0].mxu0
        %v2586 = vpop.f32.mrb[0].mxu0
        %v2587 = vpop.f32.mrb[0].mxu0
        %2588 = vdwg.mxu0
        %v2593 = vunpack.c.l.b16 %v2022
        %v2594 = vunpack.c.l.b16 %v2023
        %v2595 = vunpack.c.l.b16 %v2024
        %v2596 = vunpack.c.l.b16 %v2025
        %v2597 = vpack.c.b16 %v2594, %v2593
        %v2598 = vpack.c.b16 %v2596, %v2595
        %2601 = vmatprep.subr.bf16.mxu0 0
        %2602 = vmatpush1.bf16.msra.mxu0 %v2597
        %2603 = vmatprep.subr.bf16.mxu0 0
        %2604 = vmatpush1.bf16.msra.mxu0 %v2598
        %2605 = vmatprep.subr.bf16.mxu0 0
        %2606 = vmatpush1.bf16.msra.mxu0 0
        %2607 = vmatprep.subr.bf16.mxu0 0
        %2608 = vmatpush1.bf16.msra.mxu0 0
        %2609 = vmatprep.subr.bf16.mxu0 0
        %2610 = vmatpush1.bf16.msra.mxu0 0
        %2611 = vmatprep.subr.bf16.mxu0 0
        %2612 = vmatpush1.bf16.msra.mxu0 0
        %2613 = vmatprep.subr.bf16.mxu0 0
        %2614 = vmatpush1.bf16.msra.mxu0 0
        %2615 = vmatprep.subr.bf16.mxu0 0
        %2616 = vmatpush1.bf16.msra.mxu0 0
        %2617 = vmatprep.subr.bf16.mxu0 0
        %2618 = vmatpush1.bf16.msra.mxu0 0
        %2619 = vmatprep.subr.bf16.mxu0 0
        %2620 = vmatpush1.bf16.msra.mxu0 0
        %2621 = vmatprep.subr.bf16.mxu0 0
        %2622 = vmatpush1.bf16.msra.mxu0 0
        %2623 = vmatprep.subr.bf16.mxu0 0
        %2624 = vmatpush1.bf16.msra.mxu0 0
        %2625 = vmatprep.subr.bf16.mxu0 0
        %2626 = vmatpush1.bf16.msra.mxu0 0
        %2627 = vmatprep.subr.bf16.mxu0 0
        %2628 = vmatpush1.bf16.msra.mxu0 0
        %2629 = vmatprep.subr.bf16.mxu0 0
        %2630 = vmatpush1.bf16.msra.mxu0 0
        %2631 = vmatprep.subr.bf16.mxu0 0
        %2632 = vmatpush1.bf16.msra.mxu0 0
        %2633 = vmatprep.mubr.bf16.mxu0 0
        %2634 = vmatmul.mubr.bf16.gmra.mrb[0].mxu0 %v2131
        %v2635 = vpop.f32.mrb[0].mxu0
        %v2636 = vadd.f32 %v2097, %v2635
        %v2637 = vpop.f32.mrb[0].mxu0
        %v2638 = vpop.f32.mrb[0].mxu0
        %v2639 = vpop.f32.mrb[0].mxu0
        %2640 = vdwg.mxu0
        %v2645 = vunpack.c.l.b16 %v2026
        %v2646 = vunpack.c.l.b16 %v2027
        %v2647 = vunpack.c.l.b16 %v2028
        %v2648 = vunpack.c.l.b16 %v2029
        %v2649 = vpack.c.b16 %v2646, %v2645
        %v2650 = vpack.c.b16 %v2648, %v2647
        %2653 = vmatprep.subr.bf16.mxu0 0
        %2654 = vmatpush1.bf16.msra.mxu0 %v2649
        %2655 = vmatprep.subr.bf16.mxu0 0
        %2656 = vmatpush1.bf16.msra.mxu0 %v2650
        %2657 = vmatprep.subr.bf16.mxu0 0
        %2658 = vmatpush1.bf16.msra.mxu0 0
        %2659 = vmatprep.subr.bf16.mxu0 0
        %2660 = vmatpush1.bf16.msra.mxu0 0
        %2661 = vmatprep.subr.bf16.mxu0 0
        %2662 = vmatpush1.bf16.msra.mxu0 0
        %2663 = vmatprep.subr.bf16.mxu0 0
        %2664 = vmatpush1.bf16.msra.mxu0 0
        %2665 = vmatprep.subr.bf16.mxu0 0
        %2666 = vmatpush1.bf16.msra.mxu0 0
        %2667 = vmatprep.subr.bf16.mxu0 0
        %2668 = vmatpush1.bf16.msra.mxu0 0
        %2669 = vmatprep.subr.bf16.mxu0 0
        %2670 = vmatpush1.bf16.msra.mxu0 0
        %2671 = vmatprep.subr.bf16.mxu0 0
        %2672 = vmatpush1.bf16.msra.mxu0 0
        %2673 = vmatprep.subr.bf16.mxu0 0
        %2674 = vmatpush1.bf16.msra.mxu0 0
        %2675 = vmatprep.subr.bf16.mxu0 0
        %2676 = vmatpush1.bf16.msra.mxu0 0
        %2677 = vmatprep.subr.bf16.mxu0 0
        %2678 = vmatpush1.bf16.msra.mxu0 0
        %2679 = vmatprep.subr.bf16.mxu0 0
        %2680 = vmatpush1.bf16.msra.mxu0 0
        %2681 = vmatprep.subr.bf16.mxu0 0
        %2682 = vmatpush1.bf16.msra.mxu0 0
        %2683 = vmatprep.subr.bf16.mxu0 0
        %2684 = vmatpush1.bf16.msra.mxu0 0
        %2685 = vmatprep.mubr.bf16.mxu0 0
        %2686 = vmatmul.mubr.bf16.gmra.mrb[0].mxu0 %v2131
        %v2687 = vpop.f32.mrb[0].mxu0
        %v2688 = vadd.f32 %v2101, %v2687
        %v2689 = vpop.f32.mrb[0].mxu0
        %v2690 = vpop.f32.mrb[0].mxu0
        %v2691 = vpop.f32.mrb[0].mxu0
        %2692 = vdwg.mxu0
        %v2697 = vunpack.c.l.b16 %v2030
        %v2698 = vunpack.c.l.b16 %v2031
        %v2699 = vunpack.c.l.b16 %v2032
        %v2700 = vunpack.c.l.b16 %v2033
        %v2701 = vpack.c.b16 %v2698, %v2697
        %v2702 = vpack.c.b16 %v2700, %v2699
        %2705 = vmatprep.subr.bf16.mxu0 0
        %2706 = vmatpush1.bf16.msra.mxu0 %v2701
        %2707 = vmatprep.subr.bf16.mxu0 0
        %2708 = vmatpush1.bf16.msra.mxu0 %v2702
        %2709 = vmatprep.subr.bf16.mxu0 0
        %2710 = vmatpush1.bf16.msra.mxu0 0
        %2711 = vmatprep.subr.bf16.mxu0 0
        %2712 = vmatpush1.bf16.msra.mxu0 0
        %2713 = vmatprep.subr.bf16.mxu0 0
        %2714 = vmatpush1.bf16.msra.mxu0 0
        %2715 = vmatprep.subr.bf16.mxu0 0
        %2716 = vmatpush1.bf16.msra.mxu0 0
        %2717 = vmatprep.subr.bf16.mxu0 0
        %2718 = vmatpush1.bf16.msra.mxu0 0
        %2719 = vmatprep.subr.bf16.mxu0 0
        %2720 = vmatpush1.bf16.msra.mxu0 0
        %2721 = vmatprep.subr.bf16.mxu0 0
        %2722 = vmatpush1.bf16.msra.mxu0 0
        %2723 = vmatprep.subr.bf16.mxu0 0
        %2724 = vmatpush1.bf16.msra.mxu0 0
        %2725 = vmatprep.subr.bf16.mxu0 0
        %2726 = vmatpush1.bf16.msra.mxu0 0
        %2727 = vmatprep.subr.bf16.mxu0 0
        %2728 = vmatpush1.bf16.msra.mxu0 0
        %2729 = vmatprep.subr.bf16.mxu0 0
        %2730 = vmatpush1.bf16.msra.mxu0 0
        %2731 = vmatprep.subr.bf16.mxu0 0
        %2732 = vmatpush1.bf16.msra.mxu0 0
        %2733 = vmatprep.subr.bf16.mxu0 0
        %2734 = vmatpush1.bf16.msra.mxu0 0
        %2735 = vmatprep.subr.bf16.mxu0 0
        %2736 = vmatpush1.bf16.msra.mxu0 0
        %2737 = vmatprep.mubr.bf16.mxu0 0
        %2738 = vmatmul.mubr.bf16.gmra.mrb[0].mxu0 %v2131
        %v2739 = vpop.f32.mrb[0].mxu0
        %v2740 = vadd.f32 %v2105, %v2739
        %v2741 = vpop.f32.mrb[0].mxu0
        %v2742 = vpop.f32.mrb[0].mxu0
        %v2743 = vpop.f32.mrb[0].mxu0
        %2744 = vdwg.mxu0
        %v2745 = vpack.c.bf16 %v2168, %v2168
        %v2746 = vpack.c.bf16 %v2220, %v2220
        %v2747 = vpack.c.bf16 %v2272, %v2272
        %v2748 = vpack.c.bf16 %v2324, %v2324
        %v2749 = vpack.c.bf16 %v2376, %v2376
        %v2750 = vpack.c.bf16 %v2428, %v2428
        %v2751 = vpack.c.bf16 %v2480, %v2480
        %v2752 = vpack.c.bf16 %v2532, %v2532
        %v2753 = vpack.c.bf16 %v2584, %v2584
        %v2754 = vpack.c.bf16 %v2636, %v2636
        %v2755 = vpack.c.bf16 %v2688, %v2688
        %v2756 = vpack.c.bf16 %v2740, %v2740
        %v2757 = vld [vmem:[#allocation3] sm:$0xff]
        %v2758 = vld [vmem:[#allocation3 + $0x8] sm:$0xff]
        %v2759 = vld [vmem:[#allocation3 + $0x10] sm:$0xff]
        %v2760 = vld [vmem:[#allocation3 + $0x18] sm:$0xff]
        %v2761 = vld [vmem:[#allocation3 + $0x20] sm:$0xff]
        %v2762 = vld [vmem:[#allocation3 + $0x28] sm:$0xff]
        %v2763 = vld [vmem:[#allocation3 + $0x30] sm:$0xff]
        %v2764 = vld [vmem:[#allocation3 + $0x38] sm:$0xff]
        %v2769 = vunpack.c.l.b16 %v2745
        %v2770 = vunpack.c.l.b16 %v2746
        %v2771 = vunpack.c.l.b16 %v2747
        %v2772 = vunpack.c.l.b16 %v2748
        %v2773 = vpack.c.b16 %v2770, %v2769
        %v2774 = vpack.c.b16 %v2772, %v2771
        %vm2775 = vcmask 64512
        %v2777 = vsel %vm2775, %v2773, 0
        %v2780 = vsel %vm2775, %v2774, 0
        %v2783 = vsel %vm2775, %v2757, 0
        %v2786 = vsel %vm2775, %v2758, 0
        %v2789 = vsel %vm2775, %v2759, 0
        %v2792 = vsel %vm2775, %v2760, 0
        %v2795 = vsel %vm2775, %v2761, 0
        %v2798 = vsel %vm2775, %v2762, 0
        %v2801 = vsel %vm2775, %v2763, 0
        %v2804 = vsel %vm2775, %v2764, 0
        %2806 = vmatprep.subr.bf16.mxu0 0
        %2807 = vmatpush1.bf16.xpose.msra.mxu0 %v2783
        %2808 = vmatprep.subr.bf16.mxu0 0
        %2809 = vmatpush1.bf16.xpose.msra.mxu0 %v2786
        %2810 = vmatprep.subr.bf16.mxu0 0
        %2811 = vmatpush1.bf16.xpose.msra.mxu0 %v2789
        %2812 = vmatprep.subr.bf16.mxu0 0
        %2813 = vmatpush1.bf16.xpose.msra.mxu0 %v2792
        %2814 = vmatprep.subr.bf16.mxu0 0
        %2815 = vmatpush1.bf16.xpose.msra.mxu0 %v2795
        %2816 = vmatprep.subr.bf16.mxu0 0
        %2817 = vmatpush1.bf16.xpose.msra.mxu0 %v2798
        %2818 = vmatprep.subr.bf16.mxu0 0
        %2819 = vmatpush1.bf16.xpose.msra.mxu0 %v2801
        %2820 = vmatprep.subr.bf16.mxu0 0
        %2821 = vmatpush1.bf16.xpose.msra.mxu0 %v2804
        %2822 = vmatprep.subr.bf16.mxu0 0
        %2823 = vmatpush1.bf16.xpose.msra.mxu0 0
        %2824 = vmatprep.subr.bf16.mxu0 0
        %2825 = vmatpush1.bf16.xpose.msra.mxu0 0
        %2826 = vmatprep.subr.bf16.mxu0 0
        %2827 = vmatpush1.bf16.xpose.msra.mxu0 0
        %2828 = vmatprep.subr.bf16.mxu0 0
        %2829 = vmatpush1.bf16.xpose.msra.mxu0 0
        %2830 = vmatprep.subr.bf16.mxu0 0
        %2831 = vmatpush1.bf16.xpose.msra.mxu0 0
        %2832 = vmatprep.subr.bf16.mxu0 0
        %2833 = vmatpush1.bf16.xpose.msra.mxu0 0
        %2834 = vmatprep.subr.bf16.mxu0 0
        %2835 = vmatpush1.bf16.xpose.msra.mxu0 0
        %2836 = vmatprep.subr.bf16.mxu0 0
        %2837 = vmatpush1.bf16.xpose.msra.mxu0 0
        %2838 = vmatprep.mubr.bf16.mxu0 0
        %2839 = vmatmul.mubr.bf16.gmra.mrb[0].mxu0 %v2777
        %v2840 = vpop.f32.mrb[0].mxu0
        %v2841 = vadd.f32 0.0, %v2840
        %v2842 = vpop.f32.mrb[0].mxu0
        %v2843 = vpop.f32.mrb[0].mxu0
        %v2844 = vadd.f32 0.0, %v2843
        %v2845 = vpop.f32.mrb[0].mxu0
        %2846 = vmatprep.mubr.bf16.mxu0 0
        %2847 = vmatmul.mubr.bf16.gmra.mrb[0].mxu0 %v2780
        %v2848 = vpop.f32.mrb[0].mxu0
        %v2849 = vadd.f32 0.0, %v2848
        %v2850 = vpop.f32.mrb[0].mxu0
        %v2851 = vpop.f32.mrb[0].mxu0
        %v2852 = vadd.f32 0.0, %v2851
        %v2853 = vpop.f32.mrb[0].mxu0
        %2854 = vdwg.mxu0
        %s2856 = sor.u32 256, 121
        %2857 = vrot.lane.b32.xlu0 %v2841, %s2856
        %v2858 = vpop.permute.xlu0 %2857
        %s2860 = sor.u32 256, 121
        %2861 = vrot.lane.b32.xlu0 %v2844, %s2860
        %v2862 = vpop.permute.xlu0 %2861
        %s2864 = sor.u32 256, 121
        %2865 = vrot.lane.b32.xlu0 %v2849, %s2864
        %v2866 = vpop.permute.xlu0 %2865
        %s2868 = sor.u32 256, 121
        %2869 = vrot.lane.b32.xlu0 %v2852, %s2868
        %v2870 = vpop.permute.xlu0 %2869
        %v2872 = vsel %vm2775, %v2745, 0
        %v2875 = vsel %vm2775, %v2749, 0
        %2877 = vmatprep.subr.bf16.mxu0 0
        %2878 = vmatpush1.bf16.xpose.msra.mxu0 %v2875
        %2879 = vmatprep.subr.bf16.mxu0 0
        %2880 = vmatpush1.bf16.xpose.msra.mxu0 0
        %2881 = vmatprep.subr.bf16.mxu0 0
        %2882 = vmatpush1.bf16.xpose.msra.mxu0 0
        %2883 = vmatprep.subr.bf16.mxu0 0
        %2884 = vmatpush1.bf16.xpose.msra.mxu0 0
        %2885 = vmatprep.subr.bf16.mxu0 0
        %2886 = vmatpush1.bf16.xpose.msra.mxu0 0
        %2887 = vmatprep.subr.bf16.mxu0 0
        %2888 = vmatpush1.bf16.xpose.msra.mxu0 0
        %2889 = vmatprep.subr.bf16.mxu0 0
        %2890 = vmatpush1.bf16.xpose.msra.mxu0 0
        %2891 = vmatprep.subr.bf16.mxu0 0
        %2892 = vmatpush1.bf16.xpose.msra.mxu0 0
        %2893 = vmatprep.subr.bf16.mxu0 0
        %2894 = vmatpush1.bf16.xpose.msra.mxu0 0
        %2895 = vmatprep.subr.bf16.mxu0 0
        %2896 = vmatpush1.bf16.xpose.msra.mxu0 0
        %2897 = vmatprep.subr.bf16.mxu0 0
        %2898 = vmatpush1.bf16.xpose.msra.mxu0 0
        %2899 = vmatprep.subr.bf16.mxu0 0
        %2900 = vmatpush1.bf16.xpose.msra.mxu0 0
        %2901 = vmatprep.subr.bf16.mxu0 0
        %2902 = vmatpush1.bf16.xpose.msra.mxu0 0
        %2903 = vmatprep.subr.bf16.mxu0 0
        %2904 = vmatpush1.bf16.xpose.msra.mxu0 0
        %2905 = vmatprep.subr.bf16.mxu0 0
        %2906 = vmatpush1.bf16.xpose.msra.mxu0 0
        %2907 = vmatprep.subr.bf16.mxu0 0
        %2908 = vmatpush1.bf16.xpose.msra.mxu0 0
        %2909 = vmatprep.mubr.bf16.mxu0 0
        %2910 = vmatmul.mubr.bf16.gmra.mrb[0].mxu0 %v2872
        %v2911 = vpop.f32.mrb[0].mxu0
        %v2912 = vadd.f32 %v2858, %v2911
        %v2913 = vpop.f32.mrb[0].mxu0
        %v2914 = vpop.f32.mrb[0].mxu0
        %v2915 = vpop.f32.mrb[0].mxu0
        %2916 = vdwg.mxu0
        %v2918 = vsel %vm2775, %v2746, 0
        %v2921 = vsel %vm2775, %v2750, 0
        %2923 = vmatprep.subr.bf16.mxu0 0
        %2924 = vmatpush1.bf16.xpose.msra.mxu0 %v2921
        %2925 = vmatprep.subr.bf16.mxu0 0
        %2926 = vmatpush1.bf16.xpose.msra.mxu0 0
        %2927 = vmatprep.subr.bf16.mxu0 0
        %2928 = vmatpush1.bf16.xpose.msra.mxu0 0
        %2929 = vmatprep.subr.bf16.mxu0 0
        %2930 = vmatpush1.bf16.xpose.msra.mxu0 0
        %2931 = vmatprep.subr.bf16.mxu0 0
        %2932 = vmatpush1.bf16.xpose.msra.mxu0 0
        %2933 = vmatprep.subr.bf16.mxu0 0
        %2934 = vmatpush1.bf16.xpose.msra.mxu0 0
        %2935 = vmatprep.subr.bf16.mxu0 0
        %2936 = vmatpush1.bf16.xpose.msra.mxu0 0
        %2937 = vmatprep.subr.bf16.mxu0 0
        %2938 = vmatpush1.bf16.xpose.msra.mxu0 0
        %2939 = vmatprep.subr.bf16.mxu0 0
        %2940 = vmatpush1.bf16.xpose.msra.mxu0 0
        %2941 = vmatprep.subr.bf16.mxu0 0
        %2942 = vmatpush1.bf16.xpose.msra.mxu0 0
        %2943 = vmatprep.subr.bf16.mxu0 0
        %2944 = vmatpush1.bf16.xpose.msra.mxu0 0
        %2945 = vmatprep.subr.bf16.mxu0 0
        %2946 = vmatpush1.bf16.xpose.msra.mxu0 0
        %2947 = vmatprep.subr.bf16.mxu0 0
        %2948 = vmatpush1.bf16.xpose.msra.mxu0 0
        %2949 = vmatprep.subr.bf16.mxu0 0
        %2950 = vmatpush1.bf16.xpose.msra.mxu0 0
        %2951 = vmatprep.subr.bf16.mxu0 0
        %2952 = vmatpush1.bf16.xpose.msra.mxu0 0
        %2953 = vmatprep.subr.bf16.mxu0 0
        %2954 = vmatpush1.bf16.xpose.msra.mxu0 0
        %2955 = vmatprep.mubr.bf16.mxu0 0
        %2956 = vmatmul.mubr.bf16.gmra.mrb[0].mxu0 %v2918
        %v2957 = vpop.f32.mrb[0].mxu0
        %v2958 = vadd.f32 %v2862, %v2957
        %v2959 = vpop.f32.mrb[0].mxu0
        %v2960 = vpop.f32.mrb[0].mxu0
        %v2961 = vpop.f32.mrb[0].mxu0
        %2962 = vdwg.mxu0
        %v2964 = vsel %vm2775, %v2747, 0
        %v2967 = vsel %vm2775, %v2751, 0
        %2969 = vmatprep.subr.bf16.mxu0 0
        %2970 = vmatpush1.bf16.xpose.msra.mxu0 %v2967
        %2971 = vmatprep.subr.bf16.mxu0 0
        %2972 = vmatpush1.bf16.xpose.msra.mxu0 0
        %2973 = vmatprep.subr.bf16.mxu0 0
        %2974 = vmatpush1.bf16.xpose.msra.mxu0 0
        %2975 = vmatprep.subr.bf16.mxu0 0
        %2976 = vmatpush1.bf16.xpose.msra.mxu0 0
        %2977 = vmatprep.subr.bf16.mxu0 0
        %2978 = vmatpush1.bf16.xpose.msra.mxu0 0
        %2979 = vmatprep.subr.bf16.mxu0 0
        %2980 = vmatpush1.bf16.xpose.msra.mxu0 0
        %2981 = vmatprep.subr.bf16.mxu0 0
        %2982 = vmatpush1.bf16.xpose.msra.mxu0 0
        %2983 = vmatprep.subr.bf16.mxu0 0
        %2984 = vmatpush1.bf16.xpose.msra.mxu0 0
        %2985 = vmatprep.subr.bf16.mxu0 0
        %2986 = vmatpush1.bf16.xpose.msra.mxu0 0
        %2987 = vmatprep.subr.bf16.mxu0 0
        %2988 = vmatpush1.bf16.xpose.msra.mxu0 0
        %2989 = vmatprep.subr.bf16.mxu0 0
        %2990 = vmatpush1.bf16.xpose.msra.mxu0 0
        %2991 = vmatprep.subr.bf16.mxu0 0
        %2992 = vmatpush1.bf16.xpose.msra.mxu0 0
        %2993 = vmatprep.subr.bf16.mxu0 0
        %2994 = vmatpush1.bf16.xpose.msra.mxu0 0
        %2995 = vmatprep.subr.bf16.mxu0 0
        %2996 = vmatpush1.bf16.xpose.msra.mxu0 0
        %2997 = vmatprep.subr.bf16.mxu0 0
        %2998 = vmatpush1.bf16.xpose.msra.mxu0 0
        %2999 = vmatprep.subr.bf16.mxu0 0
        %3000 = vmatpush1.bf16.xpose.msra.mxu0 0
        %3001 = vmatprep.mubr.bf16.mxu0 0
        %3002 = vmatmul.mubr.bf16.gmra.mrb[0].mxu0 %v2964
        %v3003 = vpop.f32.mrb[0].mxu0
        %v3004 = vadd.f32 %v2866, %v3003
        %v3005 = vpop.f32.mrb[0].mxu0
        %v3006 = vpop.f32.mrb[0].mxu0
        %v3007 = vpop.f32.mrb[0].mxu0
        %3008 = vdwg.mxu0
        %v3010 = vsel %vm2775, %v2748, 0
        %v3013 = vsel %vm2775, %v2752, 0
        %3015 = vmatprep.subr.bf16.mxu0 0
        %3016 = vmatpush1.bf16.xpose.msra.mxu0 %v3013
        %3017 = vmatprep.subr.bf16.mxu0 0
        %3018 = vmatpush1.bf16.xpose.msra.mxu0 0
        %3019 = vmatprep.subr.bf16.mxu0 0
        %3020 = vmatpush1.bf16.xpose.msra.mxu0 0
        %3021 = vmatprep.subr.bf16.mxu0 0
        %3022 = vmatpush1.bf16.xpose.msra.mxu0 0
        %3023 = vmatprep.subr.bf16.mxu0 0
        %3024 = vmatpush1.bf16.xpose.msra.mxu0 0
        %3025 = vmatprep.subr.bf16.mxu0 0
        %3026 = vmatpush1.bf16.xpose.msra.mxu0 0
        %3027 = vmatprep.subr.bf16.mxu0 0
        %3028 = vmatpush1.bf16.xpose.msra.mxu0 0
        %3029 = vmatprep.subr.bf16.mxu0 0
        %3030 = vmatpush1.bf16.xpose.msra.mxu0 0
        %3031 = vmatprep.subr.bf16.mxu0 0
        %3032 = vmatpush1.bf16.xpose.msra.mxu0 0
        %3033 = vmatprep.subr.bf16.mxu0 0
        %3034 = vmatpush1.bf16.xpose.msra.mxu0 0
        %3035 = vmatprep.subr.bf16.mxu0 0
        %3036 = vmatpush1.bf16.xpose.msra.mxu0 0
        %3037 = vmatprep.subr.bf16.mxu0 0
        %3038 = vmatpush1.bf16.xpose.msra.mxu0 0
        %3039 = vmatprep.subr.bf16.mxu0 0
        %3040 = vmatpush1.bf16.xpose.msra.mxu0 0
        %3041 = vmatprep.subr.bf16.mxu0 0
        %3042 = vmatpush1.bf16.xpose.msra.mxu0 0
        %3043 = vmatprep.subr.bf16.mxu0 0
        %3044 = vmatpush1.bf16.xpose.msra.mxu0 0
        %3045 = vmatprep.subr.bf16.mxu0 0
        %3046 = vmatpush1.bf16.xpose.msra.mxu0 0
        %3047 = vmatprep.mubr.bf16.mxu0 0
        %3048 = vmatmul.mubr.bf16.gmra.mrb[0].mxu0 %v3010
        %v3049 = vpop.f32.mrb[0].mxu0
        %v3050 = vadd.f32 %v2870, %v3049
        %v3051 = vpop.f32.mrb[0].mxu0
        %v3052 = vpop.f32.mrb[0].mxu0
        %v3053 = vpop.f32.mrb[0].mxu0
        %3054 = vdwg.mxu0
        %v3055 = vmul.f32 %v2912, 0.35355338
        %v3056 = vmul.f32 %v2958, 0.35355338
        %v3057 = vmul.f32 %v3004, 0.35355338
        %v3058 = vmul.f32 %v3050, 0.35355338
        %v3059 = vld [vmem:[%s1214] sm:$0x1]
        %v3061 = vlaneseq
        %v3062 = vshrl.u32 %v3061, 7
        %v3063 = vsub.s32 0, %v3062
        %v3064 = vrot.slane %v3059, %v3063
        %v3066 = vadd.f32 %v3055, %v3064
        %v3067 = vadd.f32 %v3056, %v3064
        %v3068 = vadd.f32 %v3057, %v3064
        %v3069 = vadd.f32 %v3058, %v3064
        %v3070 = vsel %vm2775, %v3066, -inf
        %3071 = vmax.xlane.f32.xlu0 %v3070
        %v3072 = vpop.xlane.xlu0 %3071
        %v3073 = vsel %vm2775, %v3067, -inf
        %3074 = vmax.xlane.f32.xlu0 %v3073
        %v3075 = vpop.xlane.xlu0 %3074
        %v3076 = vsel %vm2775, %v3068, -inf
        %3077 = vmax.xlane.f32.xlu0 %v3076
        %v3078 = vpop.xlane.xlu0 %3077
        %v3079 = vsel %vm2775, %v3069, -inf
        %3080 = vmax.xlane.f32.xlu0 %v3079
        %v3081 = vpop.xlane.xlu0 %3080
        %v3082 = vsub.f32 %v3066, %v3072
        %v3083 = vsub.f32 %v3067, %v3075
        %v3084 = vsub.f32 %v3068, %v3078
        %v3085 = vsub.f32 %v3069, %v3081
        %v3086 = vmul.f32 %v3082, 1.442695
        %v3087 = vpow.pop %v3086
        %v3088 = vmul.f32 %v3083, 1.442695
        %v3089 = vpow.pop %v3088
        %v3090 = vmul.f32 %v3084, 1.442695
        %v3091 = vpow.pop %v3090
        %v3092 = vmul.f32 %v3085, 1.442695
        %v3093 = vpow.pop %v3092
        %v3094 = vsel %vm2775, %v3087, 0.0
        %3095 = vadd.xlane.f32.xlu0 %v3094
        %v3096 = vpop.xlane.xlu0 %3095
        %v3097 = vsel %vm2775, %v3089, 0.0
        %3098 = vadd.xlane.f32.xlu0 %v3097
        %v3099 = vpop.xlane.xlu0 %3098
        %v3100 = vsel %vm2775, %v3091, 0.0
        %3101 = vadd.xlane.f32.xlu0 %v3100
        %v3102 = vpop.xlane.xlu0 %3101
        %v3103 = vsel %vm2775, %v3093, 0.0
        %3104 = vadd.xlane.f32.xlu0 %v3103
        %v3105 = vpop.xlane.xlu0 %3104
        %v3106 = vrcp.pop %v3096
        %v3107 = vrcp.pop %v3099
        %v3108 = vrcp.pop %v3102
        %v3109 = vrcp.pop %v3105
        %v3110 = vmul.f32 %v3087, %v3106
        %v3111 = vmul.f32 %v3089, %v3107
        %v3112 = vmul.f32 %v3091, %v3108
        %v3113 = vmul.f32 %v3093, %v3109
        %v3114 = vpack.c.bf16 %v3110, %v3110
        %v3115 = vpack.c.bf16 %v3111, %v3111
        %v3116 = vpack.c.bf16 %v3112, %v3112
        %v3117 = vpack.c.bf16 %v3113, %v3113
        %v3119 = vsel %vm2775, %v3114, 0
        %vm3121 = vcmask 1043456
        %v3123 = vsel %vm3121, %v2753, 0
        %3125 = vmatprep.subr.bf16.mxu0 0
        %3126 = vmatpush1.bf16.msra.mxu0 %v3123
        %3127 = vmatprep.subr.bf16.mxu0 0
        %3128 = vmatpush1.bf16.msra.mxu0 0
        %3129 = vmatprep.subr.bf16.mxu0 0
        %3130 = vmatpush1.bf16.msra.mxu0 0
        %3131 = vmatprep.subr.bf16.mxu0 0
        %3132 = vmatpush1.bf16.msra.mxu0 0
        %3133 = vmatprep.subr.bf16.mxu0 0
        %3134 = vmatpush1.bf16.msra.mxu0 0
        %3135 = vmatprep.subr.bf16.mxu0 0
        %3136 = vmatpush1.bf16.msra.mxu0 0
        %3137 = vmatprep.subr.bf16.mxu0 0
        %3138 = vmatpush1.bf16.msra.mxu0 0
        %3139 = vmatprep.subr.bf16.mxu0 0
        %3140 = vmatpush1.bf16.msra.mxu0 0
        %3141 = vmatprep.subr.bf16.mxu0 0
        %3142 = vmatpush1.bf16.msra.mxu0 0
        %3143 = vmatprep.subr.bf16.mxu0 0
        %3144 = vmatpush1.bf16.msra.mxu0 0
        %3145 = vmatprep.subr.bf16.mxu0 0
        %3146 = vmatpush1.bf16.msra.mxu0 0
        %3147 = vmatprep.subr.bf16.mxu0 0
        %3148 = vmatpush1.bf16.msra.mxu0 0
        %3149 = vmatprep.subr.bf16.mxu0 0
        %3150 = vmatpush1.bf16.msra.mxu0 0
        %3151 = vmatprep.subr.bf16.mxu0 0
        %3152 = vmatpush1.bf16.msra.mxu0 0
        %3153 = vmatprep.subr.bf16.mxu0 0
        %3154 = vmatpush1.bf16.msra.mxu0 0
        %3155 = vmatprep.subr.bf16.mxu0 0
        %3156 = vmatpush1.bf16.msra.mxu0 0
        %3157 = vmatprep.mubr.bf16.mxu0 0
        %3158 = vmatmul.mubr.bf16.gmra.mrb[0].mxu0 %v3119
        %v3159 = vpop.f32.mrb[0].mxu0
        %v3160 = vadd.f32 0.0, %v3159
        %v3161 = vpop.f32.mrb[0].mxu0
        %v3162 = vpop.f32.mrb[0].mxu0
        %v3163 = vpop.f32.mrb[0].mxu0
        %3164 = vdwg.mxu0
        %v3166 = vsel %vm2775, %v3115, 0
        %v3169 = vsel %vm3121, %v2754, 0
        %3171 = vmatprep.subr.bf16.mxu0 0
        %3172 = vmatpush1.bf16.msra.mxu0 %v3169
        %3173 = vmatprep.subr.bf16.mxu0 0
        %3174 = vmatpush1.bf16.msra.mxu0 0
        %3175 = vmatprep.subr.bf16.mxu0 0
        %3176 = vmatpush1.bf16.msra.mxu0 0
        %3177 = vmatprep.subr.bf16.mxu0 0
        %3178 = vmatpush1.bf16.msra.mxu0 0
        %3179 = vmatprep.subr.bf16.mxu0 0
        %3180 = vmatpush1.bf16.msra.mxu0 0
        %3181 = vmatprep.subr.bf16.mxu0 0
        %3182 = vmatpush1.bf16.msra.mxu0 0
        %3183 = vmatprep.subr.bf16.mxu0 0
        %3184 = vmatpush1.bf16.msra.mxu0 0
        %3185 = vmatprep.subr.bf16.mxu0 0
        %3186 = vmatpush1.bf16.msra.mxu0 0
        %3187 = vmatprep.subr.bf16.mxu0 0
        %3188 = vmatpush1.bf16.msra.mxu0 0
        %3189 = vmatprep.subr.bf16.mxu0 0
        %3190 = vmatpush1.bf16.msra.mxu0 0
        %3191 = vmatprep.subr.bf16.mxu0 0
        %3192 = vmatpush1.bf16.msra.mxu0 0
        %3193 = vmatprep.subr.bf16.mxu0 0
        %3194 = vmatpush1.bf16.msra.mxu0 0
        %3195 = vmatprep.subr.bf16.mxu0 0
        %3196 = vmatpush1.bf16.msra.mxu0 0
        %3197 = vmatprep.subr.bf16.mxu0 0
        %3198 = vmatpush1.bf16.msra.mxu0 0
        %3199 = vmatprep.subr.bf16.mxu0 0
        %3200 = vmatpush1.bf16.msra.mxu0 0
        %3201 = vmatprep.subr.bf16.mxu0 0
        %3202 = vmatpush1.bf16.msra.mxu0 0
        %3203 = vmatprep.mubr.bf16.mxu0 0
        %3204 = vmatmul.mubr.bf16.gmra.mrb[0].mxu0 %v3166
        %v3205 = vpop.f32.mrb[0].mxu0
        %v3206 = vadd.f32 0.0, %v3205
        %v3207 = vpop.f32.mrb[0].mxu0
        %v3208 = vpop.f32.mrb[0].mxu0
        %v3209 = vpop.f32.mrb[0].mxu0
        %3210 = vdwg.mxu0
        %v3212 = vsel %vm2775, %v3116, 0
        %v3215 = vsel %vm3121, %v2755, 0
        %3217 = vmatprep.subr.bf16.mxu0 0
        %3218 = vmatpush1.bf16.msra.mxu0 %v3215
        %3219 = vmatprep.subr.bf16.mxu0 0
        %3220 = vmatpush1.bf16.msra.mxu0 0
        %3221 = vmatprep.subr.bf16.mxu0 0
        %3222 = vmatpush1.bf16.msra.mxu0 0
        %3223 = vmatprep.subr.bf16.mxu0 0
        %3224 = vmatpush1.bf16.msra.mxu0 0
        %3225 = vmatprep.subr.bf16.mxu0 0
        %3226 = vmatpush1.bf16.msra.mxu0 0
        %3227 = vmatprep.subr.bf16.mxu0 0
        %3228 = vmatpush1.bf16.msra.mxu0 0
        %3229 = vmatprep.subr.bf16.mxu0 0
        %3230 = vmatpush1.bf16.msra.mxu0 0
        %3231 = vmatprep.subr.bf16.mxu0 0
        %3232 = vmatpush1.bf16.msra.mxu0 0
        %3233 = vmatprep.subr.bf16.mxu0 0
        %3234 = vmatpush1.bf16.msra.mxu0 0
        %3235 = vmatprep.subr.bf16.mxu0 0
        %3236 = vmatpush1.bf16.msra.mxu0 0
        %3237 = vmatprep.subr.bf16.mxu0 0
        %3238 = vmatpush1.bf16.msra.mxu0 0
        %3239 = vmatprep.subr.bf16.mxu0 0
        %3240 = vmatpush1.bf16.msra.mxu0 0
        %3241 = vmatprep.subr.bf16.mxu0 0
        %3242 = vmatpush1.bf16.msra.mxu0 0
        %3243 = vmatprep.subr.bf16.mxu0 0
        %3244 = vmatpush1.bf16.msra.mxu0 0
        %3245 = vmatprep.subr.bf16.mxu0 0
        %3246 = vmatpush1.bf16.msra.mxu0 0
        %3247 = vmatprep.subr.bf16.mxu0 0
        %3248 = vmatpush1.bf16.msra.mxu0 0
        %3249 = vmatprep.mubr.bf16.mxu0 0
        %3250 = vmatmul.mubr.bf16.gmra.mrb[0].mxu0 %v3212
        %v3251 = vpop.f32.mrb[0].mxu0
        %v3252 = vadd.f32 0.0, %v3251
        %v3253 = vpop.f32.mrb[0].mxu0
        %v3254 = vpop.f32.mrb[0].mxu0
        %v3255 = vpop.f32.mrb[0].mxu0
        %3256 = vdwg.mxu0
        %v3258 = vsel %vm2775, %v3117, 0
        %v3261 = vsel %vm3121, %v2756, 0
        %3263 = vmatprep.subr.bf16.mxu0 0
        %3264 = vmatpush1.bf16.msra.mxu0 %v3261
        %3265 = vmatprep.subr.bf16.mxu0 0
        %3266 = vmatpush1.bf16.msra.mxu0 0
        %3267 = vmatprep.subr.bf16.mxu0 0
        %3268 = vmatpush1.bf16.msra.mxu0 0
        %3269 = vmatprep.subr.bf16.mxu0 0
        %3270 = vmatpush1.bf16.msra.mxu0 0
        %3271 = vmatprep.subr.bf16.mxu0 0
        %3272 = vmatpush1.bf16.msra.mxu0 0
        %3273 = vmatprep.subr.bf16.mxu0 0
        %3274 = vmatpush1.bf16.msra.mxu0 0
        %3275 = vmatprep.subr.bf16.mxu0 0
        %3276 = vmatpush1.bf16.msra.mxu0 0
        %3277 = vmatprep.subr.bf16.mxu0 0
        %3278 = vmatpush1.bf16.msra.mxu0 0
        %3279 = vmatprep.subr.bf16.mxu0 0
        %3280 = vmatpush1.bf16.msra.mxu0 0
        %3281 = vmatprep.subr.bf16.mxu0 0
        %3282 = vmatpush1.bf16.msra.mxu0 0
        %3283 = vmatprep.subr.bf16.mxu0 0
        %3284 = vmatpush1.bf16.msra.mxu0 0
        %3285 = vmatprep.subr.bf16.mxu0 0
        %3286 = vmatpush1.bf16.msra.mxu0 0
        %3287 = vmatprep.subr.bf16.mxu0 0
        %3288 = vmatpush1.bf16.msra.mxu0 0
        %3289 = vmatprep.subr.bf16.mxu0 0
        %3290 = vmatpush1.bf16.msra.mxu0 0
        %3291 = vmatprep.subr.bf16.mxu0 0
        %3292 = vmatpush1.bf16.msra.mxu0 0
        %3293 = vmatprep.subr.bf16.mxu0 0
        %3294 = vmatpush1.bf16.msra.mxu0 0
        %3295 = vmatprep.mubr.bf16.mxu0 0
        %3296 = vmatmul.mubr.bf16.gmra.mrb[0].mxu0 %v3258
        %v3297 = vpop.f32.mrb[0].mxu0
        %v3298 = vadd.f32 0.0, %v3297
        %v3299 = vpop.f32.mrb[0].mxu0
        %v3300 = vpop.f32.mrb[0].mxu0
        %v3301 = vpop.f32.mrb[0].mxu0
        %3302 = vdwg.mxu0
        %3304 = vrot.lane.b32.xlu0 %v3206, 8
        %v3305 = vpop.permute.xlu0 %3304
        %3308 = vrot.lane.b32.xlu0 %v3252, 16
        %v3309 = vpop.permute.xlu0 %3308
        %3312 = vrot.lane.b32.xlu0 %v3298, 24
        %v3313 = vpop.permute.xlu0 %3312
        %v3315 = vsel %vm2775, %v3160, %v3305
        %vm3316 = vcmask 130048
        %v3317 = vsel %vm3316, %v3315, %v3309
        %vm3318 = vcmask 195584
        %v3319 = vsel %vm3318, %v3317, %v3313
        %v3320 = vpack.c.bf16 %v3319, %v3319
        %v3321 = vld [vmem:[%s1228] sm:$0xf]
        %v3322 = vld [vmem:[%s1228 + $0x4] sm:$0xf]
        %v3323 = vld [vmem:[%s1228 + $0x8] sm:$0xf]
        %v3324 = vld [vmem:[%s1228 + $0xc] sm:$0xf]
        %v3325 = vld [vmem:[%s1231] sm:$0x1]
        %v3327 = vlaneseq
        %v3328 = vshrl.u32 %v3327, 7
        %v3329 = vsub.s32 0, %v3328
        %v3330 = vrot.slane %v3325, %v3329
        %v3336 = vunpack.c.l.b16 %v3321
        %v3337 = vunpack.c.l.b16 %v3322
        %v3338 = vunpack.c.l.b16 %v3323
        %v3339 = vunpack.c.l.b16 %v3324
        %v3340 = vpack.c.b16 %v3337, %v3336
        %v3341 = vpack.c.b16 %v3339, %v3338
        %v3345 = vsel %vm1954, %v3320, 0
        %3347 = vmatprep.subr.bf16.mxu0 0
        %3348 = vmatpush1.bf16.msra.mxu0 %v3340
        %3349 = vmatprep.subr.bf16.mxu0 0
        %3350 = vmatpush1.bf16.msra.mxu0 %v3341
        %3351 = vmatprep.subr.bf16.mxu0 0
        %3352 = vmatpush1.bf16.msra.mxu0 0
        %3353 = vmatprep.subr.bf16.mxu0 0
        %3354 = vmatpush1.bf16.msra.mxu0 0
        %3355 = vmatprep.subr.bf16.mxu0 0
        %3356 = vmatpush1.bf16.msra.mxu0 0
        %3357 = vmatprep.subr.bf16.mxu0 0
        %3358 = vmatpush1.bf16.msra.mxu0 0
        %3359 = vmatprep.subr.bf16.mxu0 0
        %3360 = vmatpush1.bf16.msra.mxu0 0
        %3361 = vmatprep.subr.bf16.mxu0 0
        %3362 = vmatpush1.bf16.msra.mxu0 0
        %3363 = vmatprep.subr.bf16.mxu0 0
        %3364 = vmatpush1.bf16.msra.mxu0 0
        %3365 = vmatprep.subr.bf16.mxu0 0
        %3366 = vmatpush1.bf16.msra.mxu0 0
        %3367 = vmatprep.subr.bf16.mxu0 0
        %3368 = vmatpush1.bf16.msra.mxu0 0
        %3369 = vmatprep.subr.bf16.mxu0 0
        %3370 = vmatpush1.bf16.msra.mxu0 0
        %3371 = vmatprep.subr.bf16.mxu0 0
        %3372 = vmatpush1.bf16.msra.mxu0 0
        %3373 = vmatprep.subr.bf16.mxu0 0
        %3374 = vmatpush1.bf16.msra.mxu0 0
        %3375 = vmatprep.subr.bf16.mxu0 0
        %3376 = vmatpush1.bf16.msra.mxu0 0
        %3377 = vmatprep.subr.bf16.mxu0 0
        %3378 = vmatpush1.bf16.msra.mxu0 0
        %3379 = vmatprep.mubr.bf16.mxu0 0
        %3380 = vmatmul.mubr.bf16.gmra.mrb[0].mxu0 %v3345
        %v3381 = vpop.f32.mrb[0].mxu0
        %v3382 = vadd.f32 %v3330, %v3381
        %v3383 = vpop.f32.mrb[0].mxu0
        %v3384 = vpop.f32.mrb[0].mxu0
        %v3385 = vpop.f32.mrb[0].mxu0
        %3386 = vdwg.mxu0
        %v3387 = vadd.f32 %v1953, %v3382
        %v3388 = vsel %vm1954, %v3387, 0.0
        %3389 = vadd.xlane.f32.xlu0 %v3388
        %v3390 = vpop.xlane.xlu0 %3389
        %v3391 = vmul.f32 %v3390, %v1958
        %v3392 = vsub.f32 %v3387, %v3391
        %v3393 = vmul.f32 %v3392, %v3392
        %v3394 = vsel %vm1954, %v3393, 0.0
        %3395 = vadd.xlane.f32.xlu0 %v3394
        %v3396 = vpop.xlane.xlu0 %3395
        %v3397 = vmul.f32 %v3396, %v1958
        %v3398 = vadd.f32 %v3397, 1e-05
        %v3399 = vrsqrt.pop %v3398
        %v3400 = vmul.f32 %v3392, %v3399
        %v3401 = vmul.f32 %v3400, %v1974
        %v3402 = vadd.f32 %v3401, %v1982
        %v3403 = vpack.c.bf16 %v3402, %v3402
        %v3404 = vld [vmem:[%s1236] sm:$0xf]
        %v3405 = vld [vmem:[%s1236 + $0x4] sm:$0xf]
        %v3406 = vld [vmem:[%s1236 + $0x8] sm:$0xf]
        %v3407 = vld [vmem:[%s1236 + $0xc] sm:$0xf]
        %v3408 = vld [vmem:[%s1239] sm:$0x1]
        %v3410 = vlaneseq
        %v3411 = vshrl.u32 %v3410, 7
        %v3412 = vsub.s32 0, %v3411
        %v3413 = vrot.slane %v3408, %v3412
        %v3419 = vunpack.c.l.b16 %v3404
        %v3420 = vunpack.c.l.b16 %v3405
        %v3421 = vunpack.c.l.b16 %v3406
        %v3422 = vunpack.c.l.b16 %v3407
        %v3423 = vpack.c.b16 %v3420, %v3419
        %v3424 = vpack.c.b16 %v3422, %v3421
        %v3428 = vsel %vm1954, %v3403, 0
        %3430 = vmatprep.subr.bf16.mxu0 0
        %3431 = vmatpush1.bf16.msra.mxu0 %v3423
        %3432 = vmatprep.subr.bf16.mxu0 0
        %3433 = vmatpush1.bf16.msra.mxu0 %v3424
        %3434 = vmatprep.subr.bf16.mxu0 0
        %3435 = vmatpush1.bf16.msra.mxu0 0
        %3436 = vmatprep.subr.bf16.mxu0 0
        %3437 = vmatpush1.bf16.msra.mxu0 0
        %3438 = vmatprep.subr.bf16.mxu0 0
        %3439 = vmatpush1.bf16.msra.mxu0 0
        %3440 = vmatprep.subr.bf16.mxu0 0
        %3441 = vmatpush1.bf16.msra.mxu0 0
        %3442 = vmatprep.subr.bf16.mxu0 0
        %3443 = vmatpush1.bf16.msra.mxu0 0
        %3444 = vmatprep.subr.bf16.mxu0 0
        %3445 = vmatpush1.bf16.msra.mxu0 0
        %3446 = vmatprep.subr.bf16.mxu0 0
        %3447 = vmatpush1.bf16.msra.mxu0 0
        %3448 = vmatprep.subr.bf16.mxu0 0
        %3449 = vmatpush1.bf16.msra.mxu0 0
        %3450 = vmatprep.subr.bf16.mxu0 0
        %3451 = vmatpush1.bf16.msra.mxu0 0
        %3452 = vmatprep.subr.bf16.mxu0 0
        %3453 = vmatpush1.bf16.msra.mxu0 0
        %3454 = vmatprep.subr.bf16.mxu0 0
        %3455 = vmatpush1.bf16.msra.mxu0 0
        %3456 = vmatprep.subr.bf16.mxu0 0
        %3457 = vmatpush1.bf16.msra.mxu0 0
        %3458 = vmatprep.subr.bf16.mxu0 0
        %3459 = vmatpush1.bf16.msra.mxu0 0
        %3460 = vmatprep.subr.bf16.mxu0 0
        %3461 = vmatpush1.bf16.msra.mxu0 0
        %3462 = vmatprep.mubr.bf16.mxu0 0
        %3463 = vmatmul.mubr.bf16.gmra.mrb[0].mxu0 %v3428
        %v3464 = vpop.f32.mrb[0].mxu0
        %v3465 = vadd.f32 %v3413, %v3464
        %v3466 = vpop.f32.mrb[0].mxu0
        %v3467 = vpop.f32.mrb[0].mxu0
        %v3468 = vpop.f32.mrb[0].mxu0
        %3469 = vdwg.mxu0
        %v3470 = vld [vmem:[%s1250] sm:$0x1]
        %vm3471 = vcmp.gt.f32.partialorder %v3465, 0.0
        %v3473 = vlaneseq
        %v3474 = vshrl.u32 %v3473, 7
        %v3475 = vsub.s32 0, %v3474
        %v3476 = vrot.slane %v3470, %v3475
        %3477 = vset.pattern.permute.xlu0 0
        %3478 = vperm.xlu0 %3477, %v3476
        %v3479 = vpop.permute.xlu0 %3478
        %v3481 = vmul.f32 %v3479, %v3465
        %v3482 = vsel %vm3471, %v3465, %v3481
        %v3483 = vpack.c.bf16 %v3482, %v3482
        %v3484 = vld [vmem:[%s1244] sm:$0xf]
        %v3485 = vld [vmem:[%s1244 + $0x4] sm:$0xf]
        %v3486 = vld [vmem:[%s1244 + $0x8] sm:$0xf]
        %v3487 = vld [vmem:[%s1244 + $0xc] sm:$0xf]
        %v3488 = vld [vmem:[%s1244 + $0x10] sm:$0xf]
        %v3489 = vld [vmem:[%s1244 + $0x14] sm:$0xf]
        %v3490 = vld [vmem:[%s1244 + $0x18] sm:$0xf]
        %v3491 = vld [vmem:[%s1244 + $0x1c] sm:$0xf]
        %v3492 = vld [vmem:[%s1247] sm:$0x1]
        %v3494 = vlaneseq
        %v3495 = vshrl.u32 %v3494, 7
        %v3496 = vsub.s32 0, %v3495
        %v3497 = vrot.slane %v3492, %v3496
        %v3507 = vunpack.c.l.b16 %v3484
        %v3508 = vunpack.c.l.b16 %v3485
        %v3509 = vunpack.c.l.b16 %v3486
        %v3510 = vunpack.c.l.b16 %v3487
        %v3511 = vunpack.c.l.b16 %v3488
        %v3512 = vunpack.c.l.b16 %v3489
        %v3513 = vunpack.c.l.b16 %v3490
        %v3514 = vunpack.c.l.b16 %v3491
        %v3515 = vpack.c.b16 %v3508, %v3507
        %v3516 = vpack.c.b16 %v3510, %v3509
        %v3517 = vpack.c.b16 %v3512, %v3511
        %v3518 = vpack.c.b16 %v3514, %v3513
        %vm3523 = vcmask 523264
        %v3525 = vsel %vm3523, %v3483, 0
        %3527 = vmatprep.subr.bf16.mxu0 0
        %3528 = vmatpush1.bf16.msra.mxu0 %v3515
        %3529 = vmatprep.subr.bf16.mxu0 0
        %3530 = vmatpush1.bf16.msra.mxu0 %v3516
        %3531 = vmatprep.subr.bf16.mxu0 0
        %3532 = vmatpush1.bf16.msra.mxu0 %v3517
        %3533 = vmatprep.subr.bf16.mxu0 0
        %3534 = vmatpush1.bf16.msra.mxu0 %v3518
        %3535 = vmatprep.subr.bf16.mxu0 0
        %3536 = vmatpush1.bf16.msra.mxu0 0
        %3537 = vmatprep.subr.bf16.mxu0 0
        %3538 = vmatpush1.bf16.msra.mxu0 0
        %3539 = vmatprep.subr.bf16.mxu0 0
        %3540 = vmatpush1.bf16.msra.mxu0 0
        %3541 = vmatprep.subr.bf16.mxu0 0
        %3542 = vmatpush1.bf16.msra.mxu0 0
        %3543 = vmatprep.subr.bf16.mxu0 0
        %3544 = vmatpush1.bf16.msra.mxu0 0
        %3545 = vmatprep.subr.bf16.mxu0 0
        %3546 = vmatpush1.bf16.msra.mxu0 0
        %3547 = vmatprep.subr.bf16.mxu0 0
        %3548 = vmatpush1.bf16.msra.mxu0 0
        %3549 = vmatprep.subr.bf16.mxu0 0
        %3550 = vmatpush1.bf16.msra.mxu0 0
        %3551 = vmatprep.subr.bf16.mxu0 0
        %3552 = vmatpush1.bf16.msra.mxu0 0
        %3553 = vmatprep.subr.bf16.mxu0 0
        %3554 = vmatpush1.bf16.msra.mxu0 0
        %3555 = vmatprep.subr.bf16.mxu0 0
        %3556 = vmatpush1.bf16.msra.mxu0 0
        %3557 = vmatprep.subr.bf16.mxu0 0
        %3558 = vmatpush1.bf16.msra.mxu0 0
        %3559 = vmatprep.mubr.bf16.mxu0 0
        %3560 = vmatmul.mubr.bf16.gmra.mrb[0].mxu0 %v3525
        %v3561 = vpop.f32.mrb[0].mxu0
        %v3562 = vadd.f32 %v3497, %v3561
        %v3563 = vpop.f32.mrb[0].mxu0
        %v3564 = vpop.f32.mrb[0].mxu0
        %v3565 = vpop.f32.mrb[0].mxu0
        %3566 = vdwg.mxu0
        %v3567 = vadd.f32 %v3387, %v3562
        %3568 = vst.msk [vmem:[#allocation2] sm:$0xff] %vm1954, %v3567
        %p3569 = scmp.eq.s32.totalorder %s88, 1
        // Predicated region
        $region161: #{tpu_custom_call.1} parent=155 // pred_check
          %p3570 = pneg %p3569
        $region162: #{tpu_custom_call.1} parent=155 // pred_check_branch
          %3572 = sbr.rel (%p3570) target = $region164
        $region163: #{tpu_custom_call.1} parent=155 // pred_region
          %v3573 = vpack.c.bf16 %v3567, %v3567
          %v3574 = vld [vmem:[%s37] sm:$0xf]
          %v3575 = vld [vmem:[%s37 + $0x4] sm:$0xf]
          %v3576 = vld [vmem:[%s37 + $0x8] sm:$0xf]
          %v3577 = vld [vmem:[%s37 + $0xc] sm:$0xf]
          %v3578 = vld [vmem:[%s39] sm:$0x1]
          %v3580 = vlaneseq
          %v3581 = vshrl.u32 %v3580, 7
          %v3582 = vsub.s32 0, %v3581
          %v3583 = vrot.slane %v3578, %v3582
          %v3589 = vunpack.c.l.b16 %v3574
          %v3590 = vunpack.c.l.b16 %v3575
          %v3591 = vunpack.c.l.b16 %v3576
          %v3592 = vunpack.c.l.b16 %v3577
          %v3593 = vpack.c.b16 %v3590, %v3589
          %v3594 = vpack.c.b16 %v3592, %v3591
          %v3598 = vsel %vm1954, %v3573, 0
          %3600 = vmatprep.subr.bf16.mxu0 0
          %3601 = vmatpush1.bf16.msra.mxu0 %v3593
          %3602 = vmatprep.subr.bf16.mxu0 0
          %3603 = vmatpush1.bf16.msra.mxu0 %v3594
          %3604 = vmatprep.subr.bf16.mxu0 0
          %3605 = vmatpush1.bf16.msra.mxu0 0
          %3606 = vmatprep.subr.bf16.mxu0 0
          %3607 = vmatpush1.bf16.msra.mxu0 0
          %3608 = vmatprep.subr.bf16.mxu0 0
          %3609 = vmatpush1.bf16.msra.mxu0 0
          %3610 = vmatprep.subr.bf16.mxu0 0
          %3611 = vmatpush1.bf16.msra.mxu0 0
          %3612 = vmatprep.subr.bf16.mxu0 0
          %3613 = vmatpush1.bf16.msra.mxu0 0
          %3614 = vmatprep.subr.bf16.mxu0 0
          %3615 = vmatpush1.bf16.msra.mxu0 0
          %3616 = vmatprep.subr.bf16.mxu0 0
          %3617 = vmatpush1.bf16.msra.mxu0 0
          %3618 = vmatprep.subr.bf16.mxu0 0
          %3619 = vmatpush1.bf16.msra.mxu0 0
          %3620 = vmatprep.subr.bf16.mxu0 0
          %3621 = vmatpush1.bf16.msra.mxu0 0
          %3622 = vmatprep.subr.bf16.mxu0 0
          %3623 = vmatpush1.bf16.msra.mxu0 0
          %3624 = vmatprep.subr.bf16.mxu0 0
          %3625 = vmatpush1.bf16.msra.mxu0 0
          %3626 = vmatprep.subr.bf16.mxu0 0
          %3627 = vmatpush1.bf16.msra.mxu0 0
          %3628 = vmatprep.subr.bf16.mxu0 0
          %3629 = vmatpush1.bf16.msra.mxu0 0
          %3630 = vmatprep.subr.bf16.mxu0 0
          %3631 = vmatpush1.bf16.msra.mxu0 0
          %3632 = vmatprep.mubr.bf16.mxu0 0
          %3633 = vmatmul.mubr.bf16.gmra.mrb[0].mxu0 %v3598
          %v3634 = vpop.f32.mrb[0].mxu0
          %v3635 = vadd.f32 %v3583, %v3634
          %v3636 = vpop.f32.mrb[0].mxu0
          %v3637 = vpop.f32.mrb[0].mxu0
          %v3638 = vpop.f32.mrb[0].mxu0
          %3639 = vdwg.mxu0
          %v3640 = vld [vmem:[%s49] sm:$0x1]
          %vm3641 = vcmp.gt.f32.partialorder %v3635, 0.0
          %v3643 = vlaneseq
          %v3644 = vshrl.u32 %v3643, 7
          %v3645 = vsub.s32 0, %v3644
          %v3646 = vrot.slane %v3640, %v3645
          %3647 = vset.pattern.permute.xlu0 4
          %3648 = vperm.xlu0 %3647, %v3646
          %v3649 = vpop.permute.xlu0 %3648
          %v3651 = vmul.f32 %v3649, %v3635
          %v3652 = vsel %vm3641, %v3635, %v3651
          %v3653 = vpack.c.bf16 %v3652, %v3652
          %v3654 = vld [vmem:[%s41] sm:$0xf]
          %v3655 = vld [vmem:[%s41 + $0x4] sm:$0xf]
          %v3656 = vld [vmem:[%s41 + $0x8] sm:$0xf]
          %v3657 = vld [vmem:[%s41 + $0xc] sm:$0xf]
          %v3658 = vld [vmem:[%s43] sm:$0x1]
          %v3660 = vlaneseq
          %v3661 = vshrl.u32 %v3660, 7
          %v3662 = vsub.s32 0, %v3661
          %v3663 = vrot.slane %v3658, %v3662
          %v3669 = vunpack.c.l.b16 %v3654
          %v3670 = vunpack.c.l.b16 %v3655
          %v3671 = vunpack.c.l.b16 %v3656
          %v3672 = vunpack.c.l.b16 %v3657
          %v3673 = vpack.c.b16 %v3670, %v3669
          %v3674 = vpack.c.b16 %v3672, %v3671
          %v3678 = vsel %vm1954, %v3653, 0
          %3680 = vmatprep.subr.bf16.mxu0 0
          %3681 = vmatpush1.bf16.msra.mxu0 %v3673
          %3682 = vmatprep.subr.bf16.mxu0 0
          %3683 = vmatpush1.bf16.msra.mxu0 %v3674
          %3684 = vmatprep.subr.bf16.mxu0 0
          %3685 = vmatpush1.bf16.msra.mxu0 0
          %3686 = vmatprep.subr.bf16.mxu0 0
          %3687 = vmatpush1.bf16.msra.mxu0 0
          %3688 = vmatprep.subr.bf16.mxu0 0
          %3689 = vmatpush1.bf16.msra.mxu0 0
          %3690 = vmatprep.subr.bf16.mxu0 0
          %3691 = vmatpush1.bf16.msra.mxu0 0
          %3692 = vmatprep.subr.bf16.mxu0 0
          %3693 = vmatpush1.bf16.msra.mxu0 0
          %3694 = vmatprep.subr.bf16.mxu0 0
          %3695 = vmatpush1.bf16.msra.mxu0 0
          %3696 = vmatprep.subr.bf16.mxu0 0
          %3697 = vmatpush1.bf16.msra.mxu0 0
          %3698 = vmatprep.subr.bf16.mxu0 0
          %3699 = vmatpush1.bf16.msra.mxu0 0
          %3700 = vmatprep.subr.bf16.mxu0 0
          %3701 = vmatpush1.bf16.msra.mxu0 0
          %3702 = vmatprep.subr.bf16.mxu0 0
          %3703 = vmatpush1.bf16.msra.mxu0 0
          %3704 = vmatprep.subr.bf16.mxu0 0
          %3705 = vmatpush1.bf16.msra.mxu0 0
          %3706 = vmatprep.subr.bf16.mxu0 0
          %3707 = vmatpush1.bf16.msra.mxu0 0
          %3708 = vmatprep.subr.bf16.mxu0 0
          %3709 = vmatpush1.bf16.msra.mxu0 0
          %3710 = vmatprep.subr.bf16.mxu0 0
          %3711 = vmatpush1.bf16.msra.mxu0 0
          %3712 = vmatprep.mubr.bf16.mxu0 0
          %3713 = vmatmul.mubr.bf16.gmra.mrb[0].mxu0 %v3678
          %v3714 = vpop.f32.mrb[0].mxu0
          %v3715 = vadd.f32 %v3663, %v3714
          %v3716 = vpop.f32.mrb[0].mxu0
          %v3717 = vpop.f32.mrb[0].mxu0
          %v3718 = vpop.f32.mrb[0].mxu0
          %3719 = vdwg.mxu0
          %3720 = vst.msk [vmem:[%s1199] sm:$0xff] %vm2775, %v3715
        $region164: #{tpu_custom_call.1} parent=155 // pred_fallthru
          _
        %s3721 = sand.u32 %s882, 1
        %s3722 = scalar_lea.sflag [#allocation5], %s3721
        %s3723 = sand.u32 %s882, 1
        %s3724 = smul.addr %s3723, 8
        %s3725 = scalar_lea.vmem [#allocation4], %s3724
        // Predicated region
        $region165: #{tpu_custom_call.1} parent=155 // pred_check
          %p3726 = pneg %p892
        $region166: #{tpu_custom_call.1} parent=155 // pred_check_branch
          %3728 = sbr.rel (%p3726) target = $region168
        $region167: #{tpu_custom_call.1} parent=155 // pred_region
          %s3730 = ssub.s32 128, 128
          %3731 = vsyncadd %s3722, %s3730
          %s3732 = smul.addr %s87, 128
          %s3733 = scalar_lea.hbm %s69, %s3732
          %s3735 = sshll.u32 %s3725, 4
          %s3736 = int_to_ptr.vmem [resolvable:$true] %s3735
          %3738 = dma.vmem_to_hbm [thread:$0]  %s3736, 128, %s3733, %s3722
        $region168: #{tpu_custom_call.1} parent=155 // pred_fallthru
          _
      $region156: #{tpu_custom_call.1} parent=5 // pred_fallthru
        _
      %p3739 = scmp.le.s32.totalorder 2, %s78
      // Predicated region
      $region169: #{tpu_custom_call.1} parent=5 // pred_check
        %p3740 = pneg %p3739
      $region170: #{tpu_custom_call.1} parent=5 // pred_check_branch
        %3742 = sbr.rel (%p3740) target = $region172
      $region171: #{tpu_custom_call.1} parent=5 // pred_region
        %s3743 = ssub.s32 %s78, 2
        // Predicated region
        $region173: #{tpu_custom_call.1} parent=171 // pred_check
          %p3744 = pneg %p898
        $region174: #{tpu_custom_call.1} parent=171 // pred_check_branch
          %3746 = sbr.rel (%p3744) target = $region176
        $region175: #{tpu_custom_call.1} parent=171 // pred_region
          %s3747 = sand.u32 %s883, 1
          %s3748 = scalar_lea.sflag [#allocation5], %s3747
          %s3749 = sand.u32 %s883, 1
          %s3750 = smul.addr %s3749, 8
          %s3751 = scalar_lea.vmem [#allocation4], %s3750
          %3752 = dma.done %s3748, 128
        $region176: #{tpu_custom_call.1} parent=171 // pred_fallthru
          _
      $region172: #{tpu_custom_call.1} parent=5 // pred_fallthru
        _
    $region6: #{tpu_custom_call.1} parent=1 // loop_footer
      %s82 = sadd.s32 1, %s78
    $region7: #{tpu_custom_call.1} parent=1 // loop_footer_branch
      %77 = sbr.rel target = $region3
    $region8: #{tpu_custom_call.1} parent=1 // loop_exit
      _
    %3753 = vsyncpa [#allocation5], 1
    %s3754 = scalar_lea.sflag [#allocation5], 1
    %3755 = vsyncpa %s3754, 1

</llo_original>
